<compile_context>
chip_gen: v5e
topology: v5e:2x2
jax: 0.10.0
libtpu: 0.0.40
codegen_flags: <defaults>
</compile_context>

<pallas_src>
import jax
import jax.numpy as jnp
from jax.experimental import pallas as pl
from jax.experimental.pallas import tpu as pltpu

LN_EPS = 1e-5  # PyTorch nn.LayerNorm default


def _round_up(x, m):
    return ((x + m - 1) // m) * m


def _mlp_kernel(x_ref, w1_ref, b1_ref, g_ref, beta_ref, w2_ref, b2_ref, o_ref):
    # x: (TB, K) f32 | w1: (K, l1) bf16 | b1/gamma/beta/w2: (1, l1) f32 | b2: (1,1) f32 SMEM
    # Cast the streamed activations to bf16 in-kernel (VPU) so the MXU runs native bf16.
    x = x_ref[...].astype(jnp.bfloat16)

    # ---- Linear(num_input, l1): bf16 operands, f32 accumulation on the MXU ----
    h = jnp.dot(x, w1_ref[...], preferred_element_type=jnp.float32) + b1_ref[...]

    # ---- LayerNorm(l1), elementwise affine (f32) ----
    mean = jnp.mean(h, axis=-1, keepdims=True)
    c = h - mean
    var = jnp.mean(c * c, axis=-1, keepdims=True)
    hn = c * jax.lax.rsqrt(var + LN_EPS) * g_ref[...] + beta_ref[...]

    # ---- ReLU ----
    hr = jnp.maximum(hn, 0.0)

    # ---- Linear(l1, 1) as (1,l1)·(TB,l1)ᵀ -> (1, TB): lane-dense output row ----
    out_row = jax.lax.dot_general(
        w2_ref[...], hr,
        dimension_numbers=(((1,), (1,)), ((), ())),
        preferred_element_type=jnp.float32)
    o_ref[...] = (out_row + b2_ref[0, 0]).astype(o_ref.dtype)


def neural_network_bak_forward(x, params, *, tb=256):
    """x: (B, ...) any trailing dims; flattened to (B, num_input). Returns (B, 1) f32."""
    w1, b1, gamma, beta, w2, b2 = params
    num_input, l1 = w1.shape
    B = x.shape[0]
    x2d = x.reshape(B, -1).astype(jnp.float32)  # nn.Flatten()
    assert x2d.shape[1] == num_input

    # Pad contraction (lane) dim to a multiple of 128 with zeros: exact, full-width vregs.
    # (Only triggers when num_input is not already lane-aligned.)
    k_pad = (-num_input) % 128
    if k_pad:
        x2d = jnp.pad(x2d, ((0, 0), (0, k_pad)))
        w1 = jnp.pad(w1, ((0, k_pad), (0, 0)))
    K = num_input + k_pad

    # Batch tile: multiple of 8 sublanes; a full 256-row (MXU-height) tile when B is large.
    if B >= tb:
        TB = tb
        assert TB % 128 == 0, "tb must be a multiple of 128 when tiling the batch"
    else:
        TB = _round_up(B, 8)
    G = (B + TB - 1) // TB
    B_pad = G * TB
    if B_pad != B:
        x2d = jnp.pad(x2d, ((0, B_pad - B), (0, 0)))  # zero rows; sliced away below

    # Weights: w1 cast once to bf16 (grid-resident, DMA'd once); small vectors stay f32.
    w1_bf16 = w1.astype(jnp.bfloat16)
    w2_row = w2.reshape(1, l1).astype(jnp.float32)
    b2_s = b2.reshape(1, 1).astype(jnp.float32)

    out = pl.pallas_call(
        _mlp_kernel,
        out_shape=jax.ShapeDtypeStruct((1, B_pad), jnp.float32),
        grid=(G,),
        in_specs=[
            pl.BlockSpec((TB, K), lambda i: (i, 0)),            # x: f32, tiled over batch
            pl.BlockSpec((K, l1), lambda i: (0, 0)),            # w1: bf16, resident
            pl.BlockSpec((1, l1), lambda i: (0, 0)),            # b1
            pl.BlockSpec((1, l1), lambda i: (0, 0)),            # gamma
            pl.BlockSpec((1, l1), lambda i: (0, 0)),            # beta
            pl.BlockSpec((1, l1), lambda i: (0, 0)),            # w2 as a row
            pl.BlockSpec(memory_space=pltpu.MemorySpace.SMEM),  # b2 scalar in SMEM
        ],
        out_specs=pl.BlockSpec((1, TB), lambda i: (0, i)),      # lane-dense (batch on lanes)
        compiler_params=pltpu.CompilerParams(
            dimension_semantics=("parallel",)),
    )(x2d, w1_bf16, b1, gamma, beta, w2_row, b2_s)

    return out.reshape(-1)[:B].reshape(B, 1)


def init_params(key, num_input, l1):
    """Deterministic init matching PyTorch Linear default (uniform +-1/sqrt(fan_in))."""
    k1, k2, k3, k4 = jax.random.split(key, 4)
    bound1 = 1.0 / jnp.sqrt(num_input)
    w1 = jax.random.uniform(k1, (num_input, l1), jnp.float32, -bound1, bound1)
    b1 = jax.random.uniform(k2, (1, l1), jnp.float32, -bound1, bound1)
    gamma = jnp.ones((1, l1), jnp.float32)   # LayerNorm weight
    beta = jnp.zeros((1, l1), jnp.float32)   # LayerNorm bias
    bound2 = 1.0 / jnp.sqrt(l1)
    w2 = jax.random.uniform(k3, (1, l1), jnp.float32, -bound2, bound2)   # stored as a row
    b2 = jax.random.uniform(k4, (1, 1), jnp.float32, -bound2, bound2)
    return (w1, b1, gamma, beta, w2, b2)


def _reference(x, params):
    """Pure-JAX reference with the same bf16 cast on the first matmul inputs."""
    w1, b1, gamma, beta, w2, b2 = params
    x2d = x.reshape(x.shape[0], -1)
    xb = x2d.astype(jnp.bfloat16).astype(jnp.float32)
    w1b = w1.astype(jnp.bfloat16).astype(jnp.float32)
    h = jnp.dot(xb, w1b, precision=jax.lax.Precision.HIGHEST) + b1
    mean = jnp.mean(h, axis=-1, keepdims=True)
    c = h - mean
    var = jnp.mean(c * c, axis=-1, keepdims=True)
    hn = c * jax.lax.rsqrt(var + LN_EPS) * gamma + beta
    hr = jnp.maximum(hn, 0.0)
    return jnp.dot(hr, w2.reshape(-1, 1), precision=jax.lax.Precision.HIGHEST) + b2.reshape(1, 1)


if __name__ == "__main__":
    key = jax.random.PRNGKey(0)
    kx, kp, kx2 = jax.random.split(key, 3)

    # Flattened input = C*H*W = 1024, hidden l1 = 256 (lane-multiple shapes).
    C, H, W = 4, 16, 16
    num_input = C * H * W
    l1 = 256
    params = init_params(kp, num_input, l1)

    # Batched case: B=512 -> grid of 2 tiles of TB=256 (exercises pipelining / parallel axis).
    xb = jax.random.normal(kx, (512, C, H, W), jnp.float32)
    out_b = jax.block_until_ready(neural_network_bak_forward(xb, params))
    ref_b = _reference(xb, params)
    assert out_b.shape == (512, 1)
    assert jnp.allclose(out_b, ref_b, atol=2e-3, rtol=2e-3)

    # Tiny case: B=2 -> single 8-row tile with zero-padded batch rows.
    xs = jax.random.normal(kx2, (2, C, H, W), jnp.float32)
    out_s = jax.block_until_ready(neural_network_bak_forward(xs, params))
    ref_s = _reference(xs, params)
    assert out_s.shape == (2, 1)
    assert jnp.allclose(out_s, ref_s, atol=2e-3, rtol=2e-3)

    print("KERNEL_OK")
</pallas_src>

<mosaic_0001>
module attributes {stable_mosaic.version = 11 : i64} {
  func.func @_mlp_kernel(%arg0: i32, %arg1: memref<256x1024xf32, #tpu.memory_space<vmem>>, %arg2: memref<1024x256xbf16, #tpu.memory_space<vmem>>, %arg3: memref<1x256xf32, #tpu.memory_space<vmem>>, %arg4: memref<1x256xf32, #tpu.memory_space<vmem>>, %arg5: memref<1x256xf32, #tpu.memory_space<vmem>>, %arg6: memref<1x256xf32, #tpu.memory_space<vmem>>, %arg7: memref<1x1xf32, #tpu.memory_space<smem>>, %arg8: memref<1x256xf32, #tpu.memory_space<vmem>>) attributes {dimension_semantics = [#tpu.dimension_semantics<parallel>], iteration_bounds = array<i64: 2>, scalar_prefetch = 0 : i64, scratch_operands = 0 : i64, tpu.core_type = #tpu.core_type<tc>, window_params = [{transform_indices = @transform_0, window_bounds = array<i64: 256, 1024>}, {pipeline_mode = #tpu.pipeline_mode<synchronous>, transform_indices = @transform_1, window_bounds = array<i64: 1024, 256>}, {pipeline_mode = #tpu.pipeline_mode<synchronous>, transform_indices = @transform_2, window_bounds = array<i64: 1, 256>}, {pipeline_mode = #tpu.pipeline_mode<synchronous>, transform_indices = @transform_3, window_bounds = array<i64: 1, 256>}, {pipeline_mode = #tpu.pipeline_mode<synchronous>, transform_indices = @transform_4, window_bounds = array<i64: 1, 256>}, {pipeline_mode = #tpu.pipeline_mode<synchronous>, transform_indices = @transform_5, window_bounds = array<i64: 1, 256>}, {transform_indices = @transform_6, window_bounds = array<i64: 1, 1>}, {transform_indices = @transform_7, window_bounds = array<i64: 1, 256>}]} {
    %c0 = arith.constant 0 : index
    %c0_0 = arith.constant 0 : index
    %0 = vector.load %arg1[%c0, %c0_0] : memref<256x1024xf32, #tpu.memory_space<vmem>>, vector<256x1024xf32>
    %1 = arith.truncf %0 : vector<256x1024xf32> to vector<256x1024xbf16>
    %c0_1 = arith.constant 0 : index
    %c0_2 = arith.constant 0 : index
    %2 = vector.load %arg2[%c0_1, %c0_2] : memref<1024x256xbf16, #tpu.memory_space<vmem>>, vector<1024x256xbf16>
    %cst = arith.constant dense<0.000000e+00> : vector<256x256xf32>
    %3 = tpu.matmul %1, %2, %cst {dimension_numbers = #tpu.dot_dimension_numbers<[1], [0], [0], [1], [0, 0, 1, 1], [], []>} : vector<256x1024xbf16>, vector<1024x256xbf16>, vector<256x256xf32> -> vector<256x256xf32>
    %c0_3 = arith.constant 0 : index
    %c0_4 = arith.constant 0 : index
    %4 = vector.load %arg3[%c0_3, %c0_4] : memref<1x256xf32, #tpu.memory_space<vmem>>, vector<1x256xf32>
    %5 = vector.broadcast %4 : vector<1x256xf32> to vector<256x256xf32>
    %6 = arith.addf %3, %5 : vector<256x256xf32>
    %cst_5 = arith.constant dense<0.000000e+00> : vector<256xf32>
    %7 = vector.multi_reduction <add>, %6, %cst_5 [1] : vector<256x256xf32> to vector<256xf32>
    %8 = vector.shape_cast %7 : vector<256xf32> to vector<256x1xf32>
    %cst_6 = arith.constant 2.560000e+02 : f32
    %9 = vector.broadcast %cst_6 : f32 to vector<256x1xf32>
    %10 = arith.divf %8, %9 : vector<256x1xf32>
    %11 = vector.broadcast %10 : vector<256x1xf32> to vector<256x256xf32>
    %12 = arith.subf %6, %11 : vector<256x256xf32>
    %13 = arith.mulf %12, %12 : vector<256x256xf32>
    %cst_7 = arith.constant dense<0.000000e+00> : vector<256xf32>
    %14 = vector.multi_reduction <add>, %13, %cst_7 [1] : vector<256x256xf32> to vector<256xf32>
    %15 = vector.shape_cast %14 : vector<256xf32> to vector<256x1xf32>
    %cst_8 = arith.constant 2.560000e+02 : f32
    %16 = vector.broadcast %cst_8 : f32 to vector<256x1xf32>
    %17 = arith.divf %15, %16 : vector<256x1xf32>
    %cst_9 = arith.constant 9.99999974E-6 : f32
    %18 = vector.broadcast %cst_9 : f32 to vector<256x1xf32>
    %19 = arith.addf %17, %18 : vector<256x1xf32>
    %20 = math.rsqrt %19 : vector<256x1xf32>
    %21 = vector.broadcast %20 : vector<256x1xf32> to vector<256x256xf32>
    %22 = arith.mulf %12, %21 : vector<256x256xf32>
    %c0_10 = arith.constant 0 : index
    %c0_11 = arith.constant 0 : index
    %23 = vector.load %arg4[%c0_10, %c0_11] : memref<1x256xf32, #tpu.memory_space<vmem>>, vector<1x256xf32>
    %24 = vector.broadcast %23 : vector<1x256xf32> to vector<256x256xf32>
    %25 = arith.mulf %22, %24 : vector<256x256xf32>
    %c0_12 = arith.constant 0 : index
    %c0_13 = arith.constant 0 : index
    %26 = vector.load %arg5[%c0_12, %c0_13] : memref<1x256xf32, #tpu.memory_space<vmem>>, vector<1x256xf32>
    %27 = vector.broadcast %26 : vector<1x256xf32> to vector<256x256xf32>
    %28 = arith.addf %25, %27 : vector<256x256xf32>
    %cst_14 = arith.constant 0.000000e+00 : f32
    %29 = vector.broadcast %cst_14 : f32 to vector<256x256xf32>
    %30 = arith.maximumf %28, %29 : vector<256x256xf32>
    %c0_15 = arith.constant 0 : index
    %c0_16 = arith.constant 0 : index
    %31 = vector.load %arg6[%c0_15, %c0_16] : memref<1x256xf32, #tpu.memory_space<vmem>>, vector<1x256xf32>
    %cst_17 = arith.constant dense<0.000000e+00> : vector<1x256xf32>
    %32 = tpu.matmul %31, %30, %cst_17 {dimension_numbers = #tpu.dot_dimension_numbers<[1], [1], [0], [0], [0, 0, 1, 0], [], []>} : vector<1x256xf32>, vector<256x256xf32>, vector<1x256xf32> -> vector<1x256xf32>
    %c0_18 = arith.constant 0 : index
    %c0_19 = arith.constant 0 : index
    %33 = memref.load %arg7[%c0_18, %c0_19] : memref<1x1xf32, #tpu.memory_space<smem>>
    %34 = vector.broadcast %33 : f32 to vector<1x256xf32>
    %35 = arith.addf %32, %34 : vector<1x256xf32>
    %c0_20 = arith.constant 0 : index
    %c0_21 = arith.constant 0 : index
    %36 = vector.load %arg8[%c0_20, %c0_21] : memref<1x256xf32, #tpu.memory_space<vmem>>, vector<1x256xf32>
    tpu.vector_store %arg8[%c0_20, %c0_21], %35 {strides = array<i32>} : memref<1x256xf32, #tpu.memory_space<vmem>>, vector<1x256xf32>,
    return
  }
  func.func @transform_0(%arg0: i32) -> (i32, i32) {
    %c0_i32 = arith.constant 0 : i32
    %c0_i32_0 = arith.constant 0 : i32
    return %arg0, %c0_i32 : i32, i32
  }
  func.func @transform_1(%arg0: i32) -> (i32, i32) {
    %c0_i32 = arith.constant 0 : i32
    %c0_i32_0 = arith.constant 0 : i32
    %c0_i32_1 = arith.constant 0 : i32
    return %c0_i32, %c0_i32_0 : i32, i32
  }
  func.func @transform_2(%arg0: i32) -> (i32, i32) {
    %c0_i32 = arith.constant 0 : i32
    %c0_i32_0 = arith.constant 0 : i32
    %c0_i32_1 = arith.constant 0 : i32
    return %c0_i32, %c0_i32_0 : i32, i32
  }
  func.func @transform_3(%arg0: i32) -> (i32, i32) {
    %c0_i32 = arith.constant 0 : i32
    %c0_i32_0 = arith.constant 0 : i32
    %c0_i32_1 = arith.constant 0 : i32
    return %c0_i32, %c0_i32_0 : i32, i32
  }
  func.func @transform_4(%arg0: i32) -> (i32, i32) {
    %c0_i32 = arith.constant 0 : i32
    %c0_i32_0 = arith.constant 0 : i32
    %c0_i32_1 = arith.constant 0 : i32
    return %c0_i32, %c0_i32_0 : i32, i32
  }
  func.func @transform_5(%arg0: i32) -> (i32, i32) {
    %c0_i32 = arith.constant 0 : i32
    %c0_i32_0 = arith.constant 0 : i32
    %c0_i32_1 = arith.constant 0 : i32
    return %c0_i32, %c0_i32_0 : i32, i32
  }
  func.func @transform_6(%arg0: i32) -> (i32, i32) {
    %c0_i32 = arith.constant 0 : i32
    %c0_i32_0 = arith.constant 0 : i32
    %c0_i32_1 = arith.constant 0 : i32
    return %c0_i32, %c0_i32_0 : i32, i32
  }
  func.func @transform_7(%arg0: i32) -> (i32, i32) {
    %c0_i32 = arith.constant 0 : i32
    %c0_i32_0 = arith.constant 0 : i32
    return %c0_i32, %arg0 : i32, i32
  }
}

</mosaic_0001>

<llo_original>
// kernel: tpu_custom_call.1
$region0: #{tpu_custom_call.1}
  #allocation0 [shape = 'u32[]', space=smem, size = 0x4, offset = 0x4, fixed_abs, tag = 'smem constant byte address 0x4 - core index']
  #allocation1 [shape = 'u32[72,128]{1,0:T(1,128)}', space=vmem, size = 0x9000, scoped, tag = 'internal scratch']
  #allocation2 [shape = 'f32[1,1]{1,0:T(1,128)S(6)}', space=smem, size = 0x200, scoped, tag = 'scoped memory for tpu_custom_call.1']
  %s0 = inlined_call_operand.hbm [shape: f32[512,1024], index: 0, kind: input, shape index: {}]
  %s1 = inlined_call_operand.hbm [shape: bf16[1024,256], index: 1, kind: input, shape index: {}]
  %s2 = inlined_call_operand.hbm [shape: f32[1,256], index: 2, kind: input, shape index: {}]
  %s3 = inlined_call_operand.hbm [shape: f32[1,256], index: 3, kind: input, shape index: {}]
  %s4 = inlined_call_operand.hbm [shape: f32[1,256], index: 4, kind: input, shape index: {}]
  %s5 = inlined_call_operand.hbm [shape: f32[1,256], index: 5, kind: input, shape index: {}]
  %s6 = inlined_call_operand.<no memory space> [shape: f32[1,1], index: 6, kind: input, shape index: {}]
  %s7 = inlined_call_operand.hbm [shape: f32[1,512], index: 7, kind: output, shape index: {}]
  %s8 = sld [smem:[#allocation0]]
  $region85: #{tpu_custom_call.1} parent=0
    _
  %s10 = ssub.s32 1, %s8
  %s11 = scalar_select 0, %s10, %s8
  %12 = sst [smem:[#allocation2]] %s6
  $region1: #{tpu_custom_call.1} parent=0
    #allocation3 [shape = 'u8[2097152]{0}', space=vmem, size = 0x200000, scoped, tag = 'input window, operand 0']
    #allocation4 [shape = 's32[2]{0}', space=sflag, size = 0x8, scoped, tag = 'scoped memory for tpu_custom_call.1']
    #allocation5 [shape = 's32[2]{0}', space=sflag, size = 0x8, scoped, tag = 'scoped memory for tpu_custom_call.1']
    #allocation6 [shape = 'u8[524288]{0}', space=vmem, size = 0x80000, scoped, tag = 'input window, operand 1, single buffered']
    #allocation7 [shape = 's32[1]{0}', space=sflag, size = 0x4, scoped, tag = 'scoped memory for tpu_custom_call.1']
    #allocation8 [shape = 'u8[1024]{0}', space=vmem, size = 0x400, scoped, tag = 'input window, operand 2, single buffered']
    #allocation9 [shape = 'u8[1024]{0}', space=vmem, size = 0x400, scoped, tag = 'input window, operand 3, single buffered']
    #allocation10 [shape = 's32[1]{0}', space=sflag, size = 0x4, scoped, tag = 'scoped memory for tpu_custom_call.1']
    #allocation11 [shape = 'u8[1024]{0}', space=vmem, size = 0x400, scoped, tag = 'input window, operand 4, single buffered']
    #allocation12 [shape = 'u8[1024]{0}', space=vmem, size = 0x400, scoped, tag = 'input window, operand 5, single buffered']
    #allocation13 [shape = 's32[1]{0}', space=sflag, size = 0x4, scoped, tag = 'scoped memory for tpu_custom_call.1']
    #allocation14 [shape = 'u8[2048]{0}', space=vmem, size = 0x800, scoped, tag = 'output window, operand 0']
    %13 = vsyncpa [#allocation4], 0
    %s14 = scalar_lea.sflag [#allocation4], 1
    %15 = vsyncpa %s14, 0
    %16 = vsyncpa [#allocation7], 0
    %17 = vsyncpa [#allocation10], 0
    %18 = vsyncpa [#allocation13], 0
    %19 = vsyncpa [#allocation5], 0
    %s20 = scalar_lea.sflag [#allocation5], 1
    %21 = vsyncpa %s20, 0
    loop: start=0, step=1, limit=4
    $region2: #{tpu_custom_call.1} parent=1 // loop_pre_header
      _
    $region3: #{tpu_custom_call.1} parent=1 // loop_header
      %s23 = sphi 0, %s27
      %p24 = scmp.ge.s32.totalorder %s23, 4
      %s33 = sphi 0, %s35
      %s36 = sphi 0, %s33
      %s37 = sphi 0, %s36
      %s53 = sphi 0, %s37
      %s57 = sphi 0, %s57
      %s59 = sphi 0, %s57
      %s60 = sphi 0, %s59
      %s74 = sphi 0, %s60
      %s78 = sphi 0, %s78
      %s80 = sphi 0, %s78
      %s81 = sphi 0, %s80
      %s95 = sphi 0, %s81
      %s99 = sphi 0, %s99
      %s101 = sphi 0, %s99
      %s102 = sphi 0, %s101
      %s116 = sphi 0, %s102
      %s120 = sphi 0, %s120
      %s122 = sphi 0, %s120
      %s123 = sphi 0, %s122
      %s137 = sphi 0, %s123
      %s141 = sphi 0, %s141
      %s143 = sphi 0, %s141
      %s144 = sphi 0, %s143
      %s158 = sphi 0, %s144
      %s162 = sphi 0, %s162
      %s164 = sphi 0, %s162
      %s165 = sphi 0, %s164
      %s179 = sphi 0, %s165
      %s185 = sphi 0, %s187
      %s188 = sphi 0, %s185
      %s189 = sphi 0, %s188
      %s205 = sphi 0, %s189
    $region4: #{tpu_custom_call.1} parent=1 // loop_header_branch
      %26 = sbr.rel (%p24) target = $region8
    $region5: #{tpu_custom_call.1} parent=1 // loop_body
      %s28 = ssub.s32 %s23, 1
      %s29 = ssub.s32 %s23, 2
      %s30 = sadd.s32 %s23, 1
      %s31 = ssub.s32 %s23, %s30
      %p32 = scmp.eq.s32.totalorder %s31, 0
      %s34 = sadd.s32 %s33, 1
      %s35 = scalar_select %p32, %s33, %s34
      %p38 = pneg %p32
      %p39 = scmp.eq.s32.totalorder %s23, 1
      %p40 = por %p38, %p39
      %p41 = scmp.ne.s32.totalorder %s33, %s36
      %p42 = scmp.eq.s32.totalorder %s23, 0
      %p43 = por %p41, %p42
      %p44 = scmp.ne.s32.totalorder %s33, %s36
      %p45 = scmp.eq.s32.totalorder %s28, 1
      %p46 = por %p44, %p45
      %p47 = scmp.ne.s32.totalorder %s36, %s37
      %p48 = scmp.eq.s32.totalorder %s28, 0
      %p49 = por %p47, %p48
      %p50 = scmp.ne.s32.totalorder %s36, %s37
      %p51 = scmp.eq.s32.totalorder %s29, 1
      %p52 = por %p50, %p51
      %p54 = scmp.ne.s32.totalorder %s37, %s53
      %p55 = scmp.eq.s32.totalorder %s29, 0
      %p56 = por %p54, %p55
      %s58 = sadd.s32 %s57, 1
      %p61 = scmp.eq.s32.totalorder %s23, 1
      %p62 = scmp.ne.s32.totalorder %s57, %s59
      %p63 = scmp.eq.s32.totalorder %s23, 0
      %p64 = por %p62, %p63
      %p65 = scmp.ne.s32.totalorder %s57, %s59
      %p66 = scmp.eq.s32.totalorder %s28, 1
      %p67 = por %p65, %p66
      %p68 = scmp.ne.s32.totalorder %s59, %s60
      %p69 = scmp.eq.s32.totalorder %s28, 0
      %p70 = por %p68, %p69
      %p71 = scmp.ne.s32.totalorder %s59, %s60
      %p72 = scmp.eq.s32.totalorder %s29, 1
      %p73 = por %p71, %p72
      %p75 = scmp.ne.s32.totalorder %s60, %s74
      %p76 = scmp.eq.s32.totalorder %s29, 0
      %p77 = por %p75, %p76
      %s79 = sadd.s32 %s78, 1
      %p82 = scmp.eq.s32.totalorder %s23, 1
      %p83 = scmp.ne.s32.totalorder %s78, %s80
      %p84 = scmp.eq.s32.totalorder %s23, 0
      %p85 = por %p83, %p84
      %p86 = scmp.ne.s32.totalorder %s78, %s80
      %p87 = scmp.eq.s32.totalorder %s28, 1
      %p88 = por %p86, %p87
      %p89 = scmp.ne.s32.totalorder %s80, %s81
      %p90 = scmp.eq.s32.totalorder %s28, 0
      %p91 = por %p89, %p90
      %p92 = scmp.ne.s32.totalorder %s80, %s81
      %p93 = scmp.eq.s32.totalorder %s29, 1
      %p94 = por %p92, %p93
      %p96 = scmp.ne.s32.totalorder %s81, %s95
      %p97 = scmp.eq.s32.totalorder %s29, 0
      %p98 = por %p96, %p97
      %s100 = sadd.s32 %s99, 1
      %p103 = scmp.eq.s32.totalorder %s23, 1
      %p104 = scmp.ne.s32.totalorder %s99, %s101
      %p105 = scmp.eq.s32.totalorder %s23, 0
      %p106 = por %p104, %p105
      %p107 = scmp.ne.s32.totalorder %s99, %s101
      %p108 = scmp.eq.s32.totalorder %s28, 1
      %p109 = por %p107, %p108
      %p110 = scmp.ne.s32.totalorder %s101, %s102
      %p111 = scmp.eq.s32.totalorder %s28, 0
      %p112 = por %p110, %p111
      %p113 = scmp.ne.s32.totalorder %s101, %s102
      %p114 = scmp.eq.s32.totalorder %s29, 1
      %p115 = por %p113, %p114
      %p117 = scmp.ne.s32.totalorder %s102, %s116
      %p118 = scmp.eq.s32.totalorder %s29, 0
      %p119 = por %p117, %p118
      %s121 = sadd.s32 %s120, 1
      %p124 = scmp.eq.s32.totalorder %s23, 1
      %p125 = scmp.ne.s32.totalorder %s120, %s122
      %p126 = scmp.eq.s32.totalorder %s23, 0
      %p127 = por %p125, %p126
      %p128 = scmp.ne.s32.totalorder %s120, %s122
      %p129 = scmp.eq.s32.totalorder %s28, 1
      %p130 = por %p128, %p129
      %p131 = scmp.ne.s32.totalorder %s122, %s123
      %p132 = scmp.eq.s32.totalorder %s28, 0
      %p133 = por %p131, %p132
      %p134 = scmp.ne.s32.totalorder %s122, %s123
      %p135 = scmp.eq.s32.totalorder %s29, 1
      %p136 = por %p134, %p135
      %p138 = scmp.ne.s32.totalorder %s123, %s137
      %p139 = scmp.eq.s32.totalorder %s29, 0
      %p140 = por %p138, %p139
      %s142 = sadd.s32 %s141, 1
      %p145 = scmp.eq.s32.totalorder %s23, 1
      %p146 = scmp.ne.s32.totalorder %s141, %s143
      %p147 = scmp.eq.s32.totalorder %s23, 0
      %p148 = por %p146, %p147
      %p149 = scmp.ne.s32.totalorder %s141, %s143
      %p150 = scmp.eq.s32.totalorder %s28, 1
      %p151 = por %p149, %p150
      %p152 = scmp.ne.s32.totalorder %s143, %s144
      %p153 = scmp.eq.s32.totalorder %s28, 0
      %p154 = por %p152, %p153
      %p155 = scmp.ne.s32.totalorder %s143, %s144
      %p156 = scmp.eq.s32.totalorder %s29, 1
      %p157 = por %p155, %p156
      %p159 = scmp.ne.s32.totalorder %s144, %s158
      %p160 = scmp.eq.s32.totalorder %s29, 0
      %p161 = por %p159, %p160
      %s163 = sadd.s32 %s162, 1
      %p166 = scmp.eq.s32.totalorder %s23, 1
      %p167 = scmp.ne.s32.totalorder %s162, %s164
      %p168 = scmp.eq.s32.totalorder %s23, 0
      %p169 = por %p167, %p168
      %p170 = scmp.ne.s32.totalorder %s162, %s164
      %p171 = scmp.eq.s32.totalorder %s28, 1
      %p172 = por %p170, %p171
      %p173 = scmp.ne.s32.totalorder %s164, %s165
      %p174 = scmp.eq.s32.totalorder %s28, 0
      %p175 = por %p173, %p174
      %p176 = scmp.ne.s32.totalorder %s164, %s165
      %p177 = scmp.eq.s32.totalorder %s29, 1
      %p178 = por %p176, %p177
      %p180 = scmp.ne.s32.totalorder %s165, %s179
      %p181 = scmp.eq.s32.totalorder %s29, 0
      %p182 = por %p180, %p181
      %s183 = ssub.s32 %s23, %s30
      %p184 = scmp.eq.s32.totalorder %s183, 0
      %s186 = sadd.s32 %s185, 1
      %s187 = scalar_select %p184, %s185, %s186
      %p190 = pneg %p184
      %p191 = scmp.eq.s32.totalorder %s23, 1
      %p192 = por %p190, %p191
      %p193 = scmp.ne.s32.totalorder %s185, %s188
      %p194 = scmp.eq.s32.totalorder %s23, 0
      %p195 = por %p193, %p194
      %p196 = scmp.ne.s32.totalorder %s185, %s188
      %p197 = scmp.eq.s32.totalorder %s28, 1
      %p198 = por %p196, %p197
      %p199 = scmp.ne.s32.totalorder %s188, %s189
      %p200 = scmp.eq.s32.totalorder %s28, 0
      %p201 = por %p199, %p200
      %p202 = scmp.ne.s32.totalorder %s188, %s189
      %p203 = scmp.eq.s32.totalorder %s29, 1
      %p204 = por %p202, %p203
      %p206 = scmp.ne.s32.totalorder %s189, %s205
      %p207 = scmp.eq.s32.totalorder %s29, 0
      %p208 = por %p206, %p207
      %p209 = scmp.le.s32.totalorder 1, %s23
      %p210 = scmp.lt.s32.totalorder %s23, 3
      %p211 = pnand %p209, %p210
      %p212 = pneg %p211
      // Predicated region
      $region9: #{tpu_custom_call.1} parent=5 // pred_check
        _
      $region10: #{tpu_custom_call.1} parent=5 // pred_check_branch
        %214 = sbr.rel (%p211) target = $region12
      $region11: #{tpu_custom_call.1} parent=5 // pred_region
        %s215 = ssub.s32 %s23, 1
        // Predicated region
        $region13: #{tpu_custom_call.1} parent=11 // pred_check
          %p216 = pneg %p70
        $region14: #{tpu_custom_call.1} parent=11 // pred_check_branch
          %218 = sbr.rel (%p216) target = $region16
        $region15: #{tpu_custom_call.1} parent=11 // pred_region
          %220 = vsyncadd [#allocation7], 0
          %s221 = sshll.u32 %s1, 4
          %s222 = int_to_ptr.hbm [resolvable:$true] %s221
          %s223 = sshll.u32 [#allocation6], 4
          %s224 = int_to_ptr.vmem [resolvable:$true] %s223
          %229 = dma.hbm_to_vmem [thread:$0]  %s222, 16384, %s224, [#allocation7], 128, 128, 8
        $region16: #{tpu_custom_call.1} parent=11 // pred_fallthru
          _
        // Predicated region
        $region17: #{tpu_custom_call.1} parent=11 // pred_check
          %p230 = pneg %p91
        $region18: #{tpu_custom_call.1} parent=11 // pred_check_branch
          %232 = sbr.rel (%p230) target = $region20
        $region19: #{tpu_custom_call.1} parent=11 // pred_region
          %234 = vsyncadd [#allocation7], 0
          %s236 = sshll.u32 %s2, 4
          %s237 = int_to_ptr.hbm [resolvable:$true] %s236
          %s238 = sshll.u32 [#allocation8], 4
          %s239 = int_to_ptr.vmem [resolvable:$true] %s238
          %241 = dma.hbm_to_vmem [thread:$0]  %s237, 32, %s239, [#allocation7]
        $region20: #{tpu_custom_call.1} parent=11 // pred_fallthru
          _
        // Predicated region
        $region21: #{tpu_custom_call.1} parent=11 // pred_check
          %p242 = pneg %p112
        $region22: #{tpu_custom_call.1} parent=11 // pred_check_branch
          %244 = sbr.rel (%p242) target = $region24
        $region23: #{tpu_custom_call.1} parent=11 // pred_region
          %246 = vsyncadd [#allocation10], 0
          %s248 = sshll.u32 %s3, 4
          %s249 = int_to_ptr.hbm [resolvable:$true] %s248
          %s250 = sshll.u32 [#allocation9], 4
          %s251 = int_to_ptr.vmem [resolvable:$true] %s250
          %253 = dma.hbm_to_vmem [thread:$0]  %s249, 32, %s251, [#allocation10]
        $region24: #{tpu_custom_call.1} parent=11 // pred_fallthru
          _
        // Predicated region
        $region25: #{tpu_custom_call.1} parent=11 // pred_check
          %p254 = pneg %p133
        $region26: #{tpu_custom_call.1} parent=11 // pred_check_branch
          %256 = sbr.rel (%p254) target = $region28
        $region27: #{tpu_custom_call.1} parent=11 // pred_region
          %258 = vsyncadd [#allocation10], 0
          %s260 = sshll.u32 %s4, 4
          %s261 = int_to_ptr.hbm [resolvable:$true] %s260
          %s262 = sshll.u32 [#allocation11], 4
          %s263 = int_to_ptr.vmem [resolvable:$true] %s262
          %265 = dma.hbm_to_vmem [thread:$0]  %s261, 32, %s263, [#allocation10]
        $region28: #{tpu_custom_call.1} parent=11 // pred_fallthru
          _
        // Predicated region
        $region29: #{tpu_custom_call.1} parent=11 // pred_check
          %p266 = pneg %p154
        $region30: #{tpu_custom_call.1} parent=11 // pred_check_branch
          %268 = sbr.rel (%p266) target = $region32
        $region31: #{tpu_custom_call.1} parent=11 // pred_region
          %270 = vsyncadd [#allocation13], 0
          %s272 = sshll.u32 %s5, 4
          %s273 = int_to_ptr.hbm [resolvable:$true] %s272
          %s274 = sshll.u32 [#allocation12], 4
          %s275 = int_to_ptr.vmem [resolvable:$true] %s274
          %277 = dma.hbm_to_vmem [thread:$0]  %s273, 32, %s275, [#allocation13]
        $region32: #{tpu_custom_call.1} parent=11 // pred_fallthru
          _
        // Predicated region
        $region33: #{tpu_custom_call.1} parent=11 // pred_check
          %p278 = pneg %p175
        $region34: #{tpu_custom_call.1} parent=11 // pred_check_branch
          %280 = sbr.rel (%p278) target = $region36
        $region35: #{tpu_custom_call.1} parent=11 // pred_region
          _
        $region36: #{tpu_custom_call.1} parent=11 // pred_fallthru
          _
      $region12: #{tpu_custom_call.1} parent=5 // pred_fallthru
        _
      %p281 = scmp.lt.s32.totalorder %s23, 2
      // Predicated region
      $region37: #{tpu_custom_call.1} parent=5 // pred_check
        %p282 = pneg %p281
      $region38: #{tpu_custom_call.1} parent=5 // pred_check_branch
        %284 = sbr.rel (%p282) target = $region40
      $region39: #{tpu_custom_call.1} parent=5 // pred_region
        // Predicated region
        $region41: #{tpu_custom_call.1} parent=39 // pred_check
          %p285 = pneg %p43
        $region42: #{tpu_custom_call.1} parent=39 // pred_check_branch
          %287 = sbr.rel (%p285) target = $region44
        $region43: #{tpu_custom_call.1} parent=39 // pred_region
          %s288 = sand.u32 %s33, 1
          %s289 = scalar_lea.sflag [#allocation4], %s288
          %s290 = sand.u32 %s33, 1
          %s291 = smul.addr %s290, 2048
          %s292 = scalar_lea.vmem [#allocation3], %s291
          %s293 = smul.u32 32, %s23
          %295 = vsyncadd %s289, 0
          %s296 = smul.addr %s293, 8
          %s297 = smul.addr %s296, 8
          %s298 = scalar_lea.hbm %s0, %s297
          %s299 = sshll.u32 %s298, 4
          %s300 = int_to_ptr.hbm [resolvable:$true] %s299
          %s301 = sshll.u32 %s292, 4
          %s302 = int_to_ptr.vmem [resolvable:$true] %s301
          %307 = dma.hbm_to_vmem [thread:$0]  %s300, 32768, %s302, %s289, 1024, 1024, 64
        $region44: #{tpu_custom_call.1} parent=39 // pred_fallthru
          _
      $region40: #{tpu_custom_call.1} parent=5 // pred_fallthru
        _
      %p308 = scmp.le.s32.totalorder 1, %s23
      %p309 = scmp.lt.s32.totalorder %s23, 3
      %p310 = pnand %p308, %p309
      %p311 = pneg %p310
      // Predicated region
      $region45: #{tpu_custom_call.1} parent=5 // pred_check
        _
      $region46: #{tpu_custom_call.1} parent=5 // pred_check_branch
        %313 = sbr.rel (%p310) target = $region48
      $region47: #{tpu_custom_call.1} parent=5 // pred_region
        %s314 = ssub.s32 %s23, 1
        %s315 = sand.u32 %s36, 1
        %s316 = scalar_lea.sflag [#allocation4], %s315
        %s317 = sand.u32 %s36, 1
        %s318 = smul.addr %s317, 2048
        %s319 = scalar_lea.vmem [#allocation3], %s318
        // Predicated region
        $region49: #{tpu_custom_call.1} parent=47 // pred_check
          %p320 = pneg %p49
        $region50: #{tpu_custom_call.1} parent=47 // pred_check_branch
          %322 = sbr.rel (%p320) target = $region52
        $region51: #{tpu_custom_call.1} parent=47 // pred_region
          %324 = dma.done %s316, 32768
        $region52: #{tpu_custom_call.1} parent=47 // pred_fallthru
          _
        // Predicated region
        $region53: #{tpu_custom_call.1} parent=47 // pred_check
          %p325 = pneg %p70
        $region54: #{tpu_custom_call.1} parent=47 // pred_check_branch
          %327 = sbr.rel (%p325) target = $region56
        $region55: #{tpu_custom_call.1} parent=47 // pred_region
          %329 = dma.done [#allocation7], 16384
        $region56: #{tpu_custom_call.1} parent=47 // pred_fallthru
          _
        // Predicated region
        $region57: #{tpu_custom_call.1} parent=47 // pred_check
          %p330 = pneg %p91
        $region58: #{tpu_custom_call.1} parent=47 // pred_check_branch
          %332 = sbr.rel (%p330) target = $region60
        $region59: #{tpu_custom_call.1} parent=47 // pred_region
          %334 = dma.done [#allocation7], 32
        $region60: #{tpu_custom_call.1} parent=47 // pred_fallthru
          _
        // Predicated region
        $region61: #{tpu_custom_call.1} parent=47 // pred_check
          %p335 = pneg %p112
        $region62: #{tpu_custom_call.1} parent=47 // pred_check_branch
          %337 = sbr.rel (%p335) target = $region64
        $region63: #{tpu_custom_call.1} parent=47 // pred_region
          %339 = dma.done [#allocation10], 32
        $region64: #{tpu_custom_call.1} parent=47 // pred_fallthru
          _
        // Predicated region
        $region65: #{tpu_custom_call.1} parent=47 // pred_check
          %p340 = pneg %p133
        $region66: #{tpu_custom_call.1} parent=47 // pred_check_branch
          %342 = sbr.rel (%p340) target = $region68
        $region67: #{tpu_custom_call.1} parent=47 // pred_region
          %344 = dma.done [#allocation10], 32
        $region68: #{tpu_custom_call.1} parent=47 // pred_fallthru
          _
        // Predicated region
        $region69: #{tpu_custom_call.1} parent=47 // pred_check
          %p345 = pneg %p154
        $region70: #{tpu_custom_call.1} parent=47 // pred_check_branch
          %347 = sbr.rel (%p345) target = $region72
        $region71: #{tpu_custom_call.1} parent=47 // pred_region
          %349 = dma.done [#allocation13], 32
        $region72: #{tpu_custom_call.1} parent=47 // pred_fallthru
          _
        %s350 = sand.u32 %s36, 1
        %s351 = scalar_lea.sflag [#allocation4], %s350
        %s352 = sand.u32 %s36, 1
        %s353 = smul.addr %s352, 2048
        %s354 = scalar_lea.vmem [#allocation3], %s353
        %p355 = pneg %p49
        %p356 = pneg %p46
        %p357 = pneg %p70
        %p358 = pneg %p67
        %p359 = pneg %p91
        %p360 = pneg %p88
        %p361 = pneg %p112
        %p362 = pneg %p109
        %p363 = pneg %p133
        %p364 = pneg %p130
        %p365 = pneg %p154
        %p366 = pneg %p151
        %p367 = pneg %p175
        %p368 = pneg %p172
        %p369 = pneg %p201
        %p370 = pneg %p198
        %s371 = sand.u32 %s188, 1
        %s372 = scalar_lea.sflag [#allocation5], %s371
        %s373 = sand.u32 %s188, 1
        %s374 = smul.addr %s373, 2
        %s375 = scalar_lea.vmem [#allocation14], %s374
        %s376 = smul.u32 32, %s28
        %s377 = smul.u32 2, %s28
        %v378 = vld [vmem:[%s319] sm:$0xff]
        %v379 = vld [vmem:[%s319 + $0x8] sm:$0xff]
        %v380 = vld [vmem:[%s319 + $0x10] sm:$0xff]
        %v381 = vld [vmem:[%s319 + $0x18] sm:$0xff]
        %v382 = vld [vmem:[%s319 + $0x20] sm:$0xff]
        %v383 = vld [vmem:[%s319 + $0x28] sm:$0xff]
        %v384 = vld [vmem:[%s319 + $0x30] sm:$0xff]
        %v385 = vld [vmem:[%s319 + $0x38] sm:$0xff]
        %v386 = vld [vmem:[%s319 + $0x40] sm:$0xff]
        %v387 = vld [vmem:[%s319 + $0x48] sm:$0xff]
        %v388 = vld [vmem:[%s319 + $0x50] sm:$0xff]
        %v389 = vld [vmem:[%s319 + $0x58] sm:$0xff]
        %v390 = vld [vmem:[%s319 + $0x60] sm:$0xff]
        %v391 = vld [vmem:[%s319 + $0x68] sm:$0xff]
        %v392 = vld [vmem:[%s319 + $0x70] sm:$0xff]
        %v393 = vld [vmem:[%s319 + $0x78] sm:$0xff]
        %v394 = vld [vmem:[%s319 + $0x80] sm:$0xff]
        %v395 = vld [vmem:[%s319 + $0x88] sm:$0xff]
        %v396 = vld [vmem:[%s319 + $0x90] sm:$0xff]
        %v397 = vld [vmem:[%s319 + $0x98] sm:$0xff]
        %v398 = vld [vmem:[%s319 + $0xa0] sm:$0xff]
        %v399 = vld [vmem:[%s319 + $0xa8] sm:$0xff]
        %v400 = vld [vmem:[%s319 + $0xb0] sm:$0xff]
        %v401 = vld [vmem:[%s319 + $0xb8] sm:$0xff]
        %v402 = vld [vmem:[%s319 + $0xc0] sm:$0xff]
        %v403 = vld [vmem:[%s319 + $0xc8] sm:$0xff]
        %v404 = vld [vmem:[%s319 + $0xd0] sm:$0xff]
        %v405 = vld [vmem:[%s319 + $0xd8] sm:$0xff]
        %v406 = vld [vmem:[%s319 + $0xe0] sm:$0xff]
        %v407 = vld [vmem:[%s319 + $0xe8] sm:$0xff]
        %v408 = vld [vmem:[%s319 + $0xf0] sm:$0xff]
        %v409 = vld [vmem:[%s319 + $0xf8] sm:$0xff]
        %v410 = vld [vmem:[%s319 + $0x100] sm:$0xff]
        %v411 = vld [vmem:[%s319 + $0x108] sm:$0xff]
        %v412 = vld [vmem:[%s319 + $0x110] sm:$0xff]
        %v413 = vld [vmem:[%s319 + $0x118] sm:$0xff]
        %v414 = vld [vmem:[%s319 + $0x120] sm:$0xff]
        %v415 = vld [vmem:[%s319 + $0x128] sm:$0xff]
        %v416 = vld [vmem:[%s319 + $0x130] sm:$0xff]
        %v417 = vld [vmem:[%s319 + $0x138] sm:$0xff]
        %v418 = vld [vmem:[%s319 + $0x140] sm:$0xff]
        %v419 = vld [vmem:[%s319 + $0x148] sm:$0xff]
        %v420 = vld [vmem:[%s319 + $0x150] sm:$0xff]
        %v421 = vld [vmem:[%s319 + $0x158] sm:$0xff]
        %v422 = vld [vmem:[%s319 + $0x160] sm:$0xff]
        %v423 = vld [vmem:[%s319 + $0x168] sm:$0xff]
        %v424 = vld [vmem:[%s319 + $0x170] sm:$0xff]
        %v425 = vld [vmem:[%s319 + $0x178] sm:$0xff]
        %v426 = vld [vmem:[%s319 + $0x180] sm:$0xff]
        %v427 = vld [vmem:[%s319 + $0x188] sm:$0xff]
        %v428 = vld [vmem:[%s319 + $0x190] sm:$0xff]
        %v429 = vld [vmem:[%s319 + $0x198] sm:$0xff]
        %v430 = vld [vmem:[%s319 + $0x1a0] sm:$0xff]
        %v431 = vld [vmem:[%s319 + $0x1a8] sm:$0xff]
        %v432 = vld [vmem:[%s319 + $0x1b0] sm:$0xff]
        %v433 = vld [vmem:[%s319 + $0x1b8] sm:$0xff]
        %v434 = vld [vmem:[%s319 + $0x1c0] sm:$0xff]
        %v435 = vld [vmem:[%s319 + $0x1c8] sm:$0xff]
        %v436 = vld [vmem:[%s319 + $0x1d0] sm:$0xff]
        %v437 = vld [vmem:[%s319 + $0x1d8] sm:$0xff]
        %v438 = vld [vmem:[%s319 + $0x1e0] sm:$0xff]
        %v439 = vld [vmem:[%s319 + $0x1e8] sm:$0xff]
        %v440 = vld [vmem:[%s319 + $0x1f0] sm:$0xff]
        %v441 = vld [vmem:[%s319 + $0x1f8] sm:$0xff]
        %v442 = vld [vmem:[%s319 + $0x200] sm:$0xff]
        %v443 = vld [vmem:[%s319 + $0x208] sm:$0xff]
        %v444 = vld [vmem:[%s319 + $0x210] sm:$0xff]
        %v445 = vld [vmem:[%s319 + $0x218] sm:$0xff]
        %v446 = vld [vmem:[%s319 + $0x220] sm:$0xff]
        %v447 = vld [vmem:[%s319 + $0x228] sm:$0xff]
        %v448 = vld [vmem:[%s319 + $0x230] sm:$0xff]
        %v449 = vld [vmem:[%s319 + $0x238] sm:$0xff]
        %v450 = vld [vmem:[%s319 + $0x240] sm:$0xff]
        %v451 = vld [vmem:[%s319 + $0x248] sm:$0xff]
        %v452 = vld [vmem:[%s319 + $0x250] sm:$0xff]
        %v453 = vld [vmem:[%s319 + $0x258] sm:$0xff]
        %v454 = vld [vmem:[%s319 + $0x260] sm:$0xff]
        %v455 = vld [vmem:[%s319 + $0x268] sm:$0xff]
        %v456 = vld [vmem:[%s319 + $0x270] sm:$0xff]
        %v457 = vld [vmem:[%s319 + $0x278] sm:$0xff]
        %v458 = vld [vmem:[%s319 + $0x280] sm:$0xff]
        %v459 = vld [vmem:[%s319 + $0x288] sm:$0xff]
        %v460 = vld [vmem:[%s319 + $0x290] sm:$0xff]
        %v461 = vld [vmem:[%s319 + $0x298] sm:$0xff]
        %v462 = vld [vmem:[%s319 + $0x2a0] sm:$0xff]
        %v463 = vld [vmem:[%s319 + $0x2a8] sm:$0xff]
        %v464 = vld [vmem:[%s319 + $0x2b0] sm:$0xff]
        %v465 = vld [vmem:[%s319 + $0x2b8] sm:$0xff]
        %v466 = vld [vmem:[%s319 + $0x2c0] sm:$0xff]
        %v467 = vld [vmem:[%s319 + $0x2c8] sm:$0xff]
        %v468 = vld [vmem:[%s319 + $0x2d0] sm:$0xff]
        %v469 = vld [vmem:[%s319 + $0x2d8] sm:$0xff]
        %v470 = vld [vmem:[%s319 + $0x2e0] sm:$0xff]
        %v471 = vld [vmem:[%s319 + $0x2e8] sm:$0xff]
        %v472 = vld [vmem:[%s319 + $0x2f0] sm:$0xff]
        %v473 = vld [vmem:[%s319 + $0x2f8] sm:$0xff]
        %v474 = vld [vmem:[%s319 + $0x300] sm:$0xff]
        %v475 = vld [vmem:[%s319 + $0x308] sm:$0xff]
        %v476 = vld [vmem:[%s319 + $0x310] sm:$0xff]
        %v477 = vld [vmem:[%s319 + $0x318] sm:$0xff]
        %v478 = vld [vmem:[%s319 + $0x320] sm:$0xff]
        %v479 = vld [vmem:[%s319 + $0x328] sm:$0xff]
        %v480 = vld [vmem:[%s319 + $0x330] sm:$0xff]
        %v481 = vld [vmem:[%s319 + $0x338] sm:$0xff]
        %v482 = vld [vmem:[%s319 + $0x340] sm:$0xff]
        %v483 = vld [vmem:[%s319 + $0x348] sm:$0xff]
        %v484 = vld [vmem:[%s319 + $0x350] sm:$0xff]
        %v485 = vld [vmem:[%s319 + $0x358] sm:$0xff]
        %v486 = vld [vmem:[%s319 + $0x360] sm:$0xff]
        %v487 = vld [vmem:[%s319 + $0x368] sm:$0xff]
        %v488 = vld [vmem:[%s319 + $0x370] sm:$0xff]
        %v489 = vld [vmem:[%s319 + $0x378] sm:$0xff]
        %v490 = vld [vmem:[%s319 + $0x380] sm:$0xff]
        %v491 = vld [vmem:[%s319 + $0x388] sm:$0xff]
        %v492 = vld [vmem:[%s319 + $0x390] sm:$0xff]
        %v493 = vld [vmem:[%s319 + $0x398] sm:$0xff]
        %v494 = vld [vmem:[%s319 + $0x3a0] sm:$0xff]
        %v495 = vld [vmem:[%s319 + $0x3a8] sm:$0xff]
        %v496 = vld [vmem:[%s319 + $0x3b0] sm:$0xff]
        %v497 = vld [vmem:[%s319 + $0x3b8] sm:$0xff]
        %v498 = vld [vmem:[%s319 + $0x3c0] sm:$0xff]
        %v499 = vld [vmem:[%s319 + $0x3c8] sm:$0xff]
        %v500 = vld [vmem:[%s319 + $0x3d0] sm:$0xff]
        %v501 = vld [vmem:[%s319 + $0x3d8] sm:$0xff]
        %v502 = vld [vmem:[%s319 + $0x3e0] sm:$0xff]
        %v503 = vld [vmem:[%s319 + $0x3e8] sm:$0xff]
        %v504 = vld [vmem:[%s319 + $0x3f0] sm:$0xff]
        %v505 = vld [vmem:[%s319 + $0x3f8] sm:$0xff]
        %v506 = vld [vmem:[%s319 + $0x400] sm:$0xff]
        %v507 = vld [vmem:[%s319 + $0x408] sm:$0xff]
        %v508 = vld [vmem:[%s319 + $0x410] sm:$0xff]
        %v509 = vld [vmem:[%s319 + $0x418] sm:$0xff]
        %v510 = vld [vmem:[%s319 + $0x420] sm:$0xff]
        %v511 = vld [vmem:[%s319 + $0x428] sm:$0xff]
        %v512 = vld [vmem:[%s319 + $0x430] sm:$0xff]
        %v513 = vld [vmem:[%s319 + $0x438] sm:$0xff]
        %v514 = vld [vmem:[%s319 + $0x440] sm:$0xff]
        %v515 = vld [vmem:[%s319 + $0x448] sm:$0xff]
        %v516 = vld [vmem:[%s319 + $0x450] sm:$0xff]
        %v517 = vld [vmem:[%s319 + $0x458] sm:$0xff]
        %v518 = vld [vmem:[%s319 + $0x460] sm:$0xff]
        %v519 = vld [vmem:[%s319 + $0x468] sm:$0xff]
        %v520 = vld [vmem:[%s319 + $0x470] sm:$0xff]
        %v521 = vld [vmem:[%s319 + $0x478] sm:$0xff]
        %v522 = vld [vmem:[%s319 + $0x480] sm:$0xff]
        %v523 = vld [vmem:[%s319 + $0x488] sm:$0xff]
        %v524 = vld [vmem:[%s319 + $0x490] sm:$0xff]
        %v525 = vld [vmem:[%s319 + $0x498] sm:$0xff]
        %v526 = vld [vmem:[%s319 + $0x4a0] sm:$0xff]
        %v527 = vld [vmem:[%s319 + $0x4a8] sm:$0xff]
        %v528 = vld [vmem:[%s319 + $0x4b0] sm:$0xff]
        %v529 = vld [vmem:[%s319 + $0x4b8] sm:$0xff]
        %v530 = vld [vmem:[%s319 + $0x4c0] sm:$0xff]
        %v531 = vld [vmem:[%s319 + $0x4c8] sm:$0xff]
        %v532 = vld [vmem:[%s319 + $0x4d0] sm:$0xff]
        %v533 = vld [vmem:[%s319 + $0x4d8] sm:$0xff]
        %v534 = vld [vmem:[%s319 + $0x4e0] sm:$0xff]
        %v535 = vld [vmem:[%s319 + $0x4e8] sm:$0xff]
        %v536 = vld [vmem:[%s319 + $0x4f0] sm:$0xff]
        %v537 = vld [vmem:[%s319 + $0x4f8] sm:$0xff]
        %v538 = vld [vmem:[%s319 + $0x500] sm:$0xff]
        %v539 = vld [vmem:[%s319 + $0x508] sm:$0xff]
        %v540 = vld [vmem:[%s319 + $0x510] sm:$0xff]
        %v541 = vld [vmem:[%s319 + $0x518] sm:$0xff]
        %v542 = vld [vmem:[%s319 + $0x520] sm:$0xff]
        %v543 = vld [vmem:[%s319 + $0x528] sm:$0xff]
        %v544 = vld [vmem:[%s319 + $0x530] sm:$0xff]
        %v545 = vld [vmem:[%s319 + $0x538] sm:$0xff]
        %v546 = vld [vmem:[%s319 + $0x540] sm:$0xff]
        %v547 = vld [vmem:[%s319 + $0x548] sm:$0xff]
        %v548 = vld [vmem:[%s319 + $0x550] sm:$0xff]
        %v549 = vld [vmem:[%s319 + $0x558] sm:$0xff]
        %v550 = vld [vmem:[%s319 + $0x560] sm:$0xff]
        %v551 = vld [vmem:[%s319 + $0x568] sm:$0xff]
        %v552 = vld [vmem:[%s319 + $0x570] sm:$0xff]
        %v553 = vld [vmem:[%s319 + $0x578] sm:$0xff]
        %v554 = vld [vmem:[%s319 + $0x580] sm:$0xff]
        %v555 = vld [vmem:[%s319 + $0x588] sm:$0xff]
        %v556 = vld [vmem:[%s319 + $0x590] sm:$0xff]
        %v557 = vld [vmem:[%s319 + $0x598] sm:$0xff]
        %v558 = vld [vmem:[%s319 + $0x5a0] sm:$0xff]
        %v559 = vld [vmem:[%s319 + $0x5a8] sm:$0xff]
        %v560 = vld [vmem:[%s319 + $0x5b0] sm:$0xff]
        %v561 = vld [vmem:[%s319 + $0x5b8] sm:$0xff]
        %v562 = vld [vmem:[%s319 + $0x5c0] sm:$0xff]
        %v563 = vld [vmem:[%s319 + $0x5c8] sm:$0xff]
        %v564 = vld [vmem:[%s319 + $0x5d0] sm:$0xff]
        %v565 = vld [vmem:[%s319 + $0x5d8] sm:$0xff]
        %v566 = vld [vmem:[%s319 + $0x5e0] sm:$0xff]
        %v567 = vld [vmem:[%s319 + $0x5e8] sm:$0xff]
        %v568 = vld [vmem:[%s319 + $0x5f0] sm:$0xff]
        %v569 = vld [vmem:[%s319 + $0x5f8] sm:$0xff]
        %v570 = vld [vmem:[%s319 + $0x600] sm:$0xff]
        %v571 = vld [vmem:[%s319 + $0x608] sm:$0xff]
        %v572 = vld [vmem:[%s319 + $0x610] sm:$0xff]
        %v573 = vld [vmem:[%s319 + $0x618] sm:$0xff]
        %v574 = vld [vmem:[%s319 + $0x620] sm:$0xff]
        %v575 = vld [vmem:[%s319 + $0x628] sm:$0xff]
        %v576 = vld [vmem:[%s319 + $0x630] sm:$0xff]
        %v577 = vld [vmem:[%s319 + $0x638] sm:$0xff]
        %v578 = vld [vmem:[%s319 + $0x640] sm:$0xff]
        %v579 = vld [vmem:[%s319 + $0x648] sm:$0xff]
        %v580 = vld [vmem:[%s319 + $0x650] sm:$0xff]
        %v581 = vld [vmem:[%s319 + $0x658] sm:$0xff]
        %v582 = vld [vmem:[%s319 + $0x660] sm:$0xff]
        %v583 = vld [vmem:[%s319 + $0x668] sm:$0xff]
        %v584 = vld [vmem:[%s319 + $0x670] sm:$0xff]
        %v585 = vld [vmem:[%s319 + $0x678] sm:$0xff]
        %v586 = vld [vmem:[%s319 + $0x680] sm:$0xff]
        %v587 = vld [vmem:[%s319 + $0x688] sm:$0xff]
        %v588 = vld [vmem:[%s319 + $0x690] sm:$0xff]
        %v589 = vld [vmem:[%s319 + $0x698] sm:$0xff]
        %v590 = vld [vmem:[%s319 + $0x6a0] sm:$0xff]
        %v591 = vld [vmem:[%s319 + $0x6a8] sm:$0xff]
        %v592 = vld [vmem:[%s319 + $0x6b0] sm:$0xff]
        %v593 = vld [vmem:[%s319 + $0x6b8] sm:$0xff]
        %v594 = vld [vmem:[%s319 + $0x6c0] sm:$0xff]
        %v595 = vld [vmem:[%s319 + $0x6c8] sm:$0xff]
        %v596 = vld [vmem:[%s319 + $0x6d0] sm:$0xff]
        %v597 = vld [vmem:[%s319 + $0x6d8] sm:$0xff]
        %v598 = vld [vmem:[%s319 + $0x6e0] sm:$0xff]
        %v599 = vld [vmem:[%s319 + $0x6e8] sm:$0xff]
        %v600 = vld [vmem:[%s319 + $0x6f0] sm:$0xff]
        %v601 = vld [vmem:[%s319 + $0x6f8] sm:$0xff]
        %v602 = vld [vmem:[%s319 + $0x700] sm:$0xff]
        %v603 = vld [vmem:[%s319 + $0x708] sm:$0xff]
        %v604 = vld [vmem:[%s319 + $0x710] sm:$0xff]
        %v605 = vld [vmem:[%s319 + $0x718] sm:$0xff]
        %v606 = vld [vmem:[%s319 + $0x720] sm:$0xff]
        %v607 = vld [vmem:[%s319 + $0x728] sm:$0xff]
        %v608 = vld [vmem:[%s319 + $0x730] sm:$0xff]
        %v609 = vld [vmem:[%s319 + $0x738] sm:$0xff]
        %v610 = vld [vmem:[%s319 + $0x740] sm:$0xff]
        %v611 = vld [vmem:[%s319 + $0x748] sm:$0xff]
        %v612 = vld [vmem:[%s319 + $0x750] sm:$0xff]
        %v613 = vld [vmem:[%s319 + $0x758] sm:$0xff]
        %v614 = vld [vmem:[%s319 + $0x760] sm:$0xff]
        %v615 = vld [vmem:[%s319 + $0x768] sm:$0xff]
        %v616 = vld [vmem:[%s319 + $0x770] sm:$0xff]
        %v617 = vld [vmem:[%s319 + $0x778] sm:$0xff]
        %v618 = vld [vmem:[%s319 + $0x780] sm:$0xff]
        %v619 = vld [vmem:[%s319 + $0x788] sm:$0xff]
        %v620 = vld [vmem:[%s319 + $0x790] sm:$0xff]
        %v621 = vld [vmem:[%s319 + $0x798] sm:$0xff]
        %v622 = vld [vmem:[%s319 + $0x7a0] sm:$0xff]
        %v623 = vld [vmem:[%s319 + $0x7a8] sm:$0xff]
        %v624 = vld [vmem:[%s319 + $0x7b0] sm:$0xff]
        %v625 = vld [vmem:[%s319 + $0x7b8] sm:$0xff]
        %v626 = vld [vmem:[%s319 + $0x7c0] sm:$0xff]
        %v627 = vld [vmem:[%s319 + $0x7c8] sm:$0xff]
        %v628 = vld [vmem:[%s319 + $0x7d0] sm:$0xff]
        %v629 = vld [vmem:[%s319 + $0x7d8] sm:$0xff]
        %v630 = vld [vmem:[%s319 + $0x7e0] sm:$0xff]
        %v631 = vld [vmem:[%s319 + $0x7e8] sm:$0xff]
        %v632 = vld [vmem:[%s319 + $0x7f0] sm:$0xff]
        %v633 = vld [vmem:[%s319 + $0x7f8] sm:$0xff]
        %v634 = vpack.c.bf16 %v386, %v378
        %v635 = vpack.c.bf16 %v387, %v379
        %v636 = vpack.c.bf16 %v388, %v380
        %v637 = vpack.c.bf16 %v389, %v381
        %v638 = vpack.c.bf16 %v390, %v382
        %v639 = vpack.c.bf16 %v391, %v383
        %v640 = vpack.c.bf16 %v392, %v384
        %v641 = vpack.c.bf16 %v393, %v385
        %v642 = vpack.c.bf16 %v402, %v394
        %v643 = vpack.c.bf16 %v403, %v395
        %v644 = vpack.c.bf16 %v404, %v396
        %v645 = vpack.c.bf16 %v405, %v397
        %v646 = vpack.c.bf16 %v406, %v398
        %v647 = vpack.c.bf16 %v407, %v399
        %v648 = vpack.c.bf16 %v408, %v400
        %v649 = vpack.c.bf16 %v409, %v401
        %v650 = vpack.c.bf16 %v418, %v410
        %v651 = vpack.c.bf16 %v419, %v411
        %v652 = vpack.c.bf16 %v420, %v412
        %v653 = vpack.c.bf16 %v421, %v413
        %v654 = vpack.c.bf16 %v422, %v414
        %v655 = vpack.c.bf16 %v423, %v415
        %v656 = vpack.c.bf16 %v424, %v416
        %v657 = vpack.c.bf16 %v425, %v417
        %v658 = vpack.c.bf16 %v434, %v426
        %v659 = vpack.c.bf16 %v435, %v427
        %v660 = vpack.c.bf16 %v436, %v428
        %v661 = vpack.c.bf16 %v437, %v429
        %v662 = vpack.c.bf16 %v438, %v430
        %v663 = vpack.c.bf16 %v439, %v431
        %v664 = vpack.c.bf16 %v440, %v432
        %v665 = vpack.c.bf16 %v441, %v433
        %v666 = vpack.c.bf16 %v450, %v442
        %v667 = vpack.c.bf16 %v451, %v443
        %v668 = vpack.c.bf16 %v452, %v444
        %v669 = vpack.c.bf16 %v453, %v445
        %v670 = vpack.c.bf16 %v454, %v446
        %v671 = vpack.c.bf16 %v455, %v447
        %v672 = vpack.c.bf16 %v456, %v448
        %v673 = vpack.c.bf16 %v457, %v449
        %v674 = vpack.c.bf16 %v466, %v458
        %v675 = vpack.c.bf16 %v467, %v459
        %v676 = vpack.c.bf16 %v468, %v460
        %v677 = vpack.c.bf16 %v469, %v461
        %v678 = vpack.c.bf16 %v470, %v462
        %v679 = vpack.c.bf16 %v471, %v463
        %v680 = vpack.c.bf16 %v472, %v464
        %v681 = vpack.c.bf16 %v473, %v465
        %v682 = vpack.c.bf16 %v482, %v474
        %v683 = vpack.c.bf16 %v483, %v475
        %v684 = vpack.c.bf16 %v484, %v476
        %v685 = vpack.c.bf16 %v485, %v477
        %v686 = vpack.c.bf16 %v486, %v478
        %v687 = vpack.c.bf16 %v487, %v479
        %v688 = vpack.c.bf16 %v488, %v480
        %v689 = vpack.c.bf16 %v489, %v481
        %v690 = vpack.c.bf16 %v498, %v490
        %v691 = vpack.c.bf16 %v499, %v491
        %v692 = vpack.c.bf16 %v500, %v492
        %v693 = vpack.c.bf16 %v501, %v493
        %v694 = vpack.c.bf16 %v502, %v494
        %v695 = vpack.c.bf16 %v503, %v495
        %v696 = vpack.c.bf16 %v504, %v496
        %v697 = vpack.c.bf16 %v505, %v497
        %v698 = vpack.c.bf16 %v514, %v506
        %v699 = vpack.c.bf16 %v515, %v507
        %v700 = vpack.c.bf16 %v516, %v508
        %v701 = vpack.c.bf16 %v517, %v509
        %v702 = vpack.c.bf16 %v518, %v510
        %v703 = vpack.c.bf16 %v519, %v511
        %v704 = vpack.c.bf16 %v520, %v512
        %v705 = vpack.c.bf16 %v521, %v513
        %v706 = vpack.c.bf16 %v530, %v522
        %v707 = vpack.c.bf16 %v531, %v523
        %v708 = vpack.c.bf16 %v532, %v524
        %v709 = vpack.c.bf16 %v533, %v525
        %v710 = vpack.c.bf16 %v534, %v526
        %v711 = vpack.c.bf16 %v535, %v527
        %v712 = vpack.c.bf16 %v536, %v528
        %v713 = vpack.c.bf16 %v537, %v529
        %v714 = vpack.c.bf16 %v546, %v538
        %v715 = vpack.c.bf16 %v547, %v539
        %v716 = vpack.c.bf16 %v548, %v540
        %v717 = vpack.c.bf16 %v549, %v541
        %v718 = vpack.c.bf16 %v550, %v542
        %v719 = vpack.c.bf16 %v551, %v543
        %v720 = vpack.c.bf16 %v552, %v544
        %v721 = vpack.c.bf16 %v553, %v545
        %v722 = vpack.c.bf16 %v562, %v554
        %v723 = vpack.c.bf16 %v563, %v555
        %v724 = vpack.c.bf16 %v564, %v556
        %v725 = vpack.c.bf16 %v565, %v557
        %v726 = vpack.c.bf16 %v566, %v558
        %v727 = vpack.c.bf16 %v567, %v559
        %v728 = vpack.c.bf16 %v568, %v560
        %v729 = vpack.c.bf16 %v569, %v561
        %v730 = vpack.c.bf16 %v578, %v570
        %v731 = vpack.c.bf16 %v579, %v571
        %v732 = vpack.c.bf16 %v580, %v572
        %v733 = vpack.c.bf16 %v581, %v573
        %v734 = vpack.c.bf16 %v582, %v574
        %v735 = vpack.c.bf16 %v583, %v575
        %v736 = vpack.c.bf16 %v584, %v576
        %v737 = vpack.c.bf16 %v585, %v577
        %v738 = vpack.c.bf16 %v594, %v586
        %v739 = vpack.c.bf16 %v595, %v587
        %v740 = vpack.c.bf16 %v596, %v588
        %v741 = vpack.c.bf16 %v597, %v589
        %v742 = vpack.c.bf16 %v598, %v590
        %v743 = vpack.c.bf16 %v599, %v591
        %v744 = vpack.c.bf16 %v600, %v592
        %v745 = vpack.c.bf16 %v601, %v593
        %v746 = vpack.c.bf16 %v610, %v602
        %v747 = vpack.c.bf16 %v611, %v603
        %v748 = vpack.c.bf16 %v612, %v604
        %v749 = vpack.c.bf16 %v613, %v605
        %v750 = vpack.c.bf16 %v614, %v606
        %v751 = vpack.c.bf16 %v615, %v607
        %v752 = vpack.c.bf16 %v616, %v608
        %v753 = vpack.c.bf16 %v617, %v609
        %v754 = vpack.c.bf16 %v626, %v618
        %v755 = vpack.c.bf16 %v627, %v619
        %v756 = vpack.c.bf16 %v628, %v620
        %v757 = vpack.c.bf16 %v629, %v621
        %v758 = vpack.c.bf16 %v630, %v622
        %v759 = vpack.c.bf16 %v631, %v623
        %v760 = vpack.c.bf16 %v632, %v624
        %v761 = vpack.c.bf16 %v633, %v625
        %v762 = vld [vmem:[#allocation6] sm:$0xff]
        %v763 = vld [vmem:[#allocation6 + $0x8] sm:$0xff]
        %v764 = vld [vmem:[#allocation6 + $0x10] sm:$0xff]
        %v765 = vld [vmem:[#allocation6 + $0x18] sm:$0xff]
        %v766 = vld [vmem:[#allocation6 + $0x20] sm:$0xff]
        %v767 = vld [vmem:[#allocation6 + $0x28] sm:$0xff]
        %v768 = vld [vmem:[#allocation6 + $0x30] sm:$0xff]
        %v769 = vld [vmem:[#allocation6 + $0x38] sm:$0xff]
        %v770 = vld [vmem:[#allocation6 + $0x40] sm:$0xff]
        %v771 = vld [vmem:[#allocation6 + $0x48] sm:$0xff]
        %v772 = vld [vmem:[#allocation6 + $0x50] sm:$0xff]
        %v773 = vld [vmem:[#allocation6 + $0x58] sm:$0xff]
        %v774 = vld [vmem:[#allocation6 + $0x60] sm:$0xff]
        %v775 = vld [vmem:[#allocation6 + $0x68] sm:$0xff]
        %v776 = vld [vmem:[#allocation6 + $0x70] sm:$0xff]
        %v777 = vld [vmem:[#allocation6 + $0x78] sm:$0xff]
        %v778 = vld [vmem:[#allocation6 + $0x80] sm:$0xff]
        %v779 = vld [vmem:[#allocation6 + $0x88] sm:$0xff]
        %v780 = vld [vmem:[#allocation6 + $0x90] sm:$0xff]
        %v781 = vld [vmem:[#allocation6 + $0x98] sm:$0xff]
        %v782 = vld [vmem:[#allocation6 + $0xa0] sm:$0xff]
        %v783 = vld [vmem:[#allocation6 + $0xa8] sm:$0xff]
        %v784 = vld [vmem:[#allocation6 + $0xb0] sm:$0xff]
        %v785 = vld [vmem:[#allocation6 + $0xb8] sm:$0xff]
        %v786 = vld [vmem:[#allocation6 + $0xc0] sm:$0xff]
        %v787 = vld [vmem:[#allocation6 + $0xc8] sm:$0xff]
        %v788 = vld [vmem:[#allocation6 + $0xd0] sm:$0xff]
        %v789 = vld [vmem:[#allocation6 + $0xd8] sm:$0xff]
        %v790 = vld [vmem:[#allocation6 + $0xe0] sm:$0xff]
        %v791 = vld [vmem:[#allocation6 + $0xe8] sm:$0xff]
        %v792 = vld [vmem:[#allocation6 + $0xf0] sm:$0xff]
        %v793 = vld [vmem:[#allocation6 + $0xf8] sm:$0xff]
        %v794 = vld [vmem:[#allocation6 + $0x100] sm:$0xff]
        %v795 = vld [vmem:[#allocation6 + $0x108] sm:$0xff]
        %v796 = vld [vmem:[#allocation6 + $0x110] sm:$0xff]
        %v797 = vld [vmem:[#allocation6 + $0x118] sm:$0xff]
        %v798 = vld [vmem:[#allocation6 + $0x120] sm:$0xff]
        %v799 = vld [vmem:[#allocation6 + $0x128] sm:$0xff]
        %v800 = vld [vmem:[#allocation6 + $0x130] sm:$0xff]
        %v801 = vld [vmem:[#allocation6 + $0x138] sm:$0xff]
        %v802 = vld [vmem:[#allocation6 + $0x140] sm:$0xff]
        %v803 = vld [vmem:[#allocation6 + $0x148] sm:$0xff]
        %v804 = vld [vmem:[#allocation6 + $0x150] sm:$0xff]
        %v805 = vld [vmem:[#allocation6 + $0x158] sm:$0xff]
        %v806 = vld [vmem:[#allocation6 + $0x160] sm:$0xff]
        %v807 = vld [vmem:[#allocation6 + $0x168] sm:$0xff]
        %v808 = vld [vmem:[#allocation6 + $0x170] sm:$0xff]
        %v809 = vld [vmem:[#allocation6 + $0x178] sm:$0xff]
        %v810 = vld [vmem:[#allocation6 + $0x180] sm:$0xff]
        %v811 = vld [vmem:[#allocation6 + $0x188] sm:$0xff]
        %v812 = vld [vmem:[#allocation6 + $0x190] sm:$0xff]
        %v813 = vld [vmem:[#allocation6 + $0x198] sm:$0xff]
        %v814 = vld [vmem:[#allocation6 + $0x1a0] sm:$0xff]
        %v815 = vld [vmem:[#allocation6 + $0x1a8] sm:$0xff]
        %v816 = vld [vmem:[#allocation6 + $0x1b0] sm:$0xff]
        %v817 = vld [vmem:[#allocation6 + $0x1b8] sm:$0xff]
        %v818 = vld [vmem:[#allocation6 + $0x1c0] sm:$0xff]
        %v819 = vld [vmem:[#allocation6 + $0x1c8] sm:$0xff]
        %v820 = vld [vmem:[#allocation6 + $0x1d0] sm:$0xff]
        %v821 = vld [vmem:[#allocation6 + $0x1d8] sm:$0xff]
        %v822 = vld [vmem:[#allocation6 + $0x1e0] sm:$0xff]
        %v823 = vld [vmem:[#allocation6 + $0x1e8] sm:$0xff]
        %v824 = vld [vmem:[#allocation6 + $0x1f0] sm:$0xff]
        %v825 = vld [vmem:[#allocation6 + $0x1f8] sm:$0xff]
        %v826 = vld [vmem:[#allocation6 + $0x200] sm:$0xff]
        %v827 = vld [vmem:[#allocation6 + $0x208] sm:$0xff]
        %v828 = vld [vmem:[#allocation6 + $0x210] sm:$0xff]
        %v829 = vld [vmem:[#allocation6 + $0x218] sm:$0xff]
        %v830 = vld [vmem:[#allocation6 + $0x220] sm:$0xff]
        %v831 = vld [vmem:[#allocation6 + $0x228] sm:$0xff]
        %v832 = vld [vmem:[#allocation6 + $0x230] sm:$0xff]
        %v833 = vld [vmem:[#allocation6 + $0x238] sm:$0xff]
        %v834 = vld [vmem:[#allocation6 + $0x240] sm:$0xff]
        %v835 = vld [vmem:[#allocation6 + $0x248] sm:$0xff]
        %v836 = vld [vmem:[#allocation6 + $0x250] sm:$0xff]
        %v837 = vld [vmem:[#allocation6 + $0x258] sm:$0xff]
        %v838 = vld [vmem:[#allocation6 + $0x260] sm:$0xff]
        %v839 = vld [vmem:[#allocation6 + $0x268] sm:$0xff]
        %v840 = vld [vmem:[#allocation6 + $0x270] sm:$0xff]
        %v841 = vld [vmem:[#allocation6 + $0x278] sm:$0xff]
        %v842 = vld [vmem:[#allocation6 + $0x280] sm:$0xff]
        %v843 = vld [vmem:[#allocation6 + $0x288] sm:$0xff]
        %v844 = vld [vmem:[#allocation6 + $0x290] sm:$0xff]
        %v845 = vld [vmem:[#allocation6 + $0x298] sm:$0xff]
        %v846 = vld [vmem:[#allocation6 + $0x2a0] sm:$0xff]
        %v847 = vld [vmem:[#allocation6 + $0x2a8] sm:$0xff]
        %v848 = vld [vmem:[#allocation6 + $0x2b0] sm:$0xff]
        %v849 = vld [vmem:[#allocation6 + $0x2b8] sm:$0xff]
        %v850 = vld [vmem:[#allocation6 + $0x2c0] sm:$0xff]
        %v851 = vld [vmem:[#allocation6 + $0x2c8] sm:$0xff]
        %v852 = vld [vmem:[#allocation6 + $0x2d0] sm:$0xff]
        %v853 = vld [vmem:[#allocation6 + $0x2d8] sm:$0xff]
        %v854 = vld [vmem:[#allocation6 + $0x2e0] sm:$0xff]
        %v855 = vld [vmem:[#allocation6 + $0x2e8] sm:$0xff]
        %v856 = vld [vmem:[#allocation6 + $0x2f0] sm:$0xff]
        %v857 = vld [vmem:[#allocation6 + $0x2f8] sm:$0xff]
        %v858 = vld [vmem:[#allocation6 + $0x300] sm:$0xff]
        %v859 = vld [vmem:[#allocation6 + $0x308] sm:$0xff]
        %v860 = vld [vmem:[#allocation6 + $0x310] sm:$0xff]
        %v861 = vld [vmem:[#allocation6 + $0x318] sm:$0xff]
        %v862 = vld [vmem:[#allocation6 + $0x320] sm:$0xff]
        %v863 = vld [vmem:[#allocation6 + $0x328] sm:$0xff]
        %v864 = vld [vmem:[#allocation6 + $0x330] sm:$0xff]
        %v865 = vld [vmem:[#allocation6 + $0x338] sm:$0xff]
        %v866 = vld [vmem:[#allocation6 + $0x340] sm:$0xff]
        %v867 = vld [vmem:[#allocation6 + $0x348] sm:$0xff]
        %v868 = vld [vmem:[#allocation6 + $0x350] sm:$0xff]
        %v869 = vld [vmem:[#allocation6 + $0x358] sm:$0xff]
        %v870 = vld [vmem:[#allocation6 + $0x360] sm:$0xff]
        %v871 = vld [vmem:[#allocation6 + $0x368] sm:$0xff]
        %v872 = vld [vmem:[#allocation6 + $0x370] sm:$0xff]
        %v873 = vld [vmem:[#allocation6 + $0x378] sm:$0xff]
        %v874 = vld [vmem:[#allocation6 + $0x380] sm:$0xff]
        %v875 = vld [vmem:[#allocation6 + $0x388] sm:$0xff]
        %v876 = vld [vmem:[#allocation6 + $0x390] sm:$0xff]
        %v877 = vld [vmem:[#allocation6 + $0x398] sm:$0xff]
        %v878 = vld [vmem:[#allocation6 + $0x3a0] sm:$0xff]
        %v879 = vld [vmem:[#allocation6 + $0x3a8] sm:$0xff]
        %v880 = vld [vmem:[#allocation6 + $0x3b0] sm:$0xff]
        %v881 = vld [vmem:[#allocation6 + $0x3b8] sm:$0xff]
        %v882 = vld [vmem:[#allocation6 + $0x3c0] sm:$0xff]
        %v883 = vld [vmem:[#allocation6 + $0x3c8] sm:$0xff]
        %v884 = vld [vmem:[#allocation6 + $0x3d0] sm:$0xff]
        %v885 = vld [vmem:[#allocation6 + $0x3d8] sm:$0xff]
        %v886 = vld [vmem:[#allocation6 + $0x3e0] sm:$0xff]
        %v887 = vld [vmem:[#allocation6 + $0x3e8] sm:$0xff]
        %v888 = vld [vmem:[#allocation6 + $0x3f0] sm:$0xff]
        %v889 = vld [vmem:[#allocation6 + $0x3f8] sm:$0xff]
        %v890 = vld [vmem:[#allocation8] sm:$0x3]
        %v892 = vperm.slane %v890, 0
        %v893 = vperm.slane %v890, 1
        %v1024 = vunpack.c.l.b16 %v762
        %v1025 = vunpack.c.h.b16 %v762
        %v1026 = vunpack.c.l.b16 %v763
        %v1027 = vunpack.c.h.b16 %v763
        %v1028 = vunpack.c.l.b16 %v764
        %v1029 = vunpack.c.h.b16 %v764
        %v1030 = vunpack.c.l.b16 %v765
        %v1031 = vunpack.c.h.b16 %v765
        %v1032 = vunpack.c.l.b16 %v766
        %v1033 = vunpack.c.h.b16 %v766
        %v1034 = vunpack.c.l.b16 %v767
        %v1035 = vunpack.c.h.b16 %v767
        %v1036 = vunpack.c.l.b16 %v768
        %v1037 = vunpack.c.h.b16 %v768
        %v1038 = vunpack.c.l.b16 %v769
        %v1039 = vunpack.c.h.b16 %v769
        %v1040 = vunpack.c.l.b16 %v770
        %v1041 = vunpack.c.h.b16 %v770
        %v1042 = vunpack.c.l.b16 %v771
        %v1043 = vunpack.c.h.b16 %v771
        %v1044 = vunpack.c.l.b16 %v772
        %v1045 = vunpack.c.h.b16 %v772
        %v1046 = vunpack.c.l.b16 %v773
        %v1047 = vunpack.c.h.b16 %v773
        %v1048 = vunpack.c.l.b16 %v774
        %v1049 = vunpack.c.h.b16 %v774
        %v1050 = vunpack.c.l.b16 %v775
        %v1051 = vunpack.c.h.b16 %v775
        %v1052 = vunpack.c.l.b16 %v776
        %v1053 = vunpack.c.h.b16 %v776
        %v1054 = vunpack.c.l.b16 %v777
        %v1055 = vunpack.c.h.b16 %v777
        %v1056 = vunpack.c.l.b16 %v778
        %v1057 = vunpack.c.h.b16 %v778
        %v1058 = vunpack.c.l.b16 %v779
        %v1059 = vunpack.c.h.b16 %v779
        %v1060 = vunpack.c.l.b16 %v780
        %v1061 = vunpack.c.h.b16 %v780
        %v1062 = vunpack.c.l.b16 %v781
        %v1063 = vunpack.c.h.b16 %v781
        %v1064 = vunpack.c.l.b16 %v782
        %v1065 = vunpack.c.h.b16 %v782
        %v1066 = vunpack.c.l.b16 %v783
        %v1067 = vunpack.c.h.b16 %v783
        %v1068 = vunpack.c.l.b16 %v784
        %v1069 = vunpack.c.h.b16 %v784
        %v1070 = vunpack.c.l.b16 %v785
        %v1071 = vunpack.c.h.b16 %v785
        %v1072 = vunpack.c.l.b16 %v786
        %v1073 = vunpack.c.h.b16 %v786
        %v1074 = vunpack.c.l.b16 %v787
        %v1075 = vunpack.c.h.b16 %v787
        %v1076 = vunpack.c.l.b16 %v788
        %v1077 = vunpack.c.h.b16 %v788
        %v1078 = vunpack.c.l.b16 %v789
        %v1079 = vunpack.c.h.b16 %v789
        %v1080 = vunpack.c.l.b16 %v790
        %v1081 = vunpack.c.h.b16 %v790
        %v1082 = vunpack.c.l.b16 %v791
        %v1083 = vunpack.c.h.b16 %v791
        %v1084 = vunpack.c.l.b16 %v792
        %v1085 = vunpack.c.h.b16 %v792
        %v1086 = vunpack.c.l.b16 %v793
        %v1087 = vunpack.c.h.b16 %v793
        %v1088 = vunpack.c.l.b16 %v794
        %v1089 = vunpack.c.h.b16 %v794
        %v1090 = vunpack.c.l.b16 %v795
        %v1091 = vunpack.c.h.b16 %v795
        %v1092 = vunpack.c.l.b16 %v796
        %v1093 = vunpack.c.h.b16 %v796
        %v1094 = vunpack.c.l.b16 %v797
        %v1095 = vunpack.c.h.b16 %v797
        %v1096 = vunpack.c.l.b16 %v798
        %v1097 = vunpack.c.h.b16 %v798
        %v1098 = vunpack.c.l.b16 %v799
        %v1099 = vunpack.c.h.b16 %v799
        %v1100 = vunpack.c.l.b16 %v800
        %v1101 = vunpack.c.h.b16 %v800
        %v1102 = vunpack.c.l.b16 %v801
        %v1103 = vunpack.c.h.b16 %v801
        %v1104 = vunpack.c.l.b16 %v802
        %v1105 = vunpack.c.h.b16 %v802
        %v1106 = vunpack.c.l.b16 %v803
        %v1107 = vunpack.c.h.b16 %v803
        %v1108 = vunpack.c.l.b16 %v804
        %v1109 = vunpack.c.h.b16 %v804
        %v1110 = vunpack.c.l.b16 %v805
        %v1111 = vunpack.c.h.b16 %v805
        %v1112 = vunpack.c.l.b16 %v806
        %v1113 = vunpack.c.h.b16 %v806
        %v1114 = vunpack.c.l.b16 %v807
        %v1115 = vunpack.c.h.b16 %v807
        %v1116 = vunpack.c.l.b16 %v808
        %v1117 = vunpack.c.h.b16 %v808
        %v1118 = vunpack.c.l.b16 %v809
        %v1119 = vunpack.c.h.b16 %v809
        %v1120 = vunpack.c.l.b16 %v810
        %v1121 = vunpack.c.h.b16 %v810
        %v1122 = vunpack.c.l.b16 %v811
        %v1123 = vunpack.c.h.b16 %v811
        %v1124 = vunpack.c.l.b16 %v812
        %v1125 = vunpack.c.h.b16 %v812
        %v1126 = vunpack.c.l.b16 %v813
        %v1127 = vunpack.c.h.b16 %v813
        %v1128 = vunpack.c.l.b16 %v814
        %v1129 = vunpack.c.h.b16 %v814
        %v1130 = vunpack.c.l.b16 %v815
        %v1131 = vunpack.c.h.b16 %v815
        %v1132 = vunpack.c.l.b16 %v816
        %v1133 = vunpack.c.h.b16 %v816
        %v1134 = vunpack.c.l.b16 %v817
        %v1135 = vunpack.c.h.b16 %v817
        %v1136 = vunpack.c.l.b16 %v818
        %v1137 = vunpack.c.h.b16 %v818
        %v1138 = vunpack.c.l.b16 %v819
        %v1139 = vunpack.c.h.b16 %v819
        %v1140 = vunpack.c.l.b16 %v820
        %v1141 = vunpack.c.h.b16 %v820
        %v1142 = vunpack.c.l.b16 %v821
        %v1143 = vunpack.c.h.b16 %v821
        %v1144 = vunpack.c.l.b16 %v822
        %v1145 = vunpack.c.h.b16 %v822
        %v1146 = vunpack.c.l.b16 %v823
        %v1147 = vunpack.c.h.b16 %v823
        %v1148 = vunpack.c.l.b16 %v824
        %v1149 = vunpack.c.h.b16 %v824
        %v1150 = vunpack.c.l.b16 %v825
        %v1151 = vunpack.c.h.b16 %v825
        %v1152 = vunpack.c.l.b16 %v826
        %v1153 = vunpack.c.h.b16 %v826
        %v1154 = vunpack.c.l.b16 %v827
        %v1155 = vunpack.c.h.b16 %v827
        %v1156 = vunpack.c.l.b16 %v828
        %v1157 = vunpack.c.h.b16 %v828
        %v1158 = vunpack.c.l.b16 %v829
        %v1159 = vunpack.c.h.b16 %v829
        %v1160 = vunpack.c.l.b16 %v830
        %v1161 = vunpack.c.h.b16 %v830
        %v1162 = vunpack.c.l.b16 %v831
        %v1163 = vunpack.c.h.b16 %v831
        %v1164 = vunpack.c.l.b16 %v832
        %v1165 = vunpack.c.h.b16 %v832
        %v1166 = vunpack.c.l.b16 %v833
        %v1167 = vunpack.c.h.b16 %v833
        %v1168 = vunpack.c.l.b16 %v834
        %v1169 = vunpack.c.h.b16 %v834
        %v1170 = vunpack.c.l.b16 %v835
        %v1171 = vunpack.c.h.b16 %v835
        %v1172 = vunpack.c.l.b16 %v836
        %v1173 = vunpack.c.h.b16 %v836
        %v1174 = vunpack.c.l.b16 %v837
        %v1175 = vunpack.c.h.b16 %v837
        %v1176 = vunpack.c.l.b16 %v838
        %v1177 = vunpack.c.h.b16 %v838
        %v1178 = vunpack.c.l.b16 %v839
        %v1179 = vunpack.c.h.b16 %v839
        %v1180 = vunpack.c.l.b16 %v840
        %v1181 = vunpack.c.h.b16 %v840
        %v1182 = vunpack.c.l.b16 %v841
        %v1183 = vunpack.c.h.b16 %v841
        %v1184 = vunpack.c.l.b16 %v842
        %v1185 = vunpack.c.h.b16 %v842
        %v1186 = vunpack.c.l.b16 %v843
        %v1187 = vunpack.c.h.b16 %v843
        %v1188 = vunpack.c.l.b16 %v844
        %v1189 = vunpack.c.h.b16 %v844
        %v1190 = vunpack.c.l.b16 %v845
        %v1191 = vunpack.c.h.b16 %v845
        %v1192 = vunpack.c.l.b16 %v846
        %v1193 = vunpack.c.h.b16 %v846
        %v1194 = vunpack.c.l.b16 %v847
        %v1195 = vunpack.c.h.b16 %v847
        %v1196 = vunpack.c.l.b16 %v848
        %v1197 = vunpack.c.h.b16 %v848
        %v1198 = vunpack.c.l.b16 %v849
        %v1199 = vunpack.c.h.b16 %v849
        %v1200 = vunpack.c.l.b16 %v850
        %v1201 = vunpack.c.h.b16 %v850
        %v1202 = vunpack.c.l.b16 %v851
        %v1203 = vunpack.c.h.b16 %v851
        %v1204 = vunpack.c.l.b16 %v852
        %v1205 = vunpack.c.h.b16 %v852
        %v1206 = vunpack.c.l.b16 %v853
        %v1207 = vunpack.c.h.b16 %v853
        %v1208 = vunpack.c.l.b16 %v854
        %v1209 = vunpack.c.h.b16 %v854
        %v1210 = vunpack.c.l.b16 %v855
        %v1211 = vunpack.c.h.b16 %v855
        %v1212 = vunpack.c.l.b16 %v856
        %v1213 = vunpack.c.h.b16 %v856
        %v1214 = vunpack.c.l.b16 %v857
        %v1215 = vunpack.c.h.b16 %v857
        %v1216 = vunpack.c.l.b16 %v858
        %v1217 = vunpack.c.h.b16 %v858
        %v1218 = vunpack.c.l.b16 %v859
        %v1219 = vunpack.c.h.b16 %v859
        %v1220 = vunpack.c.l.b16 %v860
        %v1221 = vunpack.c.h.b16 %v860
        %v1222 = vunpack.c.l.b16 %v861
        %v1223 = vunpack.c.h.b16 %v861
        %v1224 = vunpack.c.l.b16 %v862
        %v1225 = vunpack.c.h.b16 %v862
        %v1226 = vunpack.c.l.b16 %v863
        %v1227 = vunpack.c.h.b16 %v863
        %v1228 = vunpack.c.l.b16 %v864
        %v1229 = vunpack.c.h.b16 %v864
        %v1230 = vunpack.c.l.b16 %v865
        %v1231 = vunpack.c.h.b16 %v865
        %v1232 = vunpack.c.l.b16 %v866
        %v1233 = vunpack.c.h.b16 %v866
        %v1234 = vunpack.c.l.b16 %v867
        %v1235 = vunpack.c.h.b16 %v867
        %v1236 = vunpack.c.l.b16 %v868
        %v1237 = vunpack.c.h.b16 %v868
        %v1238 = vunpack.c.l.b16 %v869
        %v1239 = vunpack.c.h.b16 %v869
        %v1240 = vunpack.c.l.b16 %v870
        %v1241 = vunpack.c.h.b16 %v870
        %v1242 = vunpack.c.l.b16 %v871
        %v1243 = vunpack.c.h.b16 %v871
        %v1244 = vunpack.c.l.b16 %v872
        %v1245 = vunpack.c.h.b16 %v872
        %v1246 = vunpack.c.l.b16 %v873
        %v1247 = vunpack.c.h.b16 %v873
        %v1248 = vunpack.c.l.b16 %v874
        %v1249 = vunpack.c.h.b16 %v874
        %v1250 = vunpack.c.l.b16 %v875
        %v1251 = vunpack.c.h.b16 %v875
        %v1252 = vunpack.c.l.b16 %v876
        %v1253 = vunpack.c.h.b16 %v876
        %v1254 = vunpack.c.l.b16 %v877
        %v1255 = vunpack.c.h.b16 %v877
        %v1256 = vunpack.c.l.b16 %v878
        %v1257 = vunpack.c.h.b16 %v878
        %v1258 = vunpack.c.l.b16 %v879
        %v1259 = vunpack.c.h.b16 %v879
        %v1260 = vunpack.c.l.b16 %v880
        %v1261 = vunpack.c.h.b16 %v880
        %v1262 = vunpack.c.l.b16 %v881
        %v1263 = vunpack.c.h.b16 %v881
        %v1264 = vunpack.c.l.b16 %v882
        %v1265 = vunpack.c.h.b16 %v882
        %v1266 = vunpack.c.l.b16 %v883
        %v1267 = vunpack.c.h.b16 %v883
        %v1268 = vunpack.c.l.b16 %v884
        %v1269 = vunpack.c.h.b16 %v884
        %v1270 = vunpack.c.l.b16 %v885
        %v1271 = vunpack.c.h.b16 %v885
        %v1272 = vunpack.c.l.b16 %v886
        %v1273 = vunpack.c.h.b16 %v886
        %v1274 = vunpack.c.l.b16 %v887
        %v1275 = vunpack.c.h.b16 %v887
        %v1276 = vunpack.c.l.b16 %v888
        %v1277 = vunpack.c.h.b16 %v888
        %v1278 = vunpack.c.l.b16 %v889
        %v1279 = vunpack.c.h.b16 %v889
        %v1280 = vpack.c.b16 %v1026, %v1024
        %v1281 = vpack.c.b16 %v1027, %v1025
        %v1282 = vpack.c.b16 %v1030, %v1028
        %v1283 = vpack.c.b16 %v1031, %v1029
        %v1284 = vpack.c.b16 %v1034, %v1032
        %v1285 = vpack.c.b16 %v1035, %v1033
        %v1286 = vpack.c.b16 %v1038, %v1036
        %v1287 = vpack.c.b16 %v1039, %v1037
        %v1288 = vpack.c.b16 %v1042, %v1040
        %v1289 = vpack.c.b16 %v1043, %v1041
        %v1290 = vpack.c.b16 %v1046, %v1044
        %v1291 = vpack.c.b16 %v1047, %v1045
        %v1292 = vpack.c.b16 %v1050, %v1048
        %v1293 = vpack.c.b16 %v1051, %v1049
        %v1294 = vpack.c.b16 %v1054, %v1052
        %v1295 = vpack.c.b16 %v1055, %v1053
        %v1296 = vpack.c.b16 %v1058, %v1056
        %v1297 = vpack.c.b16 %v1059, %v1057
        %v1298 = vpack.c.b16 %v1062, %v1060
        %v1299 = vpack.c.b16 %v1063, %v1061
        %v1300 = vpack.c.b16 %v1066, %v1064
        %v1301 = vpack.c.b16 %v1067, %v1065
        %v1302 = vpack.c.b16 %v1070, %v1068
        %v1303 = vpack.c.b16 %v1071, %v1069
        %v1304 = vpack.c.b16 %v1074, %v1072
        %v1305 = vpack.c.b16 %v1075, %v1073
        %v1306 = vpack.c.b16 %v1078, %v1076
        %v1307 = vpack.c.b16 %v1079, %v1077
        %v1308 = vpack.c.b16 %v1082, %v1080
        %v1309 = vpack.c.b16 %v1083, %v1081
        %v1310 = vpack.c.b16 %v1086, %v1084
        %v1311 = vpack.c.b16 %v1087, %v1085
        %v1312 = vpack.c.b16 %v1090, %v1088
        %v1313 = vpack.c.b16 %v1091, %v1089
        %v1314 = vpack.c.b16 %v1094, %v1092
        %v1315 = vpack.c.b16 %v1095, %v1093
        %v1316 = vpack.c.b16 %v1098, %v1096
        %v1317 = vpack.c.b16 %v1099, %v1097
        %v1318 = vpack.c.b16 %v1102, %v1100
        %v1319 = vpack.c.b16 %v1103, %v1101
        %v1320 = vpack.c.b16 %v1106, %v1104
        %v1321 = vpack.c.b16 %v1107, %v1105
        %v1322 = vpack.c.b16 %v1110, %v1108
        %v1323 = vpack.c.b16 %v1111, %v1109
        %v1324 = vpack.c.b16 %v1114, %v1112
        %v1325 = vpack.c.b16 %v1115, %v1113
        %v1326 = vpack.c.b16 %v1118, %v1116
        %v1327 = vpack.c.b16 %v1119, %v1117
        %v1328 = vpack.c.b16 %v1122, %v1120
        %v1329 = vpack.c.b16 %v1123, %v1121
        %v1330 = vpack.c.b16 %v1126, %v1124
        %v1331 = vpack.c.b16 %v1127, %v1125
        %v1332 = vpack.c.b16 %v1130, %v1128
        %v1333 = vpack.c.b16 %v1131, %v1129
        %v1334 = vpack.c.b16 %v1134, %v1132
        %v1335 = vpack.c.b16 %v1135, %v1133
        %v1336 = vpack.c.b16 %v1138, %v1136
        %v1337 = vpack.c.b16 %v1139, %v1137
        %v1338 = vpack.c.b16 %v1142, %v1140
        %v1339 = vpack.c.b16 %v1143, %v1141
        %v1340 = vpack.c.b16 %v1146, %v1144
        %v1341 = vpack.c.b16 %v1147, %v1145
        %v1342 = vpack.c.b16 %v1150, %v1148
        %v1343 = vpack.c.b16 %v1151, %v1149
        %v1344 = vpack.c.b16 %v1154, %v1152
        %v1345 = vpack.c.b16 %v1155, %v1153
        %v1346 = vpack.c.b16 %v1158, %v1156
        %v1347 = vpack.c.b16 %v1159, %v1157
        %v1348 = vpack.c.b16 %v1162, %v1160
        %v1349 = vpack.c.b16 %v1163, %v1161
        %v1350 = vpack.c.b16 %v1166, %v1164
        %v1351 = vpack.c.b16 %v1167, %v1165
        %v1352 = vpack.c.b16 %v1170, %v1168
        %v1353 = vpack.c.b16 %v1171, %v1169
        %v1354 = vpack.c.b16 %v1174, %v1172
        %v1355 = vpack.c.b16 %v1175, %v1173
        %v1356 = vpack.c.b16 %v1178, %v1176
        %v1357 = vpack.c.b16 %v1179, %v1177
        %v1358 = vpack.c.b16 %v1182, %v1180
        %v1359 = vpack.c.b16 %v1183, %v1181
        %v1360 = vpack.c.b16 %v1186, %v1184
        %v1361 = vpack.c.b16 %v1187, %v1185
        %v1362 = vpack.c.b16 %v1190, %v1188
        %v1363 = vpack.c.b16 %v1191, %v1189
        %v1364 = vpack.c.b16 %v1194, %v1192
        %v1365 = vpack.c.b16 %v1195, %v1193
        %v1366 = vpack.c.b16 %v1198, %v1196
        %v1367 = vpack.c.b16 %v1199, %v1197
        %v1368 = vpack.c.b16 %v1202, %v1200
        %v1369 = vpack.c.b16 %v1203, %v1201
        %v1370 = vpack.c.b16 %v1206, %v1204
        %v1371 = vpack.c.b16 %v1207, %v1205
        %v1372 = vpack.c.b16 %v1210, %v1208
        %v1373 = vpack.c.b16 %v1211, %v1209
        %v1374 = vpack.c.b16 %v1214, %v1212
        %v1375 = vpack.c.b16 %v1215, %v1213
        %v1376 = vpack.c.b16 %v1218, %v1216
        %v1377 = vpack.c.b16 %v1219, %v1217
        %v1378 = vpack.c.b16 %v1222, %v1220
        %v1379 = vpack.c.b16 %v1223, %v1221
        %v1380 = vpack.c.b16 %v1226, %v1224
        %v1381 = vpack.c.b16 %v1227, %v1225
        %v1382 = vpack.c.b16 %v1230, %v1228
        %v1383 = vpack.c.b16 %v1231, %v1229
        %v1384 = vpack.c.b16 %v1234, %v1232
        %v1385 = vpack.c.b16 %v1235, %v1233
        %v1386 = vpack.c.b16 %v1238, %v1236
        %v1387 = vpack.c.b16 %v1239, %v1237
        %v1388 = vpack.c.b16 %v1242, %v1240
        %v1389 = vpack.c.b16 %v1243, %v1241
        %v1390 = vpack.c.b16 %v1246, %v1244
        %v1391 = vpack.c.b16 %v1247, %v1245
        %v1392 = vpack.c.b16 %v1250, %v1248
        %v1393 = vpack.c.b16 %v1251, %v1249
        %v1394 = vpack.c.b16 %v1254, %v1252
        %v1395 = vpack.c.b16 %v1255, %v1253
        %v1396 = vpack.c.b16 %v1258, %v1256
        %v1397 = vpack.c.b16 %v1259, %v1257
        %v1398 = vpack.c.b16 %v1262, %v1260
        %v1399 = vpack.c.b16 %v1263, %v1261
        %v1400 = vpack.c.b16 %v1266, %v1264
        %v1401 = vpack.c.b16 %v1267, %v1265
        %v1402 = vpack.c.b16 %v1270, %v1268
        %v1403 = vpack.c.b16 %v1271, %v1269
        %v1404 = vpack.c.b16 %v1274, %v1272
        %v1405 = vpack.c.b16 %v1275, %v1273
        %v1406 = vpack.c.b16 %v1278, %v1276
        %v1407 = vpack.c.b16 %v1279, %v1277
        %1536 = vmatpush.bf16.msra.mxu0 %v1294
        %1537 = vmatpush.bf16.msra.mxu0 %v1292
        %1538 = vmatpush.bf16.msra.mxu0 %v1290
        %1539 = vmatpush.bf16.msra.mxu0 %v1288
        %1540 = vmatpush.bf16.msra.mxu0 %v1286
        %1541 = vmatpush.bf16.msra.mxu0 %v1284
        %1542 = vmatpush.bf16.msra.mxu0 %v1282
        %1543 = vmatpush.bf16.msra.mxu0 %v1280
        %1544 = vmatmul.bf16.gmra.mxu0 %v634
        %v1545 = vpop.f32.mrf.mxu0
        %v1546 = vadd.f32 %v892, %v1545
        %v1547 = vpop.f32.mrf.mxu0
        %v1548 = vadd.f32 %v892, %v1547
        %1549 = vmatmul.bf16.gmra.mxu0 %v642
        %v1550 = vpop.f32.mrf.mxu0
        %v1551 = vadd.f32 %v892, %v1550
        %v1552 = vpop.f32.mrf.mxu0
        %v1553 = vadd.f32 %v892, %v1552
        %1554 = vmatmul.bf16.gmra.mxu0 %v650
        %v1555 = vpop.f32.mrf.mxu0
        %v1556 = vadd.f32 %v892, %v1555
        %v1557 = vpop.f32.mrf.mxu0
        %v1558 = vadd.f32 %v892, %v1557
        %1559 = vmatmul.bf16.gmra.mxu0 %v658
        %v1560 = vpop.f32.mrf.mxu0
        %v1561 = vadd.f32 %v892, %v1560
        %v1562 = vpop.f32.mrf.mxu0
        %v1563 = vadd.f32 %v892, %v1562
        %1564 = vmatmul.bf16.gmra.mxu0 %v666
        %v1565 = vpop.f32.mrf.mxu0
        %v1566 = vadd.f32 %v892, %v1565
        %v1567 = vpop.f32.mrf.mxu0
        %v1568 = vadd.f32 %v892, %v1567
        %1569 = vmatmul.bf16.gmra.mxu0 %v674
        %v1570 = vpop.f32.mrf.mxu0
        %v1571 = vadd.f32 %v892, %v1570
        %v1572 = vpop.f32.mrf.mxu0
        %v1573 = vadd.f32 %v892, %v1572
        %1574 = vmatmul.bf16.gmra.mxu0 %v682
        %v1575 = vpop.f32.mrf.mxu0
        %v1576 = vadd.f32 %v892, %v1575
        %v1577 = vpop.f32.mrf.mxu0
        %v1578 = vadd.f32 %v892, %v1577
        %1579 = vmatmul.bf16.gmra.mxu0 %v690
        %v1580 = vpop.f32.mrf.mxu0
        %v1581 = vadd.f32 %v892, %v1580
        %v1582 = vpop.f32.mrf.mxu0
        %v1583 = vadd.f32 %v892, %v1582
        %1584 = vmatmul.bf16.gmra.mxu0 %v698
        %v1585 = vpop.f32.mrf.mxu0
        %v1586 = vadd.f32 %v892, %v1585
        %v1587 = vpop.f32.mrf.mxu0
        %v1588 = vadd.f32 %v892, %v1587
        %1589 = vmatmul.bf16.gmra.mxu0 %v706
        %v1590 = vpop.f32.mrf.mxu0
        %v1591 = vadd.f32 %v892, %v1590
        %v1592 = vpop.f32.mrf.mxu0
        %v1593 = vadd.f32 %v892, %v1592
        %1594 = vmatmul.bf16.gmra.mxu0 %v714
        %v1595 = vpop.f32.mrf.mxu0
        %v1596 = vadd.f32 %v892, %v1595
        %v1597 = vpop.f32.mrf.mxu0
        %v1598 = vadd.f32 %v892, %v1597
        %1599 = vmatmul.bf16.gmra.mxu0 %v722
        %v1600 = vpop.f32.mrf.mxu0
        %v1601 = vadd.f32 %v892, %v1600
        %v1602 = vpop.f32.mrf.mxu0
        %v1603 = vadd.f32 %v892, %v1602
        %1604 = vmatmul.bf16.gmra.mxu0 %v730
        %v1605 = vpop.f32.mrf.mxu0
        %v1606 = vadd.f32 %v892, %v1605
        %v1607 = vpop.f32.mrf.mxu0
        %v1608 = vadd.f32 %v892, %v1607
        %1609 = vmatmul.bf16.gmra.mxu0 %v738
        %v1610 = vpop.f32.mrf.mxu0
        %v1611 = vadd.f32 %v892, %v1610
        %v1612 = vpop.f32.mrf.mxu0
        %v1613 = vadd.f32 %v892, %v1612
        %1614 = vmatmul.bf16.gmra.mxu0 %v746
        %v1615 = vpop.f32.mrf.mxu0
        %v1616 = vadd.f32 %v892, %v1615
        %v1617 = vpop.f32.mrf.mxu0
        %v1618 = vadd.f32 %v892, %v1617
        %1619 = vmatmul.bf16.gmra.mxu0 %v754
        %v1620 = vpop.f32.mrf.mxu0
        %v1621 = vadd.f32 %v892, %v1620
        %v1622 = vpop.f32.mrf.mxu0
        %v1623 = vadd.f32 %v892, %v1622
        %1624 = vdwg.mxu0
        %1625 = vmatpush.bf16.msra.mxu0 %v1310
        %1626 = vmatpush.bf16.msra.mxu0 %v1308
        %1627 = vmatpush.bf16.msra.mxu0 %v1306
        %1628 = vmatpush.bf16.msra.mxu0 %v1304
        %1629 = vmatpush.bf16.msra.mxu0 %v1302
        %1630 = vmatpush.bf16.msra.mxu0 %v1300
        %1631 = vmatpush.bf16.msra.mxu0 %v1298
        %1632 = vmatpush.bf16.msra.mxu0 %v1296
        %1633 = vmatmul.bf16.gmra.mxu0 %v635
        %v1634 = vpop.f32.mrf.mxu0
        %v1635 = vadd.f32 %v1546, %v1634
        %v1636 = vpop.f32.mrf.mxu0
        %v1637 = vadd.f32 %v1548, %v1636
        %1638 = vmatmul.bf16.gmra.mxu0 %v643
        %v1639 = vpop.f32.mrf.mxu0
        %v1640 = vadd.f32 %v1551, %v1639
        %v1641 = vpop.f32.mrf.mxu0
        %v1642 = vadd.f32 %v1553, %v1641
        %1643 = vmatmul.bf16.gmra.mxu0 %v651
        %v1644 = vpop.f32.mrf.mxu0
        %v1645 = vadd.f32 %v1556, %v1644
        %v1646 = vpop.f32.mrf.mxu0
        %v1647 = vadd.f32 %v1558, %v1646
        %1648 = vmatmul.bf16.gmra.mxu0 %v659
        %v1649 = vpop.f32.mrf.mxu0
        %v1650 = vadd.f32 %v1561, %v1649
        %v1651 = vpop.f32.mrf.mxu0
        %v1652 = vadd.f32 %v1563, %v1651
        %1653 = vmatmul.bf16.gmra.mxu0 %v667
        %v1654 = vpop.f32.mrf.mxu0
        %v1655 = vadd.f32 %v1566, %v1654
        %v1656 = vpop.f32.mrf.mxu0
        %v1657 = vadd.f32 %v1568, %v1656
        %1658 = vmatmul.bf16.gmra.mxu0 %v675
        %v1659 = vpop.f32.mrf.mxu0
        %v1660 = vadd.f32 %v1571, %v1659
        %v1661 = vpop.f32.mrf.mxu0
        %v1662 = vadd.f32 %v1573, %v1661
        %1663 = vmatmul.bf16.gmra.mxu0 %v683
        %v1664 = vpop.f32.mrf.mxu0
        %v1665 = vadd.f32 %v1576, %v1664
        %v1666 = vpop.f32.mrf.mxu0
        %v1667 = vadd.f32 %v1578, %v1666
        %1668 = vmatmul.bf16.gmra.mxu0 %v691
        %v1669 = vpop.f32.mrf.mxu0
        %v1670 = vadd.f32 %v1581, %v1669
        %v1671 = vpop.f32.mrf.mxu0
        %v1672 = vadd.f32 %v1583, %v1671
        %1673 = vmatmul.bf16.gmra.mxu0 %v699
        %v1674 = vpop.f32.mrf.mxu0
        %v1675 = vadd.f32 %v1586, %v1674
        %v1676 = vpop.f32.mrf.mxu0
        %v1677 = vadd.f32 %v1588, %v1676
        %1678 = vmatmul.bf16.gmra.mxu0 %v707
        %v1679 = vpop.f32.mrf.mxu0
        %v1680 = vadd.f32 %v1591, %v1679
        %v1681 = vpop.f32.mrf.mxu0
        %v1682 = vadd.f32 %v1593, %v1681
        %1683 = vmatmul.bf16.gmra.mxu0 %v715
        %v1684 = vpop.f32.mrf.mxu0
        %v1685 = vadd.f32 %v1596, %v1684
        %v1686 = vpop.f32.mrf.mxu0
        %v1687 = vadd.f32 %v1598, %v1686
        %1688 = vmatmul.bf16.gmra.mxu0 %v723
        %v1689 = vpop.f32.mrf.mxu0
        %v1690 = vadd.f32 %v1601, %v1689
        %v1691 = vpop.f32.mrf.mxu0
        %v1692 = vadd.f32 %v1603, %v1691
        %1693 = vmatmul.bf16.gmra.mxu0 %v731
        %v1694 = vpop.f32.mrf.mxu0
        %v1695 = vadd.f32 %v1606, %v1694
        %v1696 = vpop.f32.mrf.mxu0
        %v1697 = vadd.f32 %v1608, %v1696
        %1698 = vmatmul.bf16.gmra.mxu0 %v739
        %v1699 = vpop.f32.mrf.mxu0
        %v1700 = vadd.f32 %v1611, %v1699
        %v1701 = vpop.f32.mrf.mxu0
        %v1702 = vadd.f32 %v1613, %v1701
        %1703 = vmatmul.bf16.gmra.mxu0 %v747
        %v1704 = vpop.f32.mrf.mxu0
        %v1705 = vadd.f32 %v1616, %v1704
        %v1706 = vpop.f32.mrf.mxu0
        %v1707 = vadd.f32 %v1618, %v1706
        %1708 = vmatmul.bf16.gmra.mxu0 %v755
        %v1709 = vpop.f32.mrf.mxu0
        %v1710 = vadd.f32 %v1621, %v1709
        %v1711 = vpop.f32.mrf.mxu0
        %v1712 = vadd.f32 %v1623, %v1711
        %1713 = vdwg.mxu0
        %1714 = vmatpush.bf16.msra.mxu0 %v1326
        %1715 = vmatpush.bf16.msra.mxu0 %v1324
        %1716 = vmatpush.bf16.msra.mxu0 %v1322
        %1717 = vmatpush.bf16.msra.mxu0 %v1320
        %1718 = vmatpush.bf16.msra.mxu0 %v1318
        %1719 = vmatpush.bf16.msra.mxu0 %v1316
        %1720 = vmatpush.bf16.msra.mxu0 %v1314
        %1721 = vmatpush.bf16.msra.mxu0 %v1312
        %1722 = vmatmul.bf16.gmra.mxu0 %v636
        %v1723 = vpop.f32.mrf.mxu0
        %v1724 = vadd.f32 %v1635, %v1723
        %v1725 = vpop.f32.mrf.mxu0
        %v1726 = vadd.f32 %v1637, %v1725
        %1727 = vmatmul.bf16.gmra.mxu0 %v644
        %v1728 = vpop.f32.mrf.mxu0
        %v1729 = vadd.f32 %v1640, %v1728
        %v1730 = vpop.f32.mrf.mxu0
        %v1731 = vadd.f32 %v1642, %v1730
        %1732 = vmatmul.bf16.gmra.mxu0 %v652
        %v1733 = vpop.f32.mrf.mxu0
        %v1734 = vadd.f32 %v1645, %v1733
        %v1735 = vpop.f32.mrf.mxu0
        %v1736 = vadd.f32 %v1647, %v1735
        %1737 = vmatmul.bf16.gmra.mxu0 %v660
        %v1738 = vpop.f32.mrf.mxu0
        %v1739 = vadd.f32 %v1650, %v1738
        %v1740 = vpop.f32.mrf.mxu0
        %v1741 = vadd.f32 %v1652, %v1740
        %1742 = vmatmul.bf16.gmra.mxu0 %v668
        %v1743 = vpop.f32.mrf.mxu0
        %v1744 = vadd.f32 %v1655, %v1743
        %v1745 = vpop.f32.mrf.mxu0
        %v1746 = vadd.f32 %v1657, %v1745
        %1747 = vmatmul.bf16.gmra.mxu0 %v676
        %v1748 = vpop.f32.mrf.mxu0
        %v1749 = vadd.f32 %v1660, %v1748
        %v1750 = vpop.f32.mrf.mxu0
        %v1751 = vadd.f32 %v1662, %v1750
        %1752 = vmatmul.bf16.gmra.mxu0 %v684
        %v1753 = vpop.f32.mrf.mxu0
        %v1754 = vadd.f32 %v1665, %v1753
        %v1755 = vpop.f32.mrf.mxu0
        %v1756 = vadd.f32 %v1667, %v1755
        %1757 = vmatmul.bf16.gmra.mxu0 %v692
        %v1758 = vpop.f32.mrf.mxu0
        %v1759 = vadd.f32 %v1670, %v1758
        %v1760 = vpop.f32.mrf.mxu0
        %v1761 = vadd.f32 %v1672, %v1760
        %1762 = vmatmul.bf16.gmra.mxu0 %v700
        %v1763 = vpop.f32.mrf.mxu0
        %v1764 = vadd.f32 %v1675, %v1763
        %v1765 = vpop.f32.mrf.mxu0
        %v1766 = vadd.f32 %v1677, %v1765
        %1767 = vmatmul.bf16.gmra.mxu0 %v708
        %v1768 = vpop.f32.mrf.mxu0
        %v1769 = vadd.f32 %v1680, %v1768
        %v1770 = vpop.f32.mrf.mxu0
        %v1771 = vadd.f32 %v1682, %v1770
        %1772 = vmatmul.bf16.gmra.mxu0 %v716
        %v1773 = vpop.f32.mrf.mxu0
        %v1774 = vadd.f32 %v1685, %v1773
        %v1775 = vpop.f32.mrf.mxu0
        %v1776 = vadd.f32 %v1687, %v1775
        %1777 = vmatmul.bf16.gmra.mxu0 %v724
        %v1778 = vpop.f32.mrf.mxu0
        %v1779 = vadd.f32 %v1690, %v1778
        %v1780 = vpop.f32.mrf.mxu0
        %v1781 = vadd.f32 %v1692, %v1780
        %1782 = vmatmul.bf16.gmra.mxu0 %v732
        %v1783 = vpop.f32.mrf.mxu0
        %v1784 = vadd.f32 %v1695, %v1783
        %v1785 = vpop.f32.mrf.mxu0
        %v1786 = vadd.f32 %v1697, %v1785
        %1787 = vmatmul.bf16.gmra.mxu0 %v740
        %v1788 = vpop.f32.mrf.mxu0
        %v1789 = vadd.f32 %v1700, %v1788
        %v1790 = vpop.f32.mrf.mxu0
        %v1791 = vadd.f32 %v1702, %v1790
        %1792 = vmatmul.bf16.gmra.mxu0 %v748
        %v1793 = vpop.f32.mrf.mxu0
        %v1794 = vadd.f32 %v1705, %v1793
        %v1795 = vpop.f32.mrf.mxu0
        %v1796 = vadd.f32 %v1707, %v1795
        %1797 = vmatmul.bf16.gmra.mxu0 %v756
        %v1798 = vpop.f32.mrf.mxu0
        %v1799 = vadd.f32 %v1710, %v1798
        %v1800 = vpop.f32.mrf.mxu0
        %v1801 = vadd.f32 %v1712, %v1800
        %1802 = vdwg.mxu0
        %1803 = vmatpush.bf16.msra.mxu0 %v1342
        %1804 = vmatpush.bf16.msra.mxu0 %v1340
        %1805 = vmatpush.bf16.msra.mxu0 %v1338
        %1806 = vmatpush.bf16.msra.mxu0 %v1336
        %1807 = vmatpush.bf16.msra.mxu0 %v1334
        %1808 = vmatpush.bf16.msra.mxu0 %v1332
        %1809 = vmatpush.bf16.msra.mxu0 %v1330
        %1810 = vmatpush.bf16.msra.mxu0 %v1328
        %1811 = vmatmul.bf16.gmra.mxu0 %v637
        %v1812 = vpop.f32.mrf.mxu0
        %v1813 = vadd.f32 %v1724, %v1812
        %v1814 = vpop.f32.mrf.mxu0
        %v1815 = vadd.f32 %v1726, %v1814
        %1816 = vmatmul.bf16.gmra.mxu0 %v645
        %v1817 = vpop.f32.mrf.mxu0
        %v1818 = vadd.f32 %v1729, %v1817
        %v1819 = vpop.f32.mrf.mxu0
        %v1820 = vadd.f32 %v1731, %v1819
        %1821 = vmatmul.bf16.gmra.mxu0 %v653
        %v1822 = vpop.f32.mrf.mxu0
        %v1823 = vadd.f32 %v1734, %v1822
        %v1824 = vpop.f32.mrf.mxu0
        %v1825 = vadd.f32 %v1736, %v1824
        %1826 = vmatmul.bf16.gmra.mxu0 %v661
        %v1827 = vpop.f32.mrf.mxu0
        %v1828 = vadd.f32 %v1739, %v1827
        %v1829 = vpop.f32.mrf.mxu0
        %v1830 = vadd.f32 %v1741, %v1829
        %1831 = vmatmul.bf16.gmra.mxu0 %v669
        %v1832 = vpop.f32.mrf.mxu0
        %v1833 = vadd.f32 %v1744, %v1832
        %v1834 = vpop.f32.mrf.mxu0
        %v1835 = vadd.f32 %v1746, %v1834
        %1836 = vmatmul.bf16.gmra.mxu0 %v677
        %v1837 = vpop.f32.mrf.mxu0
        %v1838 = vadd.f32 %v1749, %v1837
        %v1839 = vpop.f32.mrf.mxu0
        %v1840 = vadd.f32 %v1751, %v1839
        %1841 = vmatmul.bf16.gmra.mxu0 %v685
        %v1842 = vpop.f32.mrf.mxu0
        %v1843 = vadd.f32 %v1754, %v1842
        %v1844 = vpop.f32.mrf.mxu0
        %v1845 = vadd.f32 %v1756, %v1844
        %1846 = vmatmul.bf16.gmra.mxu0 %v693
        %v1847 = vpop.f32.mrf.mxu0
        %v1848 = vadd.f32 %v1759, %v1847
        %v1849 = vpop.f32.mrf.mxu0
        %v1850 = vadd.f32 %v1761, %v1849
        %1851 = vmatmul.bf16.gmra.mxu0 %v701
        %v1852 = vpop.f32.mrf.mxu0
        %v1853 = vadd.f32 %v1764, %v1852
        %v1854 = vpop.f32.mrf.mxu0
        %v1855 = vadd.f32 %v1766, %v1854
        %1856 = vmatmul.bf16.gmra.mxu0 %v709
        %v1857 = vpop.f32.mrf.mxu0
        %v1858 = vadd.f32 %v1769, %v1857
        %v1859 = vpop.f32.mrf.mxu0
        %v1860 = vadd.f32 %v1771, %v1859
        %1861 = vmatmul.bf16.gmra.mxu0 %v717
        %v1862 = vpop.f32.mrf.mxu0
        %v1863 = vadd.f32 %v1774, %v1862
        %v1864 = vpop.f32.mrf.mxu0
        %v1865 = vadd.f32 %v1776, %v1864
        %1866 = vmatmul.bf16.gmra.mxu0 %v725
        %v1867 = vpop.f32.mrf.mxu0
        %v1868 = vadd.f32 %v1779, %v1867
        %v1869 = vpop.f32.mrf.mxu0
        %v1870 = vadd.f32 %v1781, %v1869
        %1871 = vmatmul.bf16.gmra.mxu0 %v733
        %v1872 = vpop.f32.mrf.mxu0
        %v1873 = vadd.f32 %v1784, %v1872
        %v1874 = vpop.f32.mrf.mxu0
        %v1875 = vadd.f32 %v1786, %v1874
        %1876 = vmatmul.bf16.gmra.mxu0 %v741
        %v1877 = vpop.f32.mrf.mxu0
        %v1878 = vadd.f32 %v1789, %v1877
        %v1879 = vpop.f32.mrf.mxu0
        %v1880 = vadd.f32 %v1791, %v1879
        %1881 = vmatmul.bf16.gmra.mxu0 %v749
        %v1882 = vpop.f32.mrf.mxu0
        %v1883 = vadd.f32 %v1794, %v1882
        %v1884 = vpop.f32.mrf.mxu0
        %v1885 = vadd.f32 %v1796, %v1884
        %1886 = vmatmul.bf16.gmra.mxu0 %v757
        %v1887 = vpop.f32.mrf.mxu0
        %v1888 = vadd.f32 %v1799, %v1887
        %v1889 = vpop.f32.mrf.mxu0
        %v1890 = vadd.f32 %v1801, %v1889
        %1891 = vdwg.mxu0
        %1892 = vmatpush.bf16.msra.mxu0 %v1358
        %1893 = vmatpush.bf16.msra.mxu0 %v1356
        %1894 = vmatpush.bf16.msra.mxu0 %v1354
        %1895 = vmatpush.bf16.msra.mxu0 %v1352
        %1896 = vmatpush.bf16.msra.mxu0 %v1350
        %1897 = vmatpush.bf16.msra.mxu0 %v1348
        %1898 = vmatpush.bf16.msra.mxu0 %v1346
        %1899 = vmatpush.bf16.msra.mxu0 %v1344
        %1900 = vmatmul.bf16.gmra.mxu0 %v638
        %v1901 = vpop.f32.mrf.mxu0
        %v1902 = vadd.f32 %v1813, %v1901
        %v1903 = vpop.f32.mrf.mxu0
        %v1904 = vadd.f32 %v1815, %v1903
        %1905 = vmatmul.bf16.gmra.mxu0 %v646
        %v1906 = vpop.f32.mrf.mxu0
        %v1907 = vadd.f32 %v1818, %v1906
        %v1908 = vpop.f32.mrf.mxu0
        %v1909 = vadd.f32 %v1820, %v1908
        %1910 = vmatmul.bf16.gmra.mxu0 %v654
        %v1911 = vpop.f32.mrf.mxu0
        %v1912 = vadd.f32 %v1823, %v1911
        %v1913 = vpop.f32.mrf.mxu0
        %v1914 = vadd.f32 %v1825, %v1913
        %1915 = vmatmul.bf16.gmra.mxu0 %v662
        %v1916 = vpop.f32.mrf.mxu0
        %v1917 = vadd.f32 %v1828, %v1916
        %v1918 = vpop.f32.mrf.mxu0
        %v1919 = vadd.f32 %v1830, %v1918
        %1920 = vmatmul.bf16.gmra.mxu0 %v670
        %v1921 = vpop.f32.mrf.mxu0
        %v1922 = vadd.f32 %v1833, %v1921
        %v1923 = vpop.f32.mrf.mxu0
        %v1924 = vadd.f32 %v1835, %v1923
        %1925 = vmatmul.bf16.gmra.mxu0 %v678
        %v1926 = vpop.f32.mrf.mxu0
        %v1927 = vadd.f32 %v1838, %v1926
        %v1928 = vpop.f32.mrf.mxu0
        %v1929 = vadd.f32 %v1840, %v1928
        %1930 = vmatmul.bf16.gmra.mxu0 %v686
        %v1931 = vpop.f32.mrf.mxu0
        %v1932 = vadd.f32 %v1843, %v1931
        %v1933 = vpop.f32.mrf.mxu0
        %v1934 = vadd.f32 %v1845, %v1933
        %1935 = vmatmul.bf16.gmra.mxu0 %v694
        %v1936 = vpop.f32.mrf.mxu0
        %v1937 = vadd.f32 %v1848, %v1936
        %v1938 = vpop.f32.mrf.mxu0
        %v1939 = vadd.f32 %v1850, %v1938
        %1940 = vmatmul.bf16.gmra.mxu0 %v702
        %v1941 = vpop.f32.mrf.mxu0
        %v1942 = vadd.f32 %v1853, %v1941
        %v1943 = vpop.f32.mrf.mxu0
        %v1944 = vadd.f32 %v1855, %v1943
        %1945 = vmatmul.bf16.gmra.mxu0 %v710
        %v1946 = vpop.f32.mrf.mxu0
        %v1947 = vadd.f32 %v1858, %v1946
        %v1948 = vpop.f32.mrf.mxu0
        %v1949 = vadd.f32 %v1860, %v1948
        %1950 = vmatmul.bf16.gmra.mxu0 %v718
        %v1951 = vpop.f32.mrf.mxu0
        %v1952 = vadd.f32 %v1863, %v1951
        %v1953 = vpop.f32.mrf.mxu0
        %v1954 = vadd.f32 %v1865, %v1953
        %1955 = vmatmul.bf16.gmra.mxu0 %v726
        %v1956 = vpop.f32.mrf.mxu0
        %v1957 = vadd.f32 %v1868, %v1956
        %v1958 = vpop.f32.mrf.mxu0
        %v1959 = vadd.f32 %v1870, %v1958
        %1960 = vmatmul.bf16.gmra.mxu0 %v734
        %v1961 = vpop.f32.mrf.mxu0
        %v1962 = vadd.f32 %v1873, %v1961
        %v1963 = vpop.f32.mrf.mxu0
        %v1964 = vadd.f32 %v1875, %v1963
        %1965 = vmatmul.bf16.gmra.mxu0 %v742
        %v1966 = vpop.f32.mrf.mxu0
        %v1967 = vadd.f32 %v1878, %v1966
        %v1968 = vpop.f32.mrf.mxu0
        %v1969 = vadd.f32 %v1880, %v1968
        %1970 = vmatmul.bf16.gmra.mxu0 %v750
        %v1971 = vpop.f32.mrf.mxu0
        %v1972 = vadd.f32 %v1883, %v1971
        %v1973 = vpop.f32.mrf.mxu0
        %v1974 = vadd.f32 %v1885, %v1973
        %1975 = vmatmul.bf16.gmra.mxu0 %v758
        %v1976 = vpop.f32.mrf.mxu0
        %v1977 = vadd.f32 %v1888, %v1976
        %v1978 = vpop.f32.mrf.mxu0
        %v1979 = vadd.f32 %v1890, %v1978
        %1980 = vdwg.mxu0
        %1981 = vmatpush.bf16.msra.mxu0 %v1374
        %1982 = vmatpush.bf16.msra.mxu0 %v1372
        %1983 = vmatpush.bf16.msra.mxu0 %v1370
        %1984 = vmatpush.bf16.msra.mxu0 %v1368
        %1985 = vmatpush.bf16.msra.mxu0 %v1366
        %1986 = vmatpush.bf16.msra.mxu0 %v1364
        %1987 = vmatpush.bf16.msra.mxu0 %v1362
        %1988 = vmatpush.bf16.msra.mxu0 %v1360
        %1989 = vmatmul.bf16.gmra.mxu0 %v639
        %v1990 = vpop.f32.mrf.mxu0
        %v1991 = vadd.f32 %v1902, %v1990
        %v1992 = vpop.f32.mrf.mxu0
        %v1993 = vadd.f32 %v1904, %v1992
        %1994 = vmatmul.bf16.gmra.mxu0 %v647
        %v1995 = vpop.f32.mrf.mxu0
        %v1996 = vadd.f32 %v1907, %v1995
        %v1997 = vpop.f32.mrf.mxu0
        %v1998 = vadd.f32 %v1909, %v1997
        %1999 = vmatmul.bf16.gmra.mxu0 %v655
        %v2000 = vpop.f32.mrf.mxu0
        %v2001 = vadd.f32 %v1912, %v2000
        %v2002 = vpop.f32.mrf.mxu0
        %v2003 = vadd.f32 %v1914, %v2002
        %2004 = vmatmul.bf16.gmra.mxu0 %v663
        %v2005 = vpop.f32.mrf.mxu0
        %v2006 = vadd.f32 %v1917, %v2005
        %v2007 = vpop.f32.mrf.mxu0
        %v2008 = vadd.f32 %v1919, %v2007
        %2009 = vmatmul.bf16.gmra.mxu0 %v671
        %v2010 = vpop.f32.mrf.mxu0
        %v2011 = vadd.f32 %v1922, %v2010
        %v2012 = vpop.f32.mrf.mxu0
        %v2013 = vadd.f32 %v1924, %v2012
        %2014 = vmatmul.bf16.gmra.mxu0 %v679
        %v2015 = vpop.f32.mrf.mxu0
        %v2016 = vadd.f32 %v1927, %v2015
        %v2017 = vpop.f32.mrf.mxu0
        %v2018 = vadd.f32 %v1929, %v2017
        %2019 = vmatmul.bf16.gmra.mxu0 %v687
        %v2020 = vpop.f32.mrf.mxu0
        %v2021 = vadd.f32 %v1932, %v2020
        %v2022 = vpop.f32.mrf.mxu0
        %v2023 = vadd.f32 %v1934, %v2022
        %2024 = vmatmul.bf16.gmra.mxu0 %v695
        %v2025 = vpop.f32.mrf.mxu0
        %v2026 = vadd.f32 %v1937, %v2025
        %v2027 = vpop.f32.mrf.mxu0
        %v2028 = vadd.f32 %v1939, %v2027
        %2029 = vmatmul.bf16.gmra.mxu0 %v703
        %v2030 = vpop.f32.mrf.mxu0
        %v2031 = vadd.f32 %v1942, %v2030
        %v2032 = vpop.f32.mrf.mxu0
        %v2033 = vadd.f32 %v1944, %v2032
        %2034 = vmatmul.bf16.gmra.mxu0 %v711
        %v2035 = vpop.f32.mrf.mxu0
        %v2036 = vadd.f32 %v1947, %v2035
        %v2037 = vpop.f32.mrf.mxu0
        %v2038 = vadd.f32 %v1949, %v2037
        %2039 = vmatmul.bf16.gmra.mxu0 %v719
        %v2040 = vpop.f32.mrf.mxu0
        %v2041 = vadd.f32 %v1952, %v2040
        %v2042 = vpop.f32.mrf.mxu0
        %v2043 = vadd.f32 %v1954, %v2042
        %2044 = vmatmul.bf16.gmra.mxu0 %v727
        %v2045 = vpop.f32.mrf.mxu0
        %v2046 = vadd.f32 %v1957, %v2045
        %v2047 = vpop.f32.mrf.mxu0
        %v2048 = vadd.f32 %v1959, %v2047
        %2049 = vmatmul.bf16.gmra.mxu0 %v735
        %v2050 = vpop.f32.mrf.mxu0
        %v2051 = vadd.f32 %v1962, %v2050
        %v2052 = vpop.f32.mrf.mxu0
        %v2053 = vadd.f32 %v1964, %v2052
        %2054 = vmatmul.bf16.gmra.mxu0 %v743
        %v2055 = vpop.f32.mrf.mxu0
        %v2056 = vadd.f32 %v1967, %v2055
        %v2057 = vpop.f32.mrf.mxu0
        %v2058 = vadd.f32 %v1969, %v2057
        %2059 = vmatmul.bf16.gmra.mxu0 %v751
        %v2060 = vpop.f32.mrf.mxu0
        %v2061 = vadd.f32 %v1972, %v2060
        %v2062 = vpop.f32.mrf.mxu0
        %v2063 = vadd.f32 %v1974, %v2062
        %2064 = vmatmul.bf16.gmra.mxu0 %v759
        %v2065 = vpop.f32.mrf.mxu0
        %v2066 = vadd.f32 %v1977, %v2065
        %v2067 = vpop.f32.mrf.mxu0
        %v2068 = vadd.f32 %v1979, %v2067
        %2069 = vdwg.mxu0
        %2070 = vmatpush.bf16.msra.mxu0 %v1390
        %2071 = vmatpush.bf16.msra.mxu0 %v1388
        %2072 = vmatpush.bf16.msra.mxu0 %v1386
        %2073 = vmatpush.bf16.msra.mxu0 %v1384
        %2074 = vmatpush.bf16.msra.mxu0 %v1382
        %2075 = vmatpush.bf16.msra.mxu0 %v1380
        %2076 = vmatpush.bf16.msra.mxu0 %v1378
        %2077 = vmatpush.bf16.msra.mxu0 %v1376
        %2078 = vmatmul.bf16.gmra.mxu0 %v640
        %v2079 = vpop.f32.mrf.mxu0
        %v2080 = vadd.f32 %v1991, %v2079
        %v2081 = vpop.f32.mrf.mxu0
        %v2082 = vadd.f32 %v1993, %v2081
        %2083 = vmatmul.bf16.gmra.mxu0 %v648
        %v2084 = vpop.f32.mrf.mxu0
        %v2085 = vadd.f32 %v1996, %v2084
        %v2086 = vpop.f32.mrf.mxu0
        %v2087 = vadd.f32 %v1998, %v2086
        %2088 = vmatmul.bf16.gmra.mxu0 %v656
        %v2089 = vpop.f32.mrf.mxu0
        %v2090 = vadd.f32 %v2001, %v2089
        %v2091 = vpop.f32.mrf.mxu0
        %v2092 = vadd.f32 %v2003, %v2091
        %2093 = vmatmul.bf16.gmra.mxu0 %v664
        %v2094 = vpop.f32.mrf.mxu0
        %v2095 = vadd.f32 %v2006, %v2094
        %v2096 = vpop.f32.mrf.mxu0
        %v2097 = vadd.f32 %v2008, %v2096
        %2098 = vmatmul.bf16.gmra.mxu0 %v672
        %v2099 = vpop.f32.mrf.mxu0
        %v2100 = vadd.f32 %v2011, %v2099
        %v2101 = vpop.f32.mrf.mxu0
        %v2102 = vadd.f32 %v2013, %v2101
        %2103 = vmatmul.bf16.gmra.mxu0 %v680
        %v2104 = vpop.f32.mrf.mxu0
        %v2105 = vadd.f32 %v2016, %v2104
        %v2106 = vpop.f32.mrf.mxu0
        %v2107 = vadd.f32 %v2018, %v2106
        %2108 = vmatmul.bf16.gmra.mxu0 %v688
        %v2109 = vpop.f32.mrf.mxu0
        %v2110 = vadd.f32 %v2021, %v2109
        %v2111 = vpop.f32.mrf.mxu0
        %v2112 = vadd.f32 %v2023, %v2111
        %2113 = vmatmul.bf16.gmra.mxu0 %v696
        %v2114 = vpop.f32.mrf.mxu0
        %v2115 = vadd.f32 %v2026, %v2114
        %v2116 = vpop.f32.mrf.mxu0
        %v2117 = vadd.f32 %v2028, %v2116
        %2118 = vmatmul.bf16.gmra.mxu0 %v704
        %v2119 = vpop.f32.mrf.mxu0
        %v2120 = vadd.f32 %v2031, %v2119
        %v2121 = vpop.f32.mrf.mxu0
        %v2122 = vadd.f32 %v2033, %v2121
        %2123 = vmatmul.bf16.gmra.mxu0 %v712
        %v2124 = vpop.f32.mrf.mxu0
        %v2125 = vadd.f32 %v2036, %v2124
        %v2126 = vpop.f32.mrf.mxu0
        %v2127 = vadd.f32 %v2038, %v2126
        %2128 = vmatmul.bf16.gmra.mxu0 %v720
        %v2129 = vpop.f32.mrf.mxu0
        %v2130 = vadd.f32 %v2041, %v2129
        %v2131 = vpop.f32.mrf.mxu0
        %v2132 = vadd.f32 %v2043, %v2131
        %2133 = vmatmul.bf16.gmra.mxu0 %v728
        %v2134 = vpop.f32.mrf.mxu0
        %v2135 = vadd.f32 %v2046, %v2134
        %v2136 = vpop.f32.mrf.mxu0
        %v2137 = vadd.f32 %v2048, %v2136
        %2138 = vmatmul.bf16.gmra.mxu0 %v736
        %v2139 = vpop.f32.mrf.mxu0
        %v2140 = vadd.f32 %v2051, %v2139
        %v2141 = vpop.f32.mrf.mxu0
        %v2142 = vadd.f32 %v2053, %v2141
        %2143 = vmatmul.bf16.gmra.mxu0 %v744
        %v2144 = vpop.f32.mrf.mxu0
        %v2145 = vadd.f32 %v2056, %v2144
        %v2146 = vpop.f32.mrf.mxu0
        %v2147 = vadd.f32 %v2058, %v2146
        %2148 = vmatmul.bf16.gmra.mxu0 %v752
        %v2149 = vpop.f32.mrf.mxu0
        %v2150 = vadd.f32 %v2061, %v2149
        %v2151 = vpop.f32.mrf.mxu0
        %v2152 = vadd.f32 %v2063, %v2151
        %2153 = vmatmul.bf16.gmra.mxu0 %v760
        %v2154 = vpop.f32.mrf.mxu0
        %v2155 = vadd.f32 %v2066, %v2154
        %v2156 = vpop.f32.mrf.mxu0
        %v2157 = vadd.f32 %v2068, %v2156
        %2158 = vdwg.mxu0
        %2159 = vmatpush.bf16.msra.mxu0 %v1406
        %2160 = vmatpush.bf16.msra.mxu0 %v1404
        %2161 = vmatpush.bf16.msra.mxu0 %v1402
        %2162 = vmatpush.bf16.msra.mxu0 %v1400
        %2163 = vmatpush.bf16.msra.mxu0 %v1398
        %2164 = vmatpush.bf16.msra.mxu0 %v1396
        %2165 = vmatpush.bf16.msra.mxu0 %v1394
        %2166 = vmatpush.bf16.msra.mxu0 %v1392
        %2167 = vmatmul.bf16.gmra.mxu0 %v641
        %v2168 = vpop.f32.mrf.mxu0
        %v2169 = vadd.f32 %v2080, %v2168
        %v2170 = vpop.f32.mrf.mxu0
        %v2171 = vadd.f32 %v2082, %v2170
        %2172 = vmatmul.bf16.gmra.mxu0 %v649
        %v2173 = vpop.f32.mrf.mxu0
        %v2174 = vadd.f32 %v2085, %v2173
        %v2175 = vpop.f32.mrf.mxu0
        %v2176 = vadd.f32 %v2087, %v2175
        %2177 = vmatmul.bf16.gmra.mxu0 %v657
        %v2178 = vpop.f32.mrf.mxu0
        %v2179 = vadd.f32 %v2090, %v2178
        %v2180 = vpop.f32.mrf.mxu0
        %v2181 = vadd.f32 %v2092, %v2180
        %2182 = vmatmul.bf16.gmra.mxu0 %v665
        %v2183 = vpop.f32.mrf.mxu0
        %v2184 = vadd.f32 %v2095, %v2183
        %v2185 = vpop.f32.mrf.mxu0
        %v2186 = vadd.f32 %v2097, %v2185
        %2187 = vmatmul.bf16.gmra.mxu0 %v673
        %v2188 = vpop.f32.mrf.mxu0
        %v2189 = vadd.f32 %v2100, %v2188
        %v2190 = vpop.f32.mrf.mxu0
        %v2191 = vadd.f32 %v2102, %v2190
        %2192 = vmatmul.bf16.gmra.mxu0 %v681
        %v2193 = vpop.f32.mrf.mxu0
        %v2194 = vadd.f32 %v2105, %v2193
        %v2195 = vpop.f32.mrf.mxu0
        %v2196 = vadd.f32 %v2107, %v2195
        %2197 = vmatmul.bf16.gmra.mxu0 %v689
        %v2198 = vpop.f32.mrf.mxu0
        %v2199 = vadd.f32 %v2110, %v2198
        %v2200 = vpop.f32.mrf.mxu0
        %v2201 = vadd.f32 %v2112, %v2200
        %2202 = vmatmul.bf16.gmra.mxu0 %v697
        %v2203 = vpop.f32.mrf.mxu0
        %v2204 = vadd.f32 %v2115, %v2203
        %v2205 = vpop.f32.mrf.mxu0
        %v2206 = vadd.f32 %v2117, %v2205
        %2207 = vmatmul.bf16.gmra.mxu0 %v705
        %v2208 = vpop.f32.mrf.mxu0
        %v2209 = vadd.f32 %v2120, %v2208
        %v2210 = vpop.f32.mrf.mxu0
        %v2211 = vadd.f32 %v2122, %v2210
        %2212 = vmatmul.bf16.gmra.mxu0 %v713
        %v2213 = vpop.f32.mrf.mxu0
        %v2214 = vadd.f32 %v2125, %v2213
        %v2215 = vpop.f32.mrf.mxu0
        %v2216 = vadd.f32 %v2127, %v2215
        %2217 = vmatmul.bf16.gmra.mxu0 %v721
        %v2218 = vpop.f32.mrf.mxu0
        %v2219 = vadd.f32 %v2130, %v2218
        %v2220 = vpop.f32.mrf.mxu0
        %v2221 = vadd.f32 %v2132, %v2220
        %2222 = vmatmul.bf16.gmra.mxu0 %v729
        %v2223 = vpop.f32.mrf.mxu0
        %v2224 = vadd.f32 %v2135, %v2223
        %v2225 = vpop.f32.mrf.mxu0
        %v2226 = vadd.f32 %v2137, %v2225
        %2227 = vmatmul.bf16.gmra.mxu0 %v737
        %v2228 = vpop.f32.mrf.mxu0
        %v2229 = vadd.f32 %v2140, %v2228
        %v2230 = vpop.f32.mrf.mxu0
        %v2231 = vadd.f32 %v2142, %v2230
        %2232 = vmatmul.bf16.gmra.mxu0 %v745
        %v2233 = vpop.f32.mrf.mxu0
        %v2234 = vadd.f32 %v2145, %v2233
        %v2235 = vpop.f32.mrf.mxu0
        %v2236 = vadd.f32 %v2147, %v2235
        %2237 = vmatmul.bf16.gmra.mxu0 %v753
        %v2238 = vpop.f32.mrf.mxu0
        %v2239 = vadd.f32 %v2150, %v2238
        %v2240 = vpop.f32.mrf.mxu0
        %v2241 = vadd.f32 %v2152, %v2240
        %2242 = vmatmul.bf16.gmra.mxu0 %v761
        %v2243 = vpop.f32.mrf.mxu0
        %v2244 = vadd.f32 %v2155, %v2243
        %v2245 = vpop.f32.mrf.mxu0
        %v2246 = vadd.f32 %v2157, %v2245
        %2247 = vdwg.mxu0
        %2248 = vmatpush.bf16.msra.mxu0 %v1295
        %2249 = vmatpush.bf16.msra.mxu0 %v1293
        %2250 = vmatpush.bf16.msra.mxu0 %v1291
        %2251 = vmatpush.bf16.msra.mxu0 %v1289
        %2252 = vmatpush.bf16.msra.mxu0 %v1287
        %2253 = vmatpush.bf16.msra.mxu0 %v1285
        %2254 = vmatpush.bf16.msra.mxu0 %v1283
        %2255 = vmatpush.bf16.msra.mxu0 %v1281
        %2256 = vmatmul.bf16.gmra.mxu0 %v634
        %v2257 = vpop.f32.mrf.mxu0
        %v2258 = vadd.f32 %v893, %v2257
        %v2259 = vpop.f32.mrf.mxu0
        %v2260 = vadd.f32 %v893, %v2259
        %2261 = vmatmul.bf16.gmra.mxu0 %v642
        %v2262 = vpop.f32.mrf.mxu0
        %v2263 = vadd.f32 %v893, %v2262
        %v2264 = vpop.f32.mrf.mxu0
        %v2265 = vadd.f32 %v893, %v2264
        %2266 = vmatmul.bf16.gmra.mxu0 %v650
        %v2267 = vpop.f32.mrf.mxu0
        %v2268 = vadd.f32 %v893, %v2267
        %v2269 = vpop.f32.mrf.mxu0
        %v2270 = vadd.f32 %v893, %v2269
        %2271 = vmatmul.bf16.gmra.mxu0 %v658
        %v2272 = vpop.f32.mrf.mxu0
        %v2273 = vadd.f32 %v893, %v2272
        %v2274 = vpop.f32.mrf.mxu0
        %v2275 = vadd.f32 %v893, %v2274
        %2276 = vmatmul.bf16.gmra.mxu0 %v666
        %v2277 = vpop.f32.mrf.mxu0
        %v2278 = vadd.f32 %v893, %v2277
        %v2279 = vpop.f32.mrf.mxu0
        %v2280 = vadd.f32 %v893, %v2279
        %2281 = vmatmul.bf16.gmra.mxu0 %v674
        %v2282 = vpop.f32.mrf.mxu0
        %v2283 = vadd.f32 %v893, %v2282
        %v2284 = vpop.f32.mrf.mxu0
        %v2285 = vadd.f32 %v893, %v2284
        %2286 = vmatmul.bf16.gmra.mxu0 %v682
        %v2287 = vpop.f32.mrf.mxu0
        %v2288 = vadd.f32 %v893, %v2287
        %v2289 = vpop.f32.mrf.mxu0
        %v2290 = vadd.f32 %v893, %v2289
        %2291 = vmatmul.bf16.gmra.mxu0 %v690
        %v2292 = vpop.f32.mrf.mxu0
        %v2293 = vadd.f32 %v893, %v2292
        %v2294 = vpop.f32.mrf.mxu0
        %v2295 = vadd.f32 %v893, %v2294
        %2296 = vmatmul.bf16.gmra.mxu0 %v698
        %v2297 = vpop.f32.mrf.mxu0
        %v2298 = vadd.f32 %v893, %v2297
        %v2299 = vpop.f32.mrf.mxu0
        %v2300 = vadd.f32 %v893, %v2299
        %2301 = vmatmul.bf16.gmra.mxu0 %v706
        %v2302 = vpop.f32.mrf.mxu0
        %v2303 = vadd.f32 %v893, %v2302
        %v2304 = vpop.f32.mrf.mxu0
        %v2305 = vadd.f32 %v893, %v2304
        %2306 = vmatmul.bf16.gmra.mxu0 %v714
        %v2307 = vpop.f32.mrf.mxu0
        %v2308 = vadd.f32 %v893, %v2307
        %v2309 = vpop.f32.mrf.mxu0
        %v2310 = vadd.f32 %v893, %v2309
        %2311 = vmatmul.bf16.gmra.mxu0 %v722
        %v2312 = vpop.f32.mrf.mxu0
        %v2313 = vadd.f32 %v893, %v2312
        %v2314 = vpop.f32.mrf.mxu0
        %v2315 = vadd.f32 %v893, %v2314
        %2316 = vmatmul.bf16.gmra.mxu0 %v730
        %v2317 = vpop.f32.mrf.mxu0
        %v2318 = vadd.f32 %v893, %v2317
        %v2319 = vpop.f32.mrf.mxu0
        %v2320 = vadd.f32 %v893, %v2319
        %2321 = vmatmul.bf16.gmra.mxu0 %v738
        %v2322 = vpop.f32.mrf.mxu0
        %v2323 = vadd.f32 %v893, %v2322
        %v2324 = vpop.f32.mrf.mxu0
        %v2325 = vadd.f32 %v893, %v2324
        %2326 = vmatmul.bf16.gmra.mxu0 %v746
        %v2327 = vpop.f32.mrf.mxu0
        %v2328 = vadd.f32 %v893, %v2327
        %v2329 = vpop.f32.mrf.mxu0
        %v2330 = vadd.f32 %v893, %v2329
        %2331 = vmatmul.bf16.gmra.mxu0 %v754
        %v2332 = vpop.f32.mrf.mxu0
        %v2333 = vadd.f32 %v893, %v2332
        %v2334 = vpop.f32.mrf.mxu0
        %v2335 = vadd.f32 %v893, %v2334
        %2336 = vdwg.mxu0
        %2337 = vmatpush.bf16.msra.mxu0 %v1311
        %2338 = vmatpush.bf16.msra.mxu0 %v1309
        %2339 = vmatpush.bf16.msra.mxu0 %v1307
        %2340 = vmatpush.bf16.msra.mxu0 %v1305
        %2341 = vmatpush.bf16.msra.mxu0 %v1303
        %2342 = vmatpush.bf16.msra.mxu0 %v1301
        %2343 = vmatpush.bf16.msra.mxu0 %v1299
        %2344 = vmatpush.bf16.msra.mxu0 %v1297
        %2345 = vmatmul.bf16.gmra.mxu0 %v635
        %v2346 = vpop.f32.mrf.mxu0
        %v2347 = vadd.f32 %v2258, %v2346
        %v2348 = vpop.f32.mrf.mxu0
        %v2349 = vadd.f32 %v2260, %v2348
        %2350 = vmatmul.bf16.gmra.mxu0 %v643
        %v2351 = vpop.f32.mrf.mxu0
        %v2352 = vadd.f32 %v2263, %v2351
        %v2353 = vpop.f32.mrf.mxu0
        %v2354 = vadd.f32 %v2265, %v2353
        %2355 = vmatmul.bf16.gmra.mxu0 %v651
        %v2356 = vpop.f32.mrf.mxu0
        %v2357 = vadd.f32 %v2268, %v2356
        %v2358 = vpop.f32.mrf.mxu0
        %v2359 = vadd.f32 %v2270, %v2358
        %2360 = vmatmul.bf16.gmra.mxu0 %v659
        %v2361 = vpop.f32.mrf.mxu0
        %v2362 = vadd.f32 %v2273, %v2361
        %v2363 = vpop.f32.mrf.mxu0
        %v2364 = vadd.f32 %v2275, %v2363
        %2365 = vmatmul.bf16.gmra.mxu0 %v667
        %v2366 = vpop.f32.mrf.mxu0
        %v2367 = vadd.f32 %v2278, %v2366
        %v2368 = vpop.f32.mrf.mxu0
        %v2369 = vadd.f32 %v2280, %v2368
        %2370 = vmatmul.bf16.gmra.mxu0 %v675
        %v2371 = vpop.f32.mrf.mxu0
        %v2372 = vadd.f32 %v2283, %v2371
        %v2373 = vpop.f32.mrf.mxu0
        %v2374 = vadd.f32 %v2285, %v2373
        %2375 = vmatmul.bf16.gmra.mxu0 %v683
        %v2376 = vpop.f32.mrf.mxu0
        %v2377 = vadd.f32 %v2288, %v2376
        %v2378 = vpop.f32.mrf.mxu0
        %v2379 = vadd.f32 %v2290, %v2378
        %2380 = vmatmul.bf16.gmra.mxu0 %v691
        %v2381 = vpop.f32.mrf.mxu0
        %v2382 = vadd.f32 %v2293, %v2381
        %v2383 = vpop.f32.mrf.mxu0
        %v2384 = vadd.f32 %v2295, %v2383
        %2385 = vmatmul.bf16.gmra.mxu0 %v699
        %v2386 = vpop.f32.mrf.mxu0
        %v2387 = vadd.f32 %v2298, %v2386
        %v2388 = vpop.f32.mrf.mxu0
        %v2389 = vadd.f32 %v2300, %v2388
        %2390 = vmatmul.bf16.gmra.mxu0 %v707
        %v2391 = vpop.f32.mrf.mxu0
        %v2392 = vadd.f32 %v2303, %v2391
        %v2393 = vpop.f32.mrf.mxu0
        %v2394 = vadd.f32 %v2305, %v2393
        %2395 = vmatmul.bf16.gmra.mxu0 %v715
        %v2396 = vpop.f32.mrf.mxu0
        %v2397 = vadd.f32 %v2308, %v2396
        %v2398 = vpop.f32.mrf.mxu0
        %v2399 = vadd.f32 %v2310, %v2398
        %2400 = vmatmul.bf16.gmra.mxu0 %v723
        %v2401 = vpop.f32.mrf.mxu0
        %v2402 = vadd.f32 %v2313, %v2401
        %v2403 = vpop.f32.mrf.mxu0
        %v2404 = vadd.f32 %v2315, %v2403
        %2405 = vmatmul.bf16.gmra.mxu0 %v731
        %v2406 = vpop.f32.mrf.mxu0
        %v2407 = vadd.f32 %v2318, %v2406
        %v2408 = vpop.f32.mrf.mxu0
        %v2409 = vadd.f32 %v2320, %v2408
        %2410 = vmatmul.bf16.gmra.mxu0 %v739
        %v2411 = vpop.f32.mrf.mxu0
        %v2412 = vadd.f32 %v2323, %v2411
        %v2413 = vpop.f32.mrf.mxu0
        %v2414 = vadd.f32 %v2325, %v2413
        %2415 = vmatmul.bf16.gmra.mxu0 %v747
        %v2416 = vpop.f32.mrf.mxu0
        %v2417 = vadd.f32 %v2328, %v2416
        %v2418 = vpop.f32.mrf.mxu0
        %v2419 = vadd.f32 %v2330, %v2418
        %2420 = vmatmul.bf16.gmra.mxu0 %v755
        %v2421 = vpop.f32.mrf.mxu0
        %v2422 = vadd.f32 %v2333, %v2421
        %v2423 = vpop.f32.mrf.mxu0
        %v2424 = vadd.f32 %v2335, %v2423
        %2425 = vdwg.mxu0
        %2426 = vmatpush.bf16.msra.mxu0 %v1327
        %2427 = vmatpush.bf16.msra.mxu0 %v1325
        %2428 = vmatpush.bf16.msra.mxu0 %v1323
        %2429 = vmatpush.bf16.msra.mxu0 %v1321
        %2430 = vmatpush.bf16.msra.mxu0 %v1319
        %2431 = vmatpush.bf16.msra.mxu0 %v1317
        %2432 = vmatpush.bf16.msra.mxu0 %v1315
        %2433 = vmatpush.bf16.msra.mxu0 %v1313
        %2434 = vmatmul.bf16.gmra.mxu0 %v636
        %v2435 = vpop.f32.mrf.mxu0
        %v2436 = vadd.f32 %v2347, %v2435
        %v2437 = vpop.f32.mrf.mxu0
        %v2438 = vadd.f32 %v2349, %v2437
        %2439 = vmatmul.bf16.gmra.mxu0 %v644
        %v2440 = vpop.f32.mrf.mxu0
        %v2441 = vadd.f32 %v2352, %v2440
        %v2442 = vpop.f32.mrf.mxu0
        %v2443 = vadd.f32 %v2354, %v2442
        %2444 = vmatmul.bf16.gmra.mxu0 %v652
        %v2445 = vpop.f32.mrf.mxu0
        %v2446 = vadd.f32 %v2357, %v2445
        %v2447 = vpop.f32.mrf.mxu0
        %v2448 = vadd.f32 %v2359, %v2447
        %2449 = vmatmul.bf16.gmra.mxu0 %v660
        %v2450 = vpop.f32.mrf.mxu0
        %v2451 = vadd.f32 %v2362, %v2450
        %v2452 = vpop.f32.mrf.mxu0
        %v2453 = vadd.f32 %v2364, %v2452
        %2454 = vmatmul.bf16.gmra.mxu0 %v668
        %v2455 = vpop.f32.mrf.mxu0
        %v2456 = vadd.f32 %v2367, %v2455
        %v2457 = vpop.f32.mrf.mxu0
        %v2458 = vadd.f32 %v2369, %v2457
        %2459 = vmatmul.bf16.gmra.mxu0 %v676
        %v2460 = vpop.f32.mrf.mxu0
        %v2461 = vadd.f32 %v2372, %v2460
        %v2462 = vpop.f32.mrf.mxu0
        %v2463 = vadd.f32 %v2374, %v2462
        %2464 = vmatmul.bf16.gmra.mxu0 %v684
        %v2465 = vpop.f32.mrf.mxu0
        %v2466 = vadd.f32 %v2377, %v2465
        %v2467 = vpop.f32.mrf.mxu0
        %v2468 = vadd.f32 %v2379, %v2467
        %2469 = vmatmul.bf16.gmra.mxu0 %v692
        %v2470 = vpop.f32.mrf.mxu0
        %v2471 = vadd.f32 %v2382, %v2470
        %v2472 = vpop.f32.mrf.mxu0
        %v2473 = vadd.f32 %v2384, %v2472
        %2474 = vmatmul.bf16.gmra.mxu0 %v700
        %v2475 = vpop.f32.mrf.mxu0
        %v2476 = vadd.f32 %v2387, %v2475
        %v2477 = vpop.f32.mrf.mxu0
        %v2478 = vadd.f32 %v2389, %v2477
        %2479 = vmatmul.bf16.gmra.mxu0 %v708
        %v2480 = vpop.f32.mrf.mxu0
        %v2481 = vadd.f32 %v2392, %v2480
        %v2482 = vpop.f32.mrf.mxu0
        %v2483 = vadd.f32 %v2394, %v2482
        %2484 = vmatmul.bf16.gmra.mxu0 %v716
        %v2485 = vpop.f32.mrf.mxu0
        %v2486 = vadd.f32 %v2397, %v2485
        %v2487 = vpop.f32.mrf.mxu0
        %v2488 = vadd.f32 %v2399, %v2487
        %2489 = vmatmul.bf16.gmra.mxu0 %v724
        %v2490 = vpop.f32.mrf.mxu0
        %v2491 = vadd.f32 %v2402, %v2490
        %v2492 = vpop.f32.mrf.mxu0
        %v2493 = vadd.f32 %v2404, %v2492
        %2494 = vmatmul.bf16.gmra.mxu0 %v732
        %v2495 = vpop.f32.mrf.mxu0
        %v2496 = vadd.f32 %v2407, %v2495
        %v2497 = vpop.f32.mrf.mxu0
        %v2498 = vadd.f32 %v2409, %v2497
        %2499 = vmatmul.bf16.gmra.mxu0 %v740
        %v2500 = vpop.f32.mrf.mxu0
        %v2501 = vadd.f32 %v2412, %v2500
        %v2502 = vpop.f32.mrf.mxu0
        %v2503 = vadd.f32 %v2414, %v2502
        %2504 = vmatmul.bf16.gmra.mxu0 %v748
        %v2505 = vpop.f32.mrf.mxu0
        %v2506 = vadd.f32 %v2417, %v2505
        %v2507 = vpop.f32.mrf.mxu0
        %v2508 = vadd.f32 %v2419, %v2507
        %2509 = vmatmul.bf16.gmra.mxu0 %v756
        %v2510 = vpop.f32.mrf.mxu0
        %v2511 = vadd.f32 %v2422, %v2510
        %v2512 = vpop.f32.mrf.mxu0
        %v2513 = vadd.f32 %v2424, %v2512
        %2514 = vdwg.mxu0
        %2515 = vmatpush.bf16.msra.mxu0 %v1343
        %2516 = vmatpush.bf16.msra.mxu0 %v1341
        %2517 = vmatpush.bf16.msra.mxu0 %v1339
        %2518 = vmatpush.bf16.msra.mxu0 %v1337
        %2519 = vmatpush.bf16.msra.mxu0 %v1335
        %2520 = vmatpush.bf16.msra.mxu0 %v1333
        %2521 = vmatpush.bf16.msra.mxu0 %v1331
        %2522 = vmatpush.bf16.msra.mxu0 %v1329
        %2523 = vmatmul.bf16.gmra.mxu0 %v637
        %v2524 = vpop.f32.mrf.mxu0
        %v2525 = vadd.f32 %v2436, %v2524
        %v2526 = vpop.f32.mrf.mxu0
        %v2527 = vadd.f32 %v2438, %v2526
        %2528 = vmatmul.bf16.gmra.mxu0 %v645
        %v2529 = vpop.f32.mrf.mxu0
        %v2530 = vadd.f32 %v2441, %v2529
        %v2531 = vpop.f32.mrf.mxu0
        %v2532 = vadd.f32 %v2443, %v2531
        %2533 = vmatmul.bf16.gmra.mxu0 %v653
        %v2534 = vpop.f32.mrf.mxu0
        %v2535 = vadd.f32 %v2446, %v2534
        %v2536 = vpop.f32.mrf.mxu0
        %v2537 = vadd.f32 %v2448, %v2536
        %2538 = vmatmul.bf16.gmra.mxu0 %v661
        %v2539 = vpop.f32.mrf.mxu0
        %v2540 = vadd.f32 %v2451, %v2539
        %v2541 = vpop.f32.mrf.mxu0
        %v2542 = vadd.f32 %v2453, %v2541
        %2543 = vmatmul.bf16.gmra.mxu0 %v669
        %v2544 = vpop.f32.mrf.mxu0
        %v2545 = vadd.f32 %v2456, %v2544
        %v2546 = vpop.f32.mrf.mxu0
        %v2547 = vadd.f32 %v2458, %v2546
        %2548 = vmatmul.bf16.gmra.mxu0 %v677
        %v2549 = vpop.f32.mrf.mxu0
        %v2550 = vadd.f32 %v2461, %v2549
        %v2551 = vpop.f32.mrf.mxu0
        %v2552 = vadd.f32 %v2463, %v2551
        %2553 = vmatmul.bf16.gmra.mxu0 %v685
        %v2554 = vpop.f32.mrf.mxu0
        %v2555 = vadd.f32 %v2466, %v2554
        %v2556 = vpop.f32.mrf.mxu0
        %v2557 = vadd.f32 %v2468, %v2556
        %2558 = vmatmul.bf16.gmra.mxu0 %v693
        %v2559 = vpop.f32.mrf.mxu0
        %v2560 = vadd.f32 %v2471, %v2559
        %v2561 = vpop.f32.mrf.mxu0
        %v2562 = vadd.f32 %v2473, %v2561
        %2563 = vmatmul.bf16.gmra.mxu0 %v701
        %v2564 = vpop.f32.mrf.mxu0
        %v2565 = vadd.f32 %v2476, %v2564
        %v2566 = vpop.f32.mrf.mxu0
        %v2567 = vadd.f32 %v2478, %v2566
        %2568 = vmatmul.bf16.gmra.mxu0 %v709
        %v2569 = vpop.f32.mrf.mxu0
        %v2570 = vadd.f32 %v2481, %v2569
        %v2571 = vpop.f32.mrf.mxu0
        %v2572 = vadd.f32 %v2483, %v2571
        %2573 = vmatmul.bf16.gmra.mxu0 %v717
        %v2574 = vpop.f32.mrf.mxu0
        %v2575 = vadd.f32 %v2486, %v2574
        %v2576 = vpop.f32.mrf.mxu0
        %v2577 = vadd.f32 %v2488, %v2576
        %2578 = vmatmul.bf16.gmra.mxu0 %v725
        %v2579 = vpop.f32.mrf.mxu0
        %v2580 = vadd.f32 %v2491, %v2579
        %v2581 = vpop.f32.mrf.mxu0
        %v2582 = vadd.f32 %v2493, %v2581
        %2583 = vmatmul.bf16.gmra.mxu0 %v733
        %v2584 = vpop.f32.mrf.mxu0
        %v2585 = vadd.f32 %v2496, %v2584
        %v2586 = vpop.f32.mrf.mxu0
        %v2587 = vadd.f32 %v2498, %v2586
        %2588 = vmatmul.bf16.gmra.mxu0 %v741
        %v2589 = vpop.f32.mrf.mxu0
        %v2590 = vadd.f32 %v2501, %v2589
        %v2591 = vpop.f32.mrf.mxu0
        %v2592 = vadd.f32 %v2503, %v2591
        %2593 = vmatmul.bf16.gmra.mxu0 %v749
        %v2594 = vpop.f32.mrf.mxu0
        %v2595 = vadd.f32 %v2506, %v2594
        %v2596 = vpop.f32.mrf.mxu0
        %v2597 = vadd.f32 %v2508, %v2596
        %2598 = vmatmul.bf16.gmra.mxu0 %v757
        %v2599 = vpop.f32.mrf.mxu0
        %v2600 = vadd.f32 %v2511, %v2599
        %v2601 = vpop.f32.mrf.mxu0
        %v2602 = vadd.f32 %v2513, %v2601
        %2603 = vdwg.mxu0
        %2604 = vmatpush.bf16.msra.mxu0 %v1359
        %2605 = vmatpush.bf16.msra.mxu0 %v1357
        %2606 = vmatpush.bf16.msra.mxu0 %v1355
        %2607 = vmatpush.bf16.msra.mxu0 %v1353
        %2608 = vmatpush.bf16.msra.mxu0 %v1351
        %2609 = vmatpush.bf16.msra.mxu0 %v1349
        %2610 = vmatpush.bf16.msra.mxu0 %v1347
        %2611 = vmatpush.bf16.msra.mxu0 %v1345
        %2612 = vmatmul.bf16.gmra.mxu0 %v638
        %v2613 = vpop.f32.mrf.mxu0
        %v2614 = vadd.f32 %v2525, %v2613
        %v2615 = vpop.f32.mrf.mxu0
        %v2616 = vadd.f32 %v2527, %v2615
        %2617 = vmatmul.bf16.gmra.mxu0 %v646
        %v2618 = vpop.f32.mrf.mxu0
        %v2619 = vadd.f32 %v2530, %v2618
        %v2620 = vpop.f32.mrf.mxu0
        %v2621 = vadd.f32 %v2532, %v2620
        %2622 = vmatmul.bf16.gmra.mxu0 %v654
        %v2623 = vpop.f32.mrf.mxu0
        %v2624 = vadd.f32 %v2535, %v2623
        %v2625 = vpop.f32.mrf.mxu0
        %v2626 = vadd.f32 %v2537, %v2625
        %2627 = vmatmul.bf16.gmra.mxu0 %v662
        %v2628 = vpop.f32.mrf.mxu0
        %v2629 = vadd.f32 %v2540, %v2628
        %v2630 = vpop.f32.mrf.mxu0
        %v2631 = vadd.f32 %v2542, %v2630
        %2632 = vmatmul.bf16.gmra.mxu0 %v670
        %v2633 = vpop.f32.mrf.mxu0
        %v2634 = vadd.f32 %v2545, %v2633
        %v2635 = vpop.f32.mrf.mxu0
        %v2636 = vadd.f32 %v2547, %v2635
        %2637 = vmatmul.bf16.gmra.mxu0 %v678
        %v2638 = vpop.f32.mrf.mxu0
        %v2639 = vadd.f32 %v2550, %v2638
        %v2640 = vpop.f32.mrf.mxu0
        %v2641 = vadd.f32 %v2552, %v2640
        %2642 = vmatmul.bf16.gmra.mxu0 %v686
        %v2643 = vpop.f32.mrf.mxu0
        %v2644 = vadd.f32 %v2555, %v2643
        %v2645 = vpop.f32.mrf.mxu0
        %v2646 = vadd.f32 %v2557, %v2645
        %2647 = vmatmul.bf16.gmra.mxu0 %v694
        %v2648 = vpop.f32.mrf.mxu0
        %v2649 = vadd.f32 %v2560, %v2648
        %v2650 = vpop.f32.mrf.mxu0
        %v2651 = vadd.f32 %v2562, %v2650
        %2652 = vmatmul.bf16.gmra.mxu0 %v702
        %v2653 = vpop.f32.mrf.mxu0
        %v2654 = vadd.f32 %v2565, %v2653
        %v2655 = vpop.f32.mrf.mxu0
        %v2656 = vadd.f32 %v2567, %v2655
        %2657 = vmatmul.bf16.gmra.mxu0 %v710
        %v2658 = vpop.f32.mrf.mxu0
        %v2659 = vadd.f32 %v2570, %v2658
        %v2660 = vpop.f32.mrf.mxu0
        %v2661 = vadd.f32 %v2572, %v2660
        %2662 = vmatmul.bf16.gmra.mxu0 %v718
        %v2663 = vpop.f32.mrf.mxu0
        %v2664 = vadd.f32 %v2575, %v2663
        %v2665 = vpop.f32.mrf.mxu0
        %v2666 = vadd.f32 %v2577, %v2665
        %2667 = vmatmul.bf16.gmra.mxu0 %v726
        %v2668 = vpop.f32.mrf.mxu0
        %v2669 = vadd.f32 %v2580, %v2668
        %v2670 = vpop.f32.mrf.mxu0
        %v2671 = vadd.f32 %v2582, %v2670
        %2672 = vmatmul.bf16.gmra.mxu0 %v734
        %v2673 = vpop.f32.mrf.mxu0
        %v2674 = vadd.f32 %v2585, %v2673
        %v2675 = vpop.f32.mrf.mxu0
        %v2676 = vadd.f32 %v2587, %v2675
        %2677 = vmatmul.bf16.gmra.mxu0 %v742
        %v2678 = vpop.f32.mrf.mxu0
        %v2679 = vadd.f32 %v2590, %v2678
        %v2680 = vpop.f32.mrf.mxu0
        %v2681 = vadd.f32 %v2592, %v2680
        %2682 = vmatmul.bf16.gmra.mxu0 %v750
        %v2683 = vpop.f32.mrf.mxu0
        %v2684 = vadd.f32 %v2595, %v2683
        %v2685 = vpop.f32.mrf.mxu0
        %v2686 = vadd.f32 %v2597, %v2685
        %2687 = vmatmul.bf16.gmra.mxu0 %v758
        %v2688 = vpop.f32.mrf.mxu0
        %v2689 = vadd.f32 %v2600, %v2688
        %v2690 = vpop.f32.mrf.mxu0
        %v2691 = vadd.f32 %v2602, %v2690
        %2692 = vdwg.mxu0
        %2693 = vmatpush.bf16.msra.mxu0 %v1375
        %2694 = vmatpush.bf16.msra.mxu0 %v1373
        %2695 = vmatpush.bf16.msra.mxu0 %v1371
        %2696 = vmatpush.bf16.msra.mxu0 %v1369
        %2697 = vmatpush.bf16.msra.mxu0 %v1367
        %2698 = vmatpush.bf16.msra.mxu0 %v1365
        %2699 = vmatpush.bf16.msra.mxu0 %v1363
        %2700 = vmatpush.bf16.msra.mxu0 %v1361
        %2701 = vmatmul.bf16.gmra.mxu0 %v639
        %v2702 = vpop.f32.mrf.mxu0
        %v2703 = vadd.f32 %v2614, %v2702
        %v2704 = vpop.f32.mrf.mxu0
        %v2705 = vadd.f32 %v2616, %v2704
        %2706 = vmatmul.bf16.gmra.mxu0 %v647
        %v2707 = vpop.f32.mrf.mxu0
        %v2708 = vadd.f32 %v2619, %v2707
        %v2709 = vpop.f32.mrf.mxu0
        %v2710 = vadd.f32 %v2621, %v2709
        %2711 = vmatmul.bf16.gmra.mxu0 %v655
        %v2712 = vpop.f32.mrf.mxu0
        %v2713 = vadd.f32 %v2624, %v2712
        %v2714 = vpop.f32.mrf.mxu0
        %v2715 = vadd.f32 %v2626, %v2714
        %2716 = vmatmul.bf16.gmra.mxu0 %v663
        %v2717 = vpop.f32.mrf.mxu0
        %v2718 = vadd.f32 %v2629, %v2717
        %v2719 = vpop.f32.mrf.mxu0
        %v2720 = vadd.f32 %v2631, %v2719
        %2721 = vmatmul.bf16.gmra.mxu0 %v671
        %v2722 = vpop.f32.mrf.mxu0
        %v2723 = vadd.f32 %v2634, %v2722
        %v2724 = vpop.f32.mrf.mxu0
        %v2725 = vadd.f32 %v2636, %v2724
        %2726 = vmatmul.bf16.gmra.mxu0 %v679
        %v2727 = vpop.f32.mrf.mxu0
        %v2728 = vadd.f32 %v2639, %v2727
        %v2729 = vpop.f32.mrf.mxu0
        %v2730 = vadd.f32 %v2641, %v2729
        %2731 = vmatmul.bf16.gmra.mxu0 %v687
        %v2732 = vpop.f32.mrf.mxu0
        %v2733 = vadd.f32 %v2644, %v2732
        %v2734 = vpop.f32.mrf.mxu0
        %v2735 = vadd.f32 %v2646, %v2734
        %2736 = vmatmul.bf16.gmra.mxu0 %v695
        %v2737 = vpop.f32.mrf.mxu0
        %v2738 = vadd.f32 %v2649, %v2737
        %v2739 = vpop.f32.mrf.mxu0
        %v2740 = vadd.f32 %v2651, %v2739
        %2741 = vmatmul.bf16.gmra.mxu0 %v703
        %v2742 = vpop.f32.mrf.mxu0
        %v2743 = vadd.f32 %v2654, %v2742
        %v2744 = vpop.f32.mrf.mxu0
        %v2745 = vadd.f32 %v2656, %v2744
        %2746 = vmatmul.bf16.gmra.mxu0 %v711
        %v2747 = vpop.f32.mrf.mxu0
        %v2748 = vadd.f32 %v2659, %v2747
        %v2749 = vpop.f32.mrf.mxu0
        %v2750 = vadd.f32 %v2661, %v2749
        %2751 = vmatmul.bf16.gmra.mxu0 %v719
        %v2752 = vpop.f32.mrf.mxu0
        %v2753 = vadd.f32 %v2664, %v2752
        %v2754 = vpop.f32.mrf.mxu0
        %v2755 = vadd.f32 %v2666, %v2754
        %2756 = vmatmul.bf16.gmra.mxu0 %v727
        %v2757 = vpop.f32.mrf.mxu0
        %v2758 = vadd.f32 %v2669, %v2757
        %v2759 = vpop.f32.mrf.mxu0
        %v2760 = vadd.f32 %v2671, %v2759
        %2761 = vmatmul.bf16.gmra.mxu0 %v735
        %v2762 = vpop.f32.mrf.mxu0
        %v2763 = vadd.f32 %v2674, %v2762
        %v2764 = vpop.f32.mrf.mxu0
        %v2765 = vadd.f32 %v2676, %v2764
        %2766 = vmatmul.bf16.gmra.mxu0 %v743
        %v2767 = vpop.f32.mrf.mxu0
        %v2768 = vadd.f32 %v2679, %v2767
        %v2769 = vpop.f32.mrf.mxu0
        %v2770 = vadd.f32 %v2681, %v2769
        %2771 = vmatmul.bf16.gmra.mxu0 %v751
        %v2772 = vpop.f32.mrf.mxu0
        %v2773 = vadd.f32 %v2684, %v2772
        %v2774 = vpop.f32.mrf.mxu0
        %v2775 = vadd.f32 %v2686, %v2774
        %2776 = vmatmul.bf16.gmra.mxu0 %v759
        %v2777 = vpop.f32.mrf.mxu0
        %v2778 = vadd.f32 %v2689, %v2777
        %v2779 = vpop.f32.mrf.mxu0
        %v2780 = vadd.f32 %v2691, %v2779
        %2781 = vdwg.mxu0
        %2782 = vmatpush.bf16.msra.mxu0 %v1391
        %2783 = vmatpush.bf16.msra.mxu0 %v1389
        %2784 = vmatpush.bf16.msra.mxu0 %v1387
        %2785 = vmatpush.bf16.msra.mxu0 %v1385
        %2786 = vmatpush.bf16.msra.mxu0 %v1383
        %2787 = vmatpush.bf16.msra.mxu0 %v1381
        %2788 = vmatpush.bf16.msra.mxu0 %v1379
        %2789 = vmatpush.bf16.msra.mxu0 %v1377
        %2790 = vmatmul.bf16.gmra.mxu0 %v640
        %v2791 = vpop.f32.mrf.mxu0
        %v2792 = vadd.f32 %v2703, %v2791
        %v2793 = vpop.f32.mrf.mxu0
        %v2794 = vadd.f32 %v2705, %v2793
        %2795 = vmatmul.bf16.gmra.mxu0 %v648
        %v2796 = vpop.f32.mrf.mxu0
        %v2797 = vadd.f32 %v2708, %v2796
        %v2798 = vpop.f32.mrf.mxu0
        %v2799 = vadd.f32 %v2710, %v2798
        %2800 = vmatmul.bf16.gmra.mxu0 %v656
        %v2801 = vpop.f32.mrf.mxu0
        %v2802 = vadd.f32 %v2713, %v2801
        %v2803 = vpop.f32.mrf.mxu0
        %v2804 = vadd.f32 %v2715, %v2803
        %2805 = vmatmul.bf16.gmra.mxu0 %v664
        %v2806 = vpop.f32.mrf.mxu0
        %v2807 = vadd.f32 %v2718, %v2806
        %v2808 = vpop.f32.mrf.mxu0
        %v2809 = vadd.f32 %v2720, %v2808
        %2810 = vmatmul.bf16.gmra.mxu0 %v672
        %v2811 = vpop.f32.mrf.mxu0
        %v2812 = vadd.f32 %v2723, %v2811
        %v2813 = vpop.f32.mrf.mxu0
        %v2814 = vadd.f32 %v2725, %v2813
        %2815 = vmatmul.bf16.gmra.mxu0 %v680
        %v2816 = vpop.f32.mrf.mxu0
        %v2817 = vadd.f32 %v2728, %v2816
        %v2818 = vpop.f32.mrf.mxu0
        %v2819 = vadd.f32 %v2730, %v2818
        %2820 = vmatmul.bf16.gmra.mxu0 %v688
        %v2821 = vpop.f32.mrf.mxu0
        %v2822 = vadd.f32 %v2733, %v2821
        %v2823 = vpop.f32.mrf.mxu0
        %v2824 = vadd.f32 %v2735, %v2823
        %2825 = vmatmul.bf16.gmra.mxu0 %v696
        %v2826 = vpop.f32.mrf.mxu0
        %v2827 = vadd.f32 %v2738, %v2826
        %v2828 = vpop.f32.mrf.mxu0
        %v2829 = vadd.f32 %v2740, %v2828
        %2830 = vmatmul.bf16.gmra.mxu0 %v704
        %v2831 = vpop.f32.mrf.mxu0
        %v2832 = vadd.f32 %v2743, %v2831
        %v2833 = vpop.f32.mrf.mxu0
        %v2834 = vadd.f32 %v2745, %v2833
        %2835 = vmatmul.bf16.gmra.mxu0 %v712
        %v2836 = vpop.f32.mrf.mxu0
        %v2837 = vadd.f32 %v2748, %v2836
        %v2838 = vpop.f32.mrf.mxu0
        %v2839 = vadd.f32 %v2750, %v2838
        %2840 = vmatmul.bf16.gmra.mxu0 %v720
        %v2841 = vpop.f32.mrf.mxu0
        %v2842 = vadd.f32 %v2753, %v2841
        %v2843 = vpop.f32.mrf.mxu0
        %v2844 = vadd.f32 %v2755, %v2843
        %2845 = vmatmul.bf16.gmra.mxu0 %v728
        %v2846 = vpop.f32.mrf.mxu0
        %v2847 = vadd.f32 %v2758, %v2846
        %v2848 = vpop.f32.mrf.mxu0
        %v2849 = vadd.f32 %v2760, %v2848
        %2850 = vmatmul.bf16.gmra.mxu0 %v736
        %v2851 = vpop.f32.mrf.mxu0
        %v2852 = vadd.f32 %v2763, %v2851
        %v2853 = vpop.f32.mrf.mxu0
        %v2854 = vadd.f32 %v2765, %v2853
        %2855 = vmatmul.bf16.gmra.mxu0 %v744
        %v2856 = vpop.f32.mrf.mxu0
        %v2857 = vadd.f32 %v2768, %v2856
        %v2858 = vpop.f32.mrf.mxu0
        %v2859 = vadd.f32 %v2770, %v2858
        %2860 = vmatmul.bf16.gmra.mxu0 %v752
        %v2861 = vpop.f32.mrf.mxu0
        %v2862 = vadd.f32 %v2773, %v2861
        %v2863 = vpop.f32.mrf.mxu0
        %v2864 = vadd.f32 %v2775, %v2863
        %2865 = vmatmul.bf16.gmra.mxu0 %v760
        %v2866 = vpop.f32.mrf.mxu0
        %v2867 = vadd.f32 %v2778, %v2866
        %v2868 = vpop.f32.mrf.mxu0
        %v2869 = vadd.f32 %v2780, %v2868
        %2870 = vdwg.mxu0
        %2871 = vmatpush.bf16.msra.mxu0 %v1407
        %2872 = vmatpush.bf16.msra.mxu0 %v1405
        %2873 = vmatpush.bf16.msra.mxu0 %v1403
        %2874 = vmatpush.bf16.msra.mxu0 %v1401
        %2875 = vmatpush.bf16.msra.mxu0 %v1399
        %2876 = vmatpush.bf16.msra.mxu0 %v1397
        %2877 = vmatpush.bf16.msra.mxu0 %v1395
        %2878 = vmatpush.bf16.msra.mxu0 %v1393
        %2879 = vmatmul.bf16.gmra.mxu0 %v641
        %v2880 = vpop.f32.mrf.mxu0
        %v2881 = vadd.f32 %v2792, %v2880
        %v2882 = vpop.f32.mrf.mxu0
        %v2883 = vadd.f32 %v2794, %v2882
        %2884 = vmatmul.bf16.gmra.mxu0 %v649
        %v2885 = vpop.f32.mrf.mxu0
        %v2886 = vadd.f32 %v2797, %v2885
        %v2887 = vpop.f32.mrf.mxu0
        %v2888 = vadd.f32 %v2799, %v2887
        %2889 = vmatmul.bf16.gmra.mxu0 %v657
        %v2890 = vpop.f32.mrf.mxu0
        %v2891 = vadd.f32 %v2802, %v2890
        %v2892 = vpop.f32.mrf.mxu0
        %v2893 = vadd.f32 %v2804, %v2892
        %2894 = vmatmul.bf16.gmra.mxu0 %v665
        %v2895 = vpop.f32.mrf.mxu0
        %v2896 = vadd.f32 %v2807, %v2895
        %v2897 = vpop.f32.mrf.mxu0
        %v2898 = vadd.f32 %v2809, %v2897
        %2899 = vmatmul.bf16.gmra.mxu0 %v673
        %v2900 = vpop.f32.mrf.mxu0
        %v2901 = vadd.f32 %v2812, %v2900
        %v2902 = vpop.f32.mrf.mxu0
        %v2903 = vadd.f32 %v2814, %v2902
        %2904 = vmatmul.bf16.gmra.mxu0 %v681
        %v2905 = vpop.f32.mrf.mxu0
        %v2906 = vadd.f32 %v2817, %v2905
        %v2907 = vpop.f32.mrf.mxu0
        %v2908 = vadd.f32 %v2819, %v2907
        %2909 = vmatmul.bf16.gmra.mxu0 %v689
        %v2910 = vpop.f32.mrf.mxu0
        %v2911 = vadd.f32 %v2822, %v2910
        %v2912 = vpop.f32.mrf.mxu0
        %v2913 = vadd.f32 %v2824, %v2912
        %2914 = vmatmul.bf16.gmra.mxu0 %v697
        %v2915 = vpop.f32.mrf.mxu0
        %v2916 = vadd.f32 %v2827, %v2915
        %v2917 = vpop.f32.mrf.mxu0
        %v2918 = vadd.f32 %v2829, %v2917
        %2919 = vmatmul.bf16.gmra.mxu0 %v705
        %v2920 = vpop.f32.mrf.mxu0
        %v2921 = vadd.f32 %v2832, %v2920
        %v2922 = vpop.f32.mrf.mxu0
        %v2923 = vadd.f32 %v2834, %v2922
        %2924 = vmatmul.bf16.gmra.mxu0 %v713
        %v2925 = vpop.f32.mrf.mxu0
        %v2926 = vadd.f32 %v2837, %v2925
        %v2927 = vpop.f32.mrf.mxu0
        %v2928 = vadd.f32 %v2839, %v2927
        %2929 = vmatmul.bf16.gmra.mxu0 %v721
        %v2930 = vpop.f32.mrf.mxu0
        %v2931 = vadd.f32 %v2842, %v2930
        %v2932 = vpop.f32.mrf.mxu0
        %v2933 = vadd.f32 %v2844, %v2932
        %2934 = vmatmul.bf16.gmra.mxu0 %v729
        %v2935 = vpop.f32.mrf.mxu0
        %v2936 = vadd.f32 %v2847, %v2935
        %v2937 = vpop.f32.mrf.mxu0
        %v2938 = vadd.f32 %v2849, %v2937
        %2939 = vmatmul.bf16.gmra.mxu0 %v737
        %v2940 = vpop.f32.mrf.mxu0
        %v2941 = vadd.f32 %v2852, %v2940
        %v2942 = vpop.f32.mrf.mxu0
        %v2943 = vadd.f32 %v2854, %v2942
        %2944 = vmatmul.bf16.gmra.mxu0 %v745
        %v2945 = vpop.f32.mrf.mxu0
        %v2946 = vadd.f32 %v2857, %v2945
        %v2947 = vpop.f32.mrf.mxu0
        %v2948 = vadd.f32 %v2859, %v2947
        %2949 = vmatmul.bf16.gmra.mxu0 %v753
        %v2950 = vpop.f32.mrf.mxu0
        %v2951 = vadd.f32 %v2862, %v2950
        %v2952 = vpop.f32.mrf.mxu0
        %v2953 = vadd.f32 %v2864, %v2952
        %2954 = vmatmul.bf16.gmra.mxu0 %v761
        %v2955 = vpop.f32.mrf.mxu0
        %v2956 = vadd.f32 %v2867, %v2955
        %v2957 = vpop.f32.mrf.mxu0
        %v2958 = vadd.f32 %v2869, %v2957
        %2959 = vdwg.mxu0
        %v2960 = vadd.f32 %v2169, %v2881
        %2961 = vadd.xlane.f32.xlu0 %v2960
        %v2962 = vpop.xlane.xlu0 %2961
        %v2963 = vadd.f32 %v2171, %v2883
        %2964 = vadd.xlane.f32.xlu0 %v2963
        %v2965 = vpop.xlane.xlu0 %2964
        %v2966 = vadd.f32 %v2174, %v2886
        %2967 = vadd.xlane.f32.xlu0 %v2966
        %v2968 = vpop.xlane.xlu0 %2967
        %v2969 = vadd.f32 %v2176, %v2888
        %2970 = vadd.xlane.f32.xlu0 %v2969
        %v2971 = vpop.xlane.xlu0 %2970
        %v2972 = vadd.f32 %v2179, %v2891
        %2973 = vadd.xlane.f32.xlu0 %v2972
        %v2974 = vpop.xlane.xlu0 %2973
        %v2975 = vadd.f32 %v2181, %v2893
        %2976 = vadd.xlane.f32.xlu0 %v2975
        %v2977 = vpop.xlane.xlu0 %2976
        %v2978 = vadd.f32 %v2184, %v2896
        %2979 = vadd.xlane.f32.xlu0 %v2978
        %v2980 = vpop.xlane.xlu0 %2979
        %v2981 = vadd.f32 %v2186, %v2898
        %2982 = vadd.xlane.f32.xlu0 %v2981
        %v2983 = vpop.xlane.xlu0 %2982
        %v2984 = vadd.f32 %v2189, %v2901
        %2985 = vadd.xlane.f32.xlu0 %v2984
        %v2986 = vpop.xlane.xlu0 %2985
        %v2987 = vadd.f32 %v2191, %v2903
        %2988 = vadd.xlane.f32.xlu0 %v2987
        %v2989 = vpop.xlane.xlu0 %2988
        %v2990 = vadd.f32 %v2194, %v2906
        %2991 = vadd.xlane.f32.xlu0 %v2990
        %v2992 = vpop.xlane.xlu0 %2991
        %v2993 = vadd.f32 %v2196, %v2908
        %2994 = vadd.xlane.f32.xlu0 %v2993
        %v2995 = vpop.xlane.xlu0 %2994
        %v2996 = vadd.f32 %v2199, %v2911
        %2997 = vadd.xlane.f32.xlu0 %v2996
        %v2998 = vpop.xlane.xlu0 %2997
        %v2999 = vadd.f32 %v2201, %v2913
        %3000 = vadd.xlane.f32.xlu0 %v2999
        %v3001 = vpop.xlane.xlu0 %3000
        %v3002 = vadd.f32 %v2204, %v2916
        %3003 = vadd.xlane.f32.xlu0 %v3002
        %v3004 = vpop.xlane.xlu0 %3003
        %v3005 = vadd.f32 %v2206, %v2918
        %3006 = vadd.xlane.f32.xlu0 %v3005
        %v3007 = vpop.xlane.xlu0 %3006
        %v3008 = vadd.f32 %v2209, %v2921
        %3009 = vadd.xlane.f32.xlu0 %v3008
        %v3010 = vpop.xlane.xlu0 %3009
        %v3011 = vadd.f32 %v2211, %v2923
        %3012 = vadd.xlane.f32.xlu0 %v3011
        %v3013 = vpop.xlane.xlu0 %3012
        %v3014 = vadd.f32 %v2214, %v2926
        %3015 = vadd.xlane.f32.xlu0 %v3014
        %v3016 = vpop.xlane.xlu0 %3015
        %v3017 = vadd.f32 %v2216, %v2928
        %3018 = vadd.xlane.f32.xlu0 %v3017
        %v3019 = vpop.xlane.xlu0 %3018
        %v3020 = vadd.f32 %v2219, %v2931
        %3021 = vadd.xlane.f32.xlu0 %v3020
        %v3022 = vpop.xlane.xlu0 %3021
        %v3023 = vadd.f32 %v2221, %v2933
        %3024 = vadd.xlane.f32.xlu0 %v3023
        %v3025 = vpop.xlane.xlu0 %3024
        %v3026 = vadd.f32 %v2224, %v2936
        %3027 = vadd.xlane.f32.xlu0 %v3026
        %v3028 = vpop.xlane.xlu0 %3027
        %v3029 = vadd.f32 %v2226, %v2938
        %3030 = vadd.xlane.f32.xlu0 %v3029
        %v3031 = vpop.xlane.xlu0 %3030
        %v3032 = vadd.f32 %v2229, %v2941
        %3033 = vadd.xlane.f32.xlu0 %v3032
        %v3034 = vpop.xlane.xlu0 %3033
        %v3035 = vadd.f32 %v2231, %v2943
        %3036 = vadd.xlane.f32.xlu0 %v3035
        %v3037 = vpop.xlane.xlu0 %3036
        %v3038 = vadd.f32 %v2234, %v2946
        %3039 = vadd.xlane.f32.xlu0 %v3038
        %v3040 = vpop.xlane.xlu0 %3039
        %v3041 = vadd.f32 %v2236, %v2948
        %3042 = vadd.xlane.f32.xlu0 %v3041
        %v3043 = vpop.xlane.xlu0 %3042
        %v3044 = vadd.f32 %v2239, %v2951
        %3045 = vadd.xlane.f32.xlu0 %v3044
        %v3046 = vpop.xlane.xlu0 %3045
        %v3047 = vadd.f32 %v2241, %v2953
        %3048 = vadd.xlane.f32.xlu0 %v3047
        %v3049 = vpop.xlane.xlu0 %3048
        %v3050 = vadd.f32 %v2244, %v2956
        %3051 = vadd.xlane.f32.xlu0 %v3050
        %v3052 = vpop.xlane.xlu0 %3051
        %v3053 = vadd.f32 %v2246, %v2958
        %3054 = vadd.xlane.f32.xlu0 %v3053
        %v3055 = vpop.xlane.xlu0 %3054
        %v3056 = vrcp.pop 256.0
        %v3057 = vmul.f32 256.0, %v3056
        %v3058 = vsub.f32 1.0, %v3057
        %v3059 = vmul.f32 %v3056, %v3058
        %v3060 = vadd.f32 %v3056, %v3059
        %vm3061 = vweird.f32 %v3056
        %v3062 = vsel %vm3061, %v3056, %v3060
        %v3063 = vmul.f32 %v2962, %v3062
        %v3064 = vmul.f32 %v2965, %v3062
        %v3065 = vmul.f32 %v2968, %v3062
        %v3066 = vmul.f32 %v2971, %v3062
        %v3067 = vmul.f32 %v2974, %v3062
        %v3068 = vmul.f32 %v2977, %v3062
        %v3069 = vmul.f32 %v2980, %v3062
        %v3070 = vmul.f32 %v2983, %v3062
        %v3071 = vmul.f32 %v2986, %v3062
        %v3072 = vmul.f32 %v2989, %v3062
        %v3073 = vmul.f32 %v2992, %v3062
        %v3074 = vmul.f32 %v2995, %v3062
        %v3075 = vmul.f32 %v2998, %v3062
        %v3076 = vmul.f32 %v3001, %v3062
        %v3077 = vmul.f32 %v3004, %v3062
        %v3078 = vmul.f32 %v3007, %v3062
        %v3079 = vmul.f32 %v3010, %v3062
        %v3080 = vmul.f32 %v3013, %v3062
        %v3081 = vmul.f32 %v3016, %v3062
        %v3082 = vmul.f32 %v3019, %v3062
        %v3083 = vmul.f32 %v3022, %v3062
        %v3084 = vmul.f32 %v3025, %v3062
        %v3085 = vmul.f32 %v3028, %v3062
        %v3086 = vmul.f32 %v3031, %v3062
        %v3087 = vmul.f32 %v3034, %v3062
        %v3088 = vmul.f32 %v3037, %v3062
        %v3089 = vmul.f32 %v3040, %v3062
        %v3090 = vmul.f32 %v3043, %v3062
        %v3091 = vmul.f32 %v3046, %v3062
        %v3092 = vmul.f32 %v3049, %v3062
        %v3093 = vmul.f32 %v3052, %v3062
        %v3094 = vmul.f32 %v3055, %v3062
        %v3095 = vsub.f32 %v2169, %v3063
        %v3096 = vsub.f32 %v2881, %v3063
        %v3097 = vsub.f32 %v2171, %v3064
        %v3098 = vsub.f32 %v2883, %v3064
        %v3099 = vsub.f32 %v2174, %v3065
        %v3100 = vsub.f32 %v2886, %v3065
        %v3101 = vsub.f32 %v2176, %v3066
        %v3102 = vsub.f32 %v2888, %v3066
        %v3103 = vsub.f32 %v2179, %v3067
        %v3104 = vsub.f32 %v2891, %v3067
        %v3105 = vsub.f32 %v2181, %v3068
        %v3106 = vsub.f32 %v2893, %v3068
        %v3107 = vsub.f32 %v2184, %v3069
        %v3108 = vsub.f32 %v2896, %v3069
        %v3109 = vsub.f32 %v2186, %v3070
        %v3110 = vsub.f32 %v2898, %v3070
        %v3111 = vsub.f32 %v2189, %v3071
        %v3112 = vsub.f32 %v2901, %v3071
        %v3113 = vsub.f32 %v2191, %v3072
        %v3114 = vsub.f32 %v2903, %v3072
        %v3115 = vsub.f32 %v2194, %v3073
        %v3116 = vsub.f32 %v2906, %v3073
        %v3117 = vsub.f32 %v2196, %v3074
        %v3118 = vsub.f32 %v2908, %v3074
        %v3119 = vsub.f32 %v2199, %v3075
        %v3120 = vsub.f32 %v2911, %v3075
        %v3121 = vsub.f32 %v2201, %v3076
        %v3122 = vsub.f32 %v2913, %v3076
        %v3123 = vsub.f32 %v2204, %v3077
        %v3124 = vsub.f32 %v2916, %v3077
        %v3125 = vsub.f32 %v2206, %v3078
        %v3126 = vsub.f32 %v2918, %v3078
        %v3127 = vsub.f32 %v2209, %v3079
        %v3128 = vsub.f32 %v2921, %v3079
        %v3129 = vsub.f32 %v2211, %v3080
        %v3130 = vsub.f32 %v2923, %v3080
        %v3131 = vsub.f32 %v2214, %v3081
        %v3132 = vsub.f32 %v2926, %v3081
        %v3133 = vsub.f32 %v2216, %v3082
        %v3134 = vsub.f32 %v2928, %v3082
        %v3135 = vsub.f32 %v2219, %v3083
        %v3136 = vsub.f32 %v2931, %v3083
        %v3137 = vsub.f32 %v2221, %v3084
        %v3138 = vsub.f32 %v2933, %v3084
        %v3139 = vsub.f32 %v2224, %v3085
        %v3140 = vsub.f32 %v2936, %v3085
        %v3141 = vsub.f32 %v2226, %v3086
        %v3142 = vsub.f32 %v2938, %v3086
        %v3143 = vsub.f32 %v2229, %v3087
        %v3144 = vsub.f32 %v2941, %v3087
        %v3145 = vsub.f32 %v2231, %v3088
        %v3146 = vsub.f32 %v2943, %v3088
        %v3147 = vsub.f32 %v2234, %v3089
        %v3148 = vsub.f32 %v2946, %v3089
        %v3149 = vsub.f32 %v2236, %v3090
        %v3150 = vsub.f32 %v2948, %v3090
        %v3151 = vsub.f32 %v2239, %v3091
        %v3152 = vsub.f32 %v2951, %v3091
        %v3153 = vsub.f32 %v2241, %v3092
        %v3154 = vsub.f32 %v2953, %v3092
        %v3155 = vsub.f32 %v2244, %v3093
        %v3156 = vsub.f32 %v2956, %v3093
        %v3157 = vsub.f32 %v2246, %v3094
        %v3158 = vsub.f32 %v2958, %v3094
        %v3159 = vmul.f32 %v3095, %v3095
        %v3160 = vmul.f32 %v3096, %v3096
        %v3161 = vmul.f32 %v3097, %v3097
        %v3162 = vmul.f32 %v3098, %v3098
        %v3163 = vmul.f32 %v3099, %v3099
        %v3164 = vmul.f32 %v3100, %v3100
        %v3165 = vmul.f32 %v3101, %v3101
        %v3166 = vmul.f32 %v3102, %v3102
        %v3167 = vmul.f32 %v3103, %v3103
        %v3168 = vmul.f32 %v3104, %v3104
        %v3169 = vmul.f32 %v3105, %v3105
        %v3170 = vmul.f32 %v3106, %v3106
        %v3171 = vmul.f32 %v3107, %v3107
        %v3172 = vmul.f32 %v3108, %v3108
        %v3173 = vmul.f32 %v3109, %v3109
        %v3174 = vmul.f32 %v3110, %v3110
        %v3175 = vmul.f32 %v3111, %v3111
        %v3176 = vmul.f32 %v3112, %v3112
        %v3177 = vmul.f32 %v3113, %v3113
        %v3178 = vmul.f32 %v3114, %v3114
        %v3179 = vmul.f32 %v3115, %v3115
        %v3180 = vmul.f32 %v3116, %v3116
        %v3181 = vmul.f32 %v3117, %v3117
        %v3182 = vmul.f32 %v3118, %v3118
        %v3183 = vmul.f32 %v3119, %v3119
        %v3184 = vmul.f32 %v3120, %v3120
        %v3185 = vmul.f32 %v3121, %v3121
        %v3186 = vmul.f32 %v3122, %v3122
        %v3187 = vmul.f32 %v3123, %v3123
        %v3188 = vmul.f32 %v3124, %v3124
        %v3189 = vmul.f32 %v3125, %v3125
        %v3190 = vmul.f32 %v3126, %v3126
        %v3191 = vmul.f32 %v3127, %v3127
        %v3192 = vmul.f32 %v3128, %v3128
        %v3193 = vmul.f32 %v3129, %v3129
        %v3194 = vmul.f32 %v3130, %v3130
        %v3195 = vmul.f32 %v3131, %v3131
        %v3196 = vmul.f32 %v3132, %v3132
        %v3197 = vmul.f32 %v3133, %v3133
        %v3198 = vmul.f32 %v3134, %v3134
        %v3199 = vmul.f32 %v3135, %v3135
        %v3200 = vmul.f32 %v3136, %v3136
        %v3201 = vmul.f32 %v3137, %v3137
        %v3202 = vmul.f32 %v3138, %v3138
        %v3203 = vmul.f32 %v3139, %v3139
        %v3204 = vmul.f32 %v3140, %v3140
        %v3205 = vmul.f32 %v3141, %v3141
        %v3206 = vmul.f32 %v3142, %v3142
        %v3207 = vmul.f32 %v3143, %v3143
        %v3208 = vmul.f32 %v3144, %v3144
        %v3209 = vmul.f32 %v3145, %v3145
        %v3210 = vmul.f32 %v3146, %v3146
        %v3211 = vmul.f32 %v3147, %v3147
        %v3212 = vmul.f32 %v3148, %v3148
        %v3213 = vmul.f32 %v3149, %v3149
        %v3214 = vmul.f32 %v3150, %v3150
        %v3215 = vmul.f32 %v3151, %v3151
        %v3216 = vmul.f32 %v3152, %v3152
        %v3217 = vmul.f32 %v3153, %v3153
        %v3218 = vmul.f32 %v3154, %v3154
        %v3219 = vmul.f32 %v3155, %v3155
        %v3220 = vmul.f32 %v3156, %v3156
        %v3221 = vmul.f32 %v3157, %v3157
        %v3222 = vmul.f32 %v3158, %v3158
        %v3223 = vadd.f32 %v3159, %v3160
        %3224 = vadd.xlane.f32.xlu0 %v3223
        %v3225 = vpop.xlane.xlu0 %3224
        %v3226 = vadd.f32 %v3161, %v3162
        %3227 = vadd.xlane.f32.xlu0 %v3226
        %v3228 = vpop.xlane.xlu0 %3227
        %v3229 = vadd.f32 %v3163, %v3164
        %3230 = vadd.xlane.f32.xlu0 %v3229
        %v3231 = vpop.xlane.xlu0 %3230
        %v3232 = vadd.f32 %v3165, %v3166
        %3233 = vadd.xlane.f32.xlu0 %v3232
        %v3234 = vpop.xlane.xlu0 %3233
        %v3235 = vadd.f32 %v3167, %v3168
        %3236 = vadd.xlane.f32.xlu0 %v3235
        %v3237 = vpop.xlane.xlu0 %3236
        %v3238 = vadd.f32 %v3169, %v3170
        %3239 = vadd.xlane.f32.xlu0 %v3238
        %v3240 = vpop.xlane.xlu0 %3239
        %v3241 = vadd.f32 %v3171, %v3172
        %3242 = vadd.xlane.f32.xlu0 %v3241
        %v3243 = vpop.xlane.xlu0 %3242
        %v3244 = vadd.f32 %v3173, %v3174
        %3245 = vadd.xlane.f32.xlu0 %v3244
        %v3246 = vpop.xlane.xlu0 %3245
        %v3247 = vadd.f32 %v3175, %v3176
        %3248 = vadd.xlane.f32.xlu0 %v3247
        %v3249 = vpop.xlane.xlu0 %3248
        %v3250 = vadd.f32 %v3177, %v3178
        %3251 = vadd.xlane.f32.xlu0 %v3250
        %v3252 = vpop.xlane.xlu0 %3251
        %v3253 = vadd.f32 %v3179, %v3180
        %3254 = vadd.xlane.f32.xlu0 %v3253
        %v3255 = vpop.xlane.xlu0 %3254
        %v3256 = vadd.f32 %v3181, %v3182
        %3257 = vadd.xlane.f32.xlu0 %v3256
        %v3258 = vpop.xlane.xlu0 %3257
        %v3259 = vadd.f32 %v3183, %v3184
        %3260 = vadd.xlane.f32.xlu0 %v3259
        %v3261 = vpop.xlane.xlu0 %3260
        %v3262 = vadd.f32 %v3185, %v3186
        %3263 = vadd.xlane.f32.xlu0 %v3262
        %v3264 = vpop.xlane.xlu0 %3263
        %v3265 = vadd.f32 %v3187, %v3188
        %3266 = vadd.xlane.f32.xlu0 %v3265
        %v3267 = vpop.xlane.xlu0 %3266
        %v3268 = vadd.f32 %v3189, %v3190
        %3269 = vadd.xlane.f32.xlu0 %v3268
        %v3270 = vpop.xlane.xlu0 %3269
        %v3271 = vadd.f32 %v3191, %v3192
        %3272 = vadd.xlane.f32.xlu0 %v3271
        %v3273 = vpop.xlane.xlu0 %3272
        %v3274 = vadd.f32 %v3193, %v3194
        %3275 = vadd.xlane.f32.xlu0 %v3274
        %v3276 = vpop.xlane.xlu0 %3275
        %v3277 = vadd.f32 %v3195, %v3196
        %3278 = vadd.xlane.f32.xlu0 %v3277
        %v3279 = vpop.xlane.xlu0 %3278
        %v3280 = vadd.f32 %v3197, %v3198
        %3281 = vadd.xlane.f32.xlu0 %v3280
        %v3282 = vpop.xlane.xlu0 %3281
        %v3283 = vadd.f32 %v3199, %v3200
        %3284 = vadd.xlane.f32.xlu0 %v3283
        %v3285 = vpop.xlane.xlu0 %3284
        %v3286 = vadd.f32 %v3201, %v3202
        %3287 = vadd.xlane.f32.xlu0 %v3286
        %v3288 = vpop.xlane.xlu0 %3287
        %v3289 = vadd.f32 %v3203, %v3204
        %3290 = vadd.xlane.f32.xlu0 %v3289
        %v3291 = vpop.xlane.xlu0 %3290
        %v3292 = vadd.f32 %v3205, %v3206
        %3293 = vadd.xlane.f32.xlu0 %v3292
        %v3294 = vpop.xlane.xlu0 %3293
        %v3295 = vadd.f32 %v3207, %v3208
        %3296 = vadd.xlane.f32.xlu0 %v3295
        %v3297 = vpop.xlane.xlu0 %3296
        %v3298 = vadd.f32 %v3209, %v3210
        %3299 = vadd.xlane.f32.xlu0 %v3298
        %v3300 = vpop.xlane.xlu0 %3299
        %v3301 = vadd.f32 %v3211, %v3212
        %3302 = vadd.xlane.f32.xlu0 %v3301
        %v3303 = vpop.xlane.xlu0 %3302
        %v3304 = vadd.f32 %v3213, %v3214
        %3305 = vadd.xlane.f32.xlu0 %v3304
        %v3306 = vpop.xlane.xlu0 %3305
        %v3307 = vadd.f32 %v3215, %v3216
        %3308 = vadd.xlane.f32.xlu0 %v3307
        %v3309 = vpop.xlane.xlu0 %3308
        %v3310 = vadd.f32 %v3217, %v3218
        %3311 = vadd.xlane.f32.xlu0 %v3310
        %v3312 = vpop.xlane.xlu0 %3311
        %v3313 = vadd.f32 %v3219, %v3220
        %3314 = vadd.xlane.f32.xlu0 %v3313
        %v3315 = vpop.xlane.xlu0 %3314
        %v3316 = vadd.f32 %v3221, %v3222
        %3317 = vadd.xlane.f32.xlu0 %v3316
        %v3318 = vpop.xlane.xlu0 %3317
        %v3319 = vmul.f32 %v3225, %v3062
        %v3320 = vmul.f32 %v3228, %v3062
        %v3321 = vmul.f32 %v3231, %v3062
        %v3322 = vmul.f32 %v3234, %v3062
        %v3323 = vmul.f32 %v3237, %v3062
        %v3324 = vmul.f32 %v3240, %v3062
        %v3325 = vmul.f32 %v3243, %v3062
        %v3326 = vmul.f32 %v3246, %v3062
        %v3327 = vmul.f32 %v3249, %v3062
        %v3328 = vmul.f32 %v3252, %v3062
        %v3329 = vmul.f32 %v3255, %v3062
        %v3330 = vmul.f32 %v3258, %v3062
        %v3331 = vmul.f32 %v3261, %v3062
        %v3332 = vmul.f32 %v3264, %v3062
        %v3333 = vmul.f32 %v3267, %v3062
        %v3334 = vmul.f32 %v3270, %v3062
        %v3335 = vmul.f32 %v3273, %v3062
        %v3336 = vmul.f32 %v3276, %v3062
        %v3337 = vmul.f32 %v3279, %v3062
        %v3338 = vmul.f32 %v3282, %v3062
        %v3339 = vmul.f32 %v3285, %v3062
        %v3340 = vmul.f32 %v3288, %v3062
        %v3341 = vmul.f32 %v3291, %v3062
        %v3342 = vmul.f32 %v3294, %v3062
        %v3343 = vmul.f32 %v3297, %v3062
        %v3344 = vmul.f32 %v3300, %v3062
        %v3345 = vmul.f32 %v3303, %v3062
        %v3346 = vmul.f32 %v3306, %v3062
        %v3347 = vmul.f32 %v3309, %v3062
        %v3348 = vmul.f32 %v3312, %v3062
        %v3349 = vmul.f32 %v3315, %v3062
        %v3350 = vmul.f32 %v3318, %v3062
        %v3351 = vadd.f32 %v3319, 1e-05
        %v3352 = vadd.f32 %v3320, 1e-05
        %v3353 = vadd.f32 %v3321, 1e-05
        %v3354 = vadd.f32 %v3322, 1e-05
        %v3355 = vadd.f32 %v3323, 1e-05
        %v3356 = vadd.f32 %v3324, 1e-05
        %v3357 = vadd.f32 %v3325, 1e-05
        %v3358 = vadd.f32 %v3326, 1e-05
        %v3359 = vadd.f32 %v3327, 1e-05
        %v3360 = vadd.f32 %v3328, 1e-05
        %v3361 = vadd.f32 %v3329, 1e-05
        %v3362 = vadd.f32 %v3330, 1e-05
        %v3363 = vadd.f32 %v3331, 1e-05
        %v3364 = vadd.f32 %v3332, 1e-05
        %v3365 = vadd.f32 %v3333, 1e-05
        %v3366 = vadd.f32 %v3334, 1e-05
        %v3367 = vadd.f32 %v3335, 1e-05
        %v3368 = vadd.f32 %v3336, 1e-05
        %v3369 = vadd.f32 %v3337, 1e-05
        %v3370 = vadd.f32 %v3338, 1e-05
        %v3371 = vadd.f32 %v3339, 1e-05
        %v3372 = vadd.f32 %v3340, 1e-05
        %v3373 = vadd.f32 %v3341, 1e-05
        %v3374 = vadd.f32 %v3342, 1e-05
        %v3375 = vadd.f32 %v3343, 1e-05
        %v3376 = vadd.f32 %v3344, 1e-05
        %v3377 = vadd.f32 %v3345, 1e-05
        %v3378 = vadd.f32 %v3346, 1e-05
        %v3379 = vadd.f32 %v3347, 1e-05
        %v3380 = vadd.f32 %v3348, 1e-05
        %v3381 = vadd.f32 %v3349, 1e-05
        %v3382 = vadd.f32 %v3350, 1e-05
        %v3383 = vrsqrt.pop %v3351
        %v3384 = vmul.f32 %v3383, %v3351
        %v3385 = vmul.f32 %v3384, %v3383
        %v3386 = vmul.f32 0.5, %v3385
        %v3387 = vsub.f32 1.5, %v3386
        %v3388 = vmul.f32 %v3383, %v3387
        %vm3389 = vweird.f32 %v3351
        %vm3390 = vweird.f32 %v3383
        %vm3391 = vmor %vm3389, %vm3390
        %v3392 = vsel %vm3391, %v3383, %v3388
        %v3393 = vrsqrt.pop %v3352
        %v3394 = vmul.f32 %v3393, %v3352
        %v3395 = vmul.f32 %v3394, %v3393
        %v3396 = vmul.f32 0.5, %v3395
        %v3397 = vsub.f32 1.5, %v3396
        %v3398 = vmul.f32 %v3393, %v3397
        %vm3399 = vweird.f32 %v3352
        %vm3400 = vweird.f32 %v3393
        %vm3401 = vmor %vm3399, %vm3400
        %v3402 = vsel %vm3401, %v3393, %v3398
        %v3403 = vrsqrt.pop %v3353
        %v3404 = vmul.f32 %v3403, %v3353
        %v3405 = vmul.f32 %v3404, %v3403
        %v3406 = vmul.f32 0.5, %v3405
        %v3407 = vsub.f32 1.5, %v3406
        %v3408 = vmul.f32 %v3403, %v3407
        %vm3409 = vweird.f32 %v3353
        %vm3410 = vweird.f32 %v3403
        %vm3411 = vmor %vm3409, %vm3410
        %v3412 = vsel %vm3411, %v3403, %v3408
        %v3413 = vrsqrt.pop %v3354
        %v3414 = vmul.f32 %v3413, %v3354
        %v3415 = vmul.f32 %v3414, %v3413
        %v3416 = vmul.f32 0.5, %v3415
        %v3417 = vsub.f32 1.5, %v3416
        %v3418 = vmul.f32 %v3413, %v3417
        %vm3419 = vweird.f32 %v3354
        %vm3420 = vweird.f32 %v3413
        %vm3421 = vmor %vm3419, %vm3420
        %v3422 = vsel %vm3421, %v3413, %v3418
        %v3423 = vrsqrt.pop %v3355
        %v3424 = vmul.f32 %v3423, %v3355
        %v3425 = vmul.f32 %v3424, %v3423
        %v3426 = vmul.f32 0.5, %v3425
        %v3427 = vsub.f32 1.5, %v3426
        %v3428 = vmul.f32 %v3423, %v3427
        %vm3429 = vweird.f32 %v3355
        %vm3430 = vweird.f32 %v3423
        %vm3431 = vmor %vm3429, %vm3430
        %v3432 = vsel %vm3431, %v3423, %v3428
        %v3433 = vrsqrt.pop %v3356
        %v3434 = vmul.f32 %v3433, %v3356
        %v3435 = vmul.f32 %v3434, %v3433
        %v3436 = vmul.f32 0.5, %v3435
        %v3437 = vsub.f32 1.5, %v3436
        %v3438 = vmul.f32 %v3433, %v3437
        %vm3439 = vweird.f32 %v3356
        %vm3440 = vweird.f32 %v3433
        %vm3441 = vmor %vm3439, %vm3440
        %v3442 = vsel %vm3441, %v3433, %v3438
        %v3443 = vrsqrt.pop %v3357
        %v3444 = vmul.f32 %v3443, %v3357
        %v3445 = vmul.f32 %v3444, %v3443
        %v3446 = vmul.f32 0.5, %v3445
        %v3447 = vsub.f32 1.5, %v3446
        %v3448 = vmul.f32 %v3443, %v3447
        %vm3449 = vweird.f32 %v3357
        %vm3450 = vweird.f32 %v3443
        %vm3451 = vmor %vm3449, %vm3450
        %v3452 = vsel %vm3451, %v3443, %v3448
        %v3453 = vrsqrt.pop %v3358
        %v3454 = vmul.f32 %v3453, %v3358
        %v3455 = vmul.f32 %v3454, %v3453
        %v3456 = vmul.f32 0.5, %v3455
        %v3457 = vsub.f32 1.5, %v3456
        %v3458 = vmul.f32 %v3453, %v3457
        %vm3459 = vweird.f32 %v3358
        %vm3460 = vweird.f32 %v3453
        %vm3461 = vmor %vm3459, %vm3460
        %v3462 = vsel %vm3461, %v3453, %v3458
        %v3463 = vrsqrt.pop %v3359
        %v3464 = vmul.f32 %v3463, %v3359
        %v3465 = vmul.f32 %v3464, %v3463
        %v3466 = vmul.f32 0.5, %v3465
        %v3467 = vsub.f32 1.5, %v3466
        %v3468 = vmul.f32 %v3463, %v3467
        %vm3469 = vweird.f32 %v3359
        %vm3470 = vweird.f32 %v3463
        %vm3471 = vmor %vm3469, %vm3470
        %v3472 = vsel %vm3471, %v3463, %v3468
        %v3473 = vrsqrt.pop %v3360
        %v3474 = vmul.f32 %v3473, %v3360
        %v3475 = vmul.f32 %v3474, %v3473
        %v3476 = vmul.f32 0.5, %v3475
        %v3477 = vsub.f32 1.5, %v3476
        %v3478 = vmul.f32 %v3473, %v3477
        %vm3479 = vweird.f32 %v3360
        %vm3480 = vweird.f32 %v3473
        %vm3481 = vmor %vm3479, %vm3480
        %v3482 = vsel %vm3481, %v3473, %v3478
        %v3483 = vrsqrt.pop %v3361
        %v3484 = vmul.f32 %v3483, %v3361
        %v3485 = vmul.f32 %v3484, %v3483
        %v3486 = vmul.f32 0.5, %v3485
        %v3487 = vsub.f32 1.5, %v3486
        %v3488 = vmul.f32 %v3483, %v3487
        %vm3489 = vweird.f32 %v3361
        %vm3490 = vweird.f32 %v3483
        %vm3491 = vmor %vm3489, %vm3490
        %v3492 = vsel %vm3491, %v3483, %v3488
        %v3493 = vrsqrt.pop %v3362
        %v3494 = vmul.f32 %v3493, %v3362
        %v3495 = vmul.f32 %v3494, %v3493
        %v3496 = vmul.f32 0.5, %v3495
        %v3497 = vsub.f32 1.5, %v3496
        %v3498 = vmul.f32 %v3493, %v3497
        %vm3499 = vweird.f32 %v3362
        %vm3500 = vweird.f32 %v3493
        %vm3501 = vmor %vm3499, %vm3500
        %v3502 = vsel %vm3501, %v3493, %v3498
        %v3503 = vrsqrt.pop %v3363
        %v3504 = vmul.f32 %v3503, %v3363
        %v3505 = vmul.f32 %v3504, %v3503
        %v3506 = vmul.f32 0.5, %v3505
        %v3507 = vsub.f32 1.5, %v3506
        %v3508 = vmul.f32 %v3503, %v3507
        %vm3509 = vweird.f32 %v3363
        %vm3510 = vweird.f32 %v3503
        %vm3511 = vmor %vm3509, %vm3510
        %v3512 = vsel %vm3511, %v3503, %v3508
        %v3513 = vrsqrt.pop %v3364
        %v3514 = vmul.f32 %v3513, %v3364
        %v3515 = vmul.f32 %v3514, %v3513
        %v3516 = vmul.f32 0.5, %v3515
        %v3517 = vsub.f32 1.5, %v3516
        %v3518 = vmul.f32 %v3513, %v3517
        %vm3519 = vweird.f32 %v3364
        %vm3520 = vweird.f32 %v3513
        %vm3521 = vmor %vm3519, %vm3520
        %v3522 = vsel %vm3521, %v3513, %v3518
        %v3523 = vrsqrt.pop %v3365
        %v3524 = vmul.f32 %v3523, %v3365
        %v3525 = vmul.f32 %v3524, %v3523
        %v3526 = vmul.f32 0.5, %v3525
        %v3527 = vsub.f32 1.5, %v3526
        %v3528 = vmul.f32 %v3523, %v3527
        %vm3529 = vweird.f32 %v3365
        %vm3530 = vweird.f32 %v3523
        %vm3531 = vmor %vm3529, %vm3530
        %v3532 = vsel %vm3531, %v3523, %v3528
        %v3533 = vrsqrt.pop %v3366
        %v3534 = vmul.f32 %v3533, %v3366
        %v3535 = vmul.f32 %v3534, %v3533
        %v3536 = vmul.f32 0.5, %v3535
        %v3537 = vsub.f32 1.5, %v3536
        %v3538 = vmul.f32 %v3533, %v3537
        %vm3539 = vweird.f32 %v3366
        %vm3540 = vweird.f32 %v3533
        %vm3541 = vmor %vm3539, %vm3540
        %v3542 = vsel %vm3541, %v3533, %v3538
        %v3543 = vrsqrt.pop %v3367
        %v3544 = vmul.f32 %v3543, %v3367
        %v3545 = vmul.f32 %v3544, %v3543
        %v3546 = vmul.f32 0.5, %v3545
        %v3547 = vsub.f32 1.5, %v3546
        %v3548 = vmul.f32 %v3543, %v3547
        %vm3549 = vweird.f32 %v3367
        %vm3550 = vweird.f32 %v3543
        %vm3551 = vmor %vm3549, %vm3550
        %v3552 = vsel %vm3551, %v3543, %v3548
        %v3553 = vrsqrt.pop %v3368
        %v3554 = vmul.f32 %v3553, %v3368
        %v3555 = vmul.f32 %v3554, %v3553
        %v3556 = vmul.f32 0.5, %v3555
        %v3557 = vsub.f32 1.5, %v3556
        %v3558 = vmul.f32 %v3553, %v3557
        %vm3559 = vweird.f32 %v3368
        %vm3560 = vweird.f32 %v3553
        %vm3561 = vmor %vm3559, %vm3560
        %v3562 = vsel %vm3561, %v3553, %v3558
        %v3563 = vrsqrt.pop %v3369
        %v3564 = vmul.f32 %v3563, %v3369
        %v3565 = vmul.f32 %v3564, %v3563
        %v3566 = vmul.f32 0.5, %v3565
        %v3567 = vsub.f32 1.5, %v3566
        %v3568 = vmul.f32 %v3563, %v3567
        %vm3569 = vweird.f32 %v3369
        %vm3570 = vweird.f32 %v3563
        %vm3571 = vmor %vm3569, %vm3570
        %v3572 = vsel %vm3571, %v3563, %v3568
        %v3573 = vrsqrt.pop %v3370
        %v3574 = vmul.f32 %v3573, %v3370
        %v3575 = vmul.f32 %v3574, %v3573
        %v3576 = vmul.f32 0.5, %v3575
        %v3577 = vsub.f32 1.5, %v3576
        %v3578 = vmul.f32 %v3573, %v3577
        %vm3579 = vweird.f32 %v3370
        %vm3580 = vweird.f32 %v3573
        %vm3581 = vmor %vm3579, %vm3580
        %v3582 = vsel %vm3581, %v3573, %v3578
        %v3583 = vrsqrt.pop %v3371
        %v3584 = vmul.f32 %v3583, %v3371
        %v3585 = vmul.f32 %v3584, %v3583
        %v3586 = vmul.f32 0.5, %v3585
        %v3587 = vsub.f32 1.5, %v3586
        %v3588 = vmul.f32 %v3583, %v3587
        %vm3589 = vweird.f32 %v3371
        %vm3590 = vweird.f32 %v3583
        %vm3591 = vmor %vm3589, %vm3590
        %v3592 = vsel %vm3591, %v3583, %v3588
        %v3593 = vrsqrt.pop %v3372
        %v3594 = vmul.f32 %v3593, %v3372
        %v3595 = vmul.f32 %v3594, %v3593
        %v3596 = vmul.f32 0.5, %v3595
        %v3597 = vsub.f32 1.5, %v3596
        %v3598 = vmul.f32 %v3593, %v3597
        %vm3599 = vweird.f32 %v3372
        %vm3600 = vweird.f32 %v3593
        %vm3601 = vmor %vm3599, %vm3600
        %v3602 = vsel %vm3601, %v3593, %v3598
        %v3603 = vrsqrt.pop %v3373
        %v3604 = vmul.f32 %v3603, %v3373
        %v3605 = vmul.f32 %v3604, %v3603
        %v3606 = vmul.f32 0.5, %v3605
        %v3607 = vsub.f32 1.5, %v3606
        %v3608 = vmul.f32 %v3603, %v3607
        %vm3609 = vweird.f32 %v3373
        %vm3610 = vweird.f32 %v3603
        %vm3611 = vmor %vm3609, %vm3610
        %v3612 = vsel %vm3611, %v3603, %v3608
        %v3613 = vrsqrt.pop %v3374
        %v3614 = vmul.f32 %v3613, %v3374
        %v3615 = vmul.f32 %v3614, %v3613
        %v3616 = vmul.f32 0.5, %v3615
        %v3617 = vsub.f32 1.5, %v3616
        %v3618 = vmul.f32 %v3613, %v3617
        %vm3619 = vweird.f32 %v3374
        %vm3620 = vweird.f32 %v3613
        %vm3621 = vmor %vm3619, %vm3620
        %v3622 = vsel %vm3621, %v3613, %v3618
        %v3623 = vrsqrt.pop %v3375
        %v3624 = vmul.f32 %v3623, %v3375
        %v3625 = vmul.f32 %v3624, %v3623
        %v3626 = vmul.f32 0.5, %v3625
        %v3627 = vsub.f32 1.5, %v3626
        %v3628 = vmul.f32 %v3623, %v3627
        %vm3629 = vweird.f32 %v3375
        %vm3630 = vweird.f32 %v3623
        %vm3631 = vmor %vm3629, %vm3630
        %v3632 = vsel %vm3631, %v3623, %v3628
        %v3633 = vrsqrt.pop %v3376
        %v3634 = vmul.f32 %v3633, %v3376
        %v3635 = vmul.f32 %v3634, %v3633
        %v3636 = vmul.f32 0.5, %v3635
        %v3637 = vsub.f32 1.5, %v3636
        %v3638 = vmul.f32 %v3633, %v3637
        %vm3639 = vweird.f32 %v3376
        %vm3640 = vweird.f32 %v3633
        %vm3641 = vmor %vm3639, %vm3640
        %v3642 = vsel %vm3641, %v3633, %v3638
        %v3643 = vrsqrt.pop %v3377
        %v3644 = vmul.f32 %v3643, %v3377
        %v3645 = vmul.f32 %v3644, %v3643
        %v3646 = vmul.f32 0.5, %v3645
        %v3647 = vsub.f32 1.5, %v3646
        %v3648 = vmul.f32 %v3643, %v3647
        %vm3649 = vweird.f32 %v3377
        %vm3650 = vweird.f32 %v3643
        %vm3651 = vmor %vm3649, %vm3650
        %v3652 = vsel %vm3651, %v3643, %v3648
        %v3653 = vrsqrt.pop %v3378
        %v3654 = vmul.f32 %v3653, %v3378
        %v3655 = vmul.f32 %v3654, %v3653
        %v3656 = vmul.f32 0.5, %v3655
        %v3657 = vsub.f32 1.5, %v3656
        %v3658 = vmul.f32 %v3653, %v3657
        %vm3659 = vweird.f32 %v3378
        %vm3660 = vweird.f32 %v3653
        %vm3661 = vmor %vm3659, %vm3660
        %v3662 = vsel %vm3661, %v3653, %v3658
        %v3663 = vrsqrt.pop %v3379
        %v3664 = vmul.f32 %v3663, %v3379
        %v3665 = vmul.f32 %v3664, %v3663
        %v3666 = vmul.f32 0.5, %v3665
        %v3667 = vsub.f32 1.5, %v3666
        %v3668 = vmul.f32 %v3663, %v3667
        %vm3669 = vweird.f32 %v3379
        %vm3670 = vweird.f32 %v3663
        %vm3671 = vmor %vm3669, %vm3670
        %v3672 = vsel %vm3671, %v3663, %v3668
        %v3673 = vrsqrt.pop %v3380
        %v3674 = vmul.f32 %v3673, %v3380
        %v3675 = vmul.f32 %v3674, %v3673
        %v3676 = vmul.f32 0.5, %v3675
        %v3677 = vsub.f32 1.5, %v3676
        %v3678 = vmul.f32 %v3673, %v3677
        %vm3679 = vweird.f32 %v3380
        %vm3680 = vweird.f32 %v3673
        %vm3681 = vmor %vm3679, %vm3680
        %v3682 = vsel %vm3681, %v3673, %v3678
        %v3683 = vrsqrt.pop %v3381
        %v3684 = vmul.f32 %v3683, %v3381
        %v3685 = vmul.f32 %v3684, %v3683
        %v3686 = vmul.f32 0.5, %v3685
        %v3687 = vsub.f32 1.5, %v3686
        %v3688 = vmul.f32 %v3683, %v3687
        %vm3689 = vweird.f32 %v3381
        %vm3690 = vweird.f32 %v3683
        %vm3691 = vmor %vm3689, %vm3690
        %v3692 = vsel %vm3691, %v3683, %v3688
        %v3693 = vrsqrt.pop %v3382
        %v3694 = vmul.f32 %v3693, %v3382
        %v3695 = vmul.f32 %v3694, %v3693
        %v3696 = vmul.f32 0.5, %v3695
        %v3697 = vsub.f32 1.5, %v3696
        %v3698 = vmul.f32 %v3693, %v3697
        %vm3699 = vweird.f32 %v3382
        %vm3700 = vweird.f32 %v3693
        %vm3701 = vmor %vm3699, %vm3700
        %v3702 = vsel %vm3701, %v3693, %v3698
        %v3703 = vmul.f32 %v3095, %v3392
        %v3704 = vmul.f32 %v3096, %v3392
        %v3705 = vmul.f32 %v3097, %v3402
        %v3706 = vmul.f32 %v3098, %v3402
        %v3707 = vmul.f32 %v3099, %v3412
        %v3708 = vmul.f32 %v3100, %v3412
        %v3709 = vmul.f32 %v3101, %v3422
        %v3710 = vmul.f32 %v3102, %v3422
        %v3711 = vmul.f32 %v3103, %v3432
        %v3712 = vmul.f32 %v3104, %v3432
        %v3713 = vmul.f32 %v3105, %v3442
        %v3714 = vmul.f32 %v3106, %v3442
        %v3715 = vmul.f32 %v3107, %v3452
        %v3716 = vmul.f32 %v3108, %v3452
        %v3717 = vmul.f32 %v3109, %v3462
        %v3718 = vmul.f32 %v3110, %v3462
        %v3719 = vmul.f32 %v3111, %v3472
        %v3720 = vmul.f32 %v3112, %v3472
        %v3721 = vmul.f32 %v3113, %v3482
        %v3722 = vmul.f32 %v3114, %v3482
        %v3723 = vmul.f32 %v3115, %v3492
        %v3724 = vmul.f32 %v3116, %v3492
        %v3725 = vmul.f32 %v3117, %v3502
        %v3726 = vmul.f32 %v3118, %v3502
        %v3727 = vmul.f32 %v3119, %v3512
        %v3728 = vmul.f32 %v3120, %v3512
        %v3729 = vmul.f32 %v3121, %v3522
        %v3730 = vmul.f32 %v3122, %v3522
        %v3731 = vmul.f32 %v3123, %v3532
        %v3732 = vmul.f32 %v3124, %v3532
        %v3733 = vmul.f32 %v3125, %v3542
        %v3734 = vmul.f32 %v3126, %v3542
        %v3735 = vmul.f32 %v3127, %v3552
        %v3736 = vmul.f32 %v3128, %v3552
        %v3737 = vmul.f32 %v3129, %v3562
        %v3738 = vmul.f32 %v3130, %v3562
        %v3739 = vmul.f32 %v3131, %v3572
        %v3740 = vmul.f32 %v3132, %v3572
        %v3741 = vmul.f32 %v3133, %v3582
        %v3742 = vmul.f32 %v3134, %v3582
        %v3743 = vmul.f32 %v3135, %v3592
        %v3744 = vmul.f32 %v3136, %v3592
        %v3745 = vmul.f32 %v3137, %v3602
        %v3746 = vmul.f32 %v3138, %v3602
        %v3747 = vmul.f32 %v3139, %v3612
        %v3748 = vmul.f32 %v3140, %v3612
        %v3749 = vmul.f32 %v3141, %v3622
        %v3750 = vmul.f32 %v3142, %v3622
        %v3751 = vmul.f32 %v3143, %v3632
        %v3752 = vmul.f32 %v3144, %v3632
        %v3753 = vmul.f32 %v3145, %v3642
        %v3754 = vmul.f32 %v3146, %v3642
        %v3755 = vmul.f32 %v3147, %v3652
        %v3756 = vmul.f32 %v3148, %v3652
        %v3757 = vmul.f32 %v3149, %v3662
        %v3758 = vmul.f32 %v3150, %v3662
        %v3759 = vmul.f32 %v3151, %v3672
        %v3760 = vmul.f32 %v3152, %v3672
        %v3761 = vmul.f32 %v3153, %v3682
        %v3762 = vmul.f32 %v3154, %v3682
        %v3763 = vmul.f32 %v3155, %v3692
        %v3764 = vmul.f32 %v3156, %v3692
        %v3765 = vmul.f32 %v3157, %v3702
        %v3766 = vmul.f32 %v3158, %v3702
        %v3767 = vld [vmem:[#allocation9] sm:$0x3]
        %v3769 = vperm.slane %v3767, 0
        %v3770 = vperm.slane %v3767, 1
        %v3773 = vmul.f32 %v3703, %v3769
        %v3774 = vmul.f32 %v3704, %v3770
        %v3775 = vmul.f32 %v3705, %v3769
        %v3776 = vmul.f32 %v3706, %v3770
        %v3777 = vmul.f32 %v3707, %v3769
        %v3778 = vmul.f32 %v3708, %v3770
        %v3779 = vmul.f32 %v3709, %v3769
        %v3780 = vmul.f32 %v3710, %v3770
        %v3781 = vmul.f32 %v3711, %v3769
        %v3782 = vmul.f32 %v3712, %v3770
        %v3783 = vmul.f32 %v3713, %v3769
        %v3784 = vmul.f32 %v3714, %v3770
        %v3785 = vmul.f32 %v3715, %v3769
        %v3786 = vmul.f32 %v3716, %v3770
        %v3787 = vmul.f32 %v3717, %v3769
        %v3788 = vmul.f32 %v3718, %v3770
        %v3789 = vmul.f32 %v3719, %v3769
        %v3790 = vmul.f32 %v3720, %v3770
        %v3791 = vmul.f32 %v3721, %v3769
        %v3792 = vmul.f32 %v3722, %v3770
        %v3793 = vmul.f32 %v3723, %v3769
        %v3794 = vmul.f32 %v3724, %v3770
        %v3795 = vmul.f32 %v3725, %v3769
        %v3796 = vmul.f32 %v3726, %v3770
        %v3797 = vmul.f32 %v3727, %v3769
        %v3798 = vmul.f32 %v3728, %v3770
        %v3799 = vmul.f32 %v3729, %v3769
        %v3800 = vmul.f32 %v3730, %v3770
        %v3801 = vmul.f32 %v3731, %v3769
        %v3802 = vmul.f32 %v3732, %v3770
        %v3803 = vmul.f32 %v3733, %v3769
        %v3804 = vmul.f32 %v3734, %v3770
        %v3805 = vmul.f32 %v3735, %v3769
        %v3806 = vmul.f32 %v3736, %v3770
        %v3807 = vmul.f32 %v3737, %v3769
        %v3808 = vmul.f32 %v3738, %v3770
        %v3809 = vmul.f32 %v3739, %v3769
        %v3810 = vmul.f32 %v3740, %v3770
        %v3811 = vmul.f32 %v3741, %v3769
        %v3812 = vmul.f32 %v3742, %v3770
        %v3813 = vmul.f32 %v3743, %v3769
        %v3814 = vmul.f32 %v3744, %v3770
        %v3815 = vmul.f32 %v3745, %v3769
        %v3816 = vmul.f32 %v3746, %v3770
        %v3817 = vmul.f32 %v3747, %v3769
        %v3818 = vmul.f32 %v3748, %v3770
        %v3819 = vmul.f32 %v3749, %v3769
        %v3820 = vmul.f32 %v3750, %v3770
        %v3821 = vmul.f32 %v3751, %v3769
        %v3822 = vmul.f32 %v3752, %v3770
        %v3823 = vmul.f32 %v3753, %v3769
        %v3824 = vmul.f32 %v3754, %v3770
        %v3825 = vmul.f32 %v3755, %v3769
        %v3826 = vmul.f32 %v3756, %v3770
        %v3827 = vmul.f32 %v3757, %v3769
        %v3828 = vmul.f32 %v3758, %v3770
        %v3829 = vmul.f32 %v3759, %v3769
        %v3830 = vmul.f32 %v3760, %v3770
        %v3831 = vmul.f32 %v3761, %v3769
        %v3832 = vmul.f32 %v3762, %v3770
        %v3833 = vmul.f32 %v3763, %v3769
        %v3834 = vmul.f32 %v3764, %v3770
        %v3835 = vmul.f32 %v3765, %v3769
        %v3836 = vmul.f32 %v3766, %v3770
        %v3837 = vld [vmem:[#allocation11] sm:$0x3]
        %v3839 = vperm.slane %v3837, 0
        %v3840 = vperm.slane %v3837, 1
        %v3843 = vadd.f32 %v3773, %v3839
        %v3844 = vadd.f32 %v3774, %v3840
        %v3845 = vadd.f32 %v3775, %v3839
        %v3846 = vadd.f32 %v3776, %v3840
        %v3847 = vadd.f32 %v3777, %v3839
        %v3848 = vadd.f32 %v3778, %v3840
        %v3849 = vadd.f32 %v3779, %v3839
        %v3850 = vadd.f32 %v3780, %v3840
        %v3851 = vadd.f32 %v3781, %v3839
        %v3852 = vadd.f32 %v3782, %v3840
        %v3853 = vadd.f32 %v3783, %v3839
        %v3854 = vadd.f32 %v3784, %v3840
        %v3855 = vadd.f32 %v3785, %v3839
        %v3856 = vadd.f32 %v3786, %v3840
        %v3857 = vadd.f32 %v3787, %v3839
        %v3858 = vadd.f32 %v3788, %v3840
        %v3859 = vadd.f32 %v3789, %v3839
        %v3860 = vadd.f32 %v3790, %v3840
        %v3861 = vadd.f32 %v3791, %v3839
        %v3862 = vadd.f32 %v3792, %v3840
        %v3863 = vadd.f32 %v3793, %v3839
        %v3864 = vadd.f32 %v3794, %v3840
        %v3865 = vadd.f32 %v3795, %v3839
        %v3866 = vadd.f32 %v3796, %v3840
        %v3867 = vadd.f32 %v3797, %v3839
        %v3868 = vadd.f32 %v3798, %v3840
        %v3869 = vadd.f32 %v3799, %v3839
        %v3870 = vadd.f32 %v3800, %v3840
        %v3871 = vadd.f32 %v3801, %v3839
        %v3872 = vadd.f32 %v3802, %v3840
        %v3873 = vadd.f32 %v3803, %v3839
        %v3874 = vadd.f32 %v3804, %v3840
        %v3875 = vadd.f32 %v3805, %v3839
        %v3876 = vadd.f32 %v3806, %v3840
        %v3877 = vadd.f32 %v3807, %v3839
        %v3878 = vadd.f32 %v3808, %v3840
        %v3879 = vadd.f32 %v3809, %v3839
        %v3880 = vadd.f32 %v3810, %v3840
        %v3881 = vadd.f32 %v3811, %v3839
        %v3882 = vadd.f32 %v3812, %v3840
        %v3883 = vadd.f32 %v3813, %v3839
        %v3884 = vadd.f32 %v3814, %v3840
        %v3885 = vadd.f32 %v3815, %v3839
        %v3886 = vadd.f32 %v3816, %v3840
        %v3887 = vadd.f32 %v3817, %v3839
        %v3888 = vadd.f32 %v3818, %v3840
        %v3889 = vadd.f32 %v3819, %v3839
        %v3890 = vadd.f32 %v3820, %v3840
        %v3891 = vadd.f32 %v3821, %v3839
        %v3892 = vadd.f32 %v3822, %v3840
        %v3893 = vadd.f32 %v3823, %v3839
        %v3894 = vadd.f32 %v3824, %v3840
        %v3895 = vadd.f32 %v3825, %v3839
        %v3896 = vadd.f32 %v3826, %v3840
        %v3897 = vadd.f32 %v3827, %v3839
        %v3898 = vadd.f32 %v3828, %v3840
        %v3899 = vadd.f32 %v3829, %v3839
        %v3900 = vadd.f32 %v3830, %v3840
        %v3901 = vadd.f32 %v3831, %v3839
        %v3902 = vadd.f32 %v3832, %v3840
        %v3903 = vadd.f32 %v3833, %v3839
        %v3904 = vadd.f32 %v3834, %v3840
        %v3905 = vadd.f32 %v3835, %v3839
        %v3906 = vadd.f32 %v3836, %v3840
        %v3907 = vmax.f32 %v3843, 0.0
        %v3908 = vmax.f32 %v3844, 0.0
        %v3909 = vmax.f32 %v3845, 0.0
        %v3910 = vmax.f32 %v3846, 0.0
        %v3911 = vmax.f32 %v3847, 0.0
        %v3912 = vmax.f32 %v3848, 0.0
        %v3913 = vmax.f32 %v3849, 0.0
        %v3914 = vmax.f32 %v3850, 0.0
        %v3915 = vmax.f32 %v3851, 0.0
        %v3916 = vmax.f32 %v3852, 0.0
        %v3917 = vmax.f32 %v3853, 0.0
        %v3918 = vmax.f32 %v3854, 0.0
        %v3919 = vmax.f32 %v3855, 0.0
        %v3920 = vmax.f32 %v3856, 0.0
        %v3921 = vmax.f32 %v3857, 0.0
        %v3922 = vmax.f32 %v3858, 0.0
        %v3923 = vmax.f32 %v3859, 0.0
        %v3924 = vmax.f32 %v3860, 0.0
        %v3925 = vmax.f32 %v3861, 0.0
        %v3926 = vmax.f32 %v3862, 0.0
        %v3927 = vmax.f32 %v3863, 0.0
        %v3928 = vmax.f32 %v3864, 0.0
        %v3929 = vmax.f32 %v3865, 0.0
        %v3930 = vmax.f32 %v3866, 0.0
        %v3931 = vmax.f32 %v3867, 0.0
        %v3932 = vmax.f32 %v3868, 0.0
        %v3933 = vmax.f32 %v3869, 0.0
        %v3934 = vmax.f32 %v3870, 0.0
        %v3935 = vmax.f32 %v3871, 0.0
        %v3936 = vmax.f32 %v3872, 0.0
        %v3937 = vmax.f32 %v3873, 0.0
        %v3938 = vmax.f32 %v3874, 0.0
        %v3939 = vmax.f32 %v3875, 0.0
        %v3940 = vmax.f32 %v3876, 0.0
        %v3941 = vmax.f32 %v3877, 0.0
        %v3942 = vmax.f32 %v3878, 0.0
        %v3943 = vmax.f32 %v3879, 0.0
        %v3944 = vmax.f32 %v3880, 0.0
        %v3945 = vmax.f32 %v3881, 0.0
        %v3946 = vmax.f32 %v3882, 0.0
        %v3947 = vmax.f32 %v3883, 0.0
        %v3948 = vmax.f32 %v3884, 0.0
        %v3949 = vmax.f32 %v3885, 0.0
        %v3950 = vmax.f32 %v3886, 0.0
        %v3951 = vmax.f32 %v3887, 0.0
        %v3952 = vmax.f32 %v3888, 0.0
        %v3953 = vmax.f32 %v3889, 0.0
        %v3954 = vmax.f32 %v3890, 0.0
        %v3955 = vmax.f32 %v3891, 0.0
        %v3956 = vmax.f32 %v3892, 0.0
        %v3957 = vmax.f32 %v3893, 0.0
        %v3958 = vmax.f32 %v3894, 0.0
        %v3959 = vmax.f32 %v3895, 0.0
        %v3960 = vmax.f32 %v3896, 0.0
        %v3961 = vmax.f32 %v3897, 0.0
        %v3962 = vmax.f32 %v3898, 0.0
        %v3963 = vmax.f32 %v3899, 0.0
        %v3964 = vmax.f32 %v3900, 0.0
        %v3965 = vmax.f32 %v3901, 0.0
        %v3966 = vmax.f32 %v3902, 0.0
        %v3967 = vmax.f32 %v3903, 0.0
        %v3968 = vmax.f32 %v3904, 0.0
        %v3969 = vmax.f32 %v3905, 0.0
        %v3970 = vmax.f32 %v3906, 0.0
        %v3971 = vld [vmem:[#allocation12] sm:$0x3]
        %s3972 = sld [smem:[#allocation2]]
        %v3973 = vstv %s3972
        %v3975 = vperm.slane %v3971, 0
        %v3976 = vperm.slane %v3971, 1
        %3979 = vmatpush.xpose.msra.mxu0 %v3937
        %3980 = vmatpush.xpose.msra.mxu0 %v3935
        %3981 = vmatpush.xpose.msra.mxu0 %v3933
        %3982 = vmatpush.xpose.msra.mxu0 %v3931
        %3983 = vmatpush.xpose.msra.mxu0 %v3929
        %3984 = vmatpush.xpose.msra.mxu0 %v3927
        %3985 = vmatpush.xpose.msra.mxu0 %v3925
        %3986 = vmatpush.xpose.msra.mxu0 %v3923
        %3987 = vmatpush.xpose.msra.mxu0 %v3921
        %3988 = vmatpush.xpose.msra.mxu0 %v3919
        %3989 = vmatpush.xpose.msra.mxu0 %v3917
        %3990 = vmatpush.xpose.msra.mxu0 %v3915
        %3991 = vmatpush.xpose.msra.mxu0 %v3913
        %3992 = vmatpush.xpose.msra.mxu0 %v3911
        %3993 = vmatpush.xpose.msra.mxu0 %v3909
        %3994 = vmatpush.xpose.msra.mxu0 %v3907
        %3995 = vmatmul.f32.gmra.mxu0 %v3975
        %v3996 = vpop.f32.mrf.mxu0
        %v3997 = vadd.f32 %v3973, %v3996
        %3998 = vdwg.mxu0
        %3999 = vmatpush.xpose.msra.mxu0 %v3938
        %4000 = vmatpush.xpose.msra.mxu0 %v3936
        %4001 = vmatpush.xpose.msra.mxu0 %v3934
        %4002 = vmatpush.xpose.msra.mxu0 %v3932
        %4003 = vmatpush.xpose.msra.mxu0 %v3930
        %4004 = vmatpush.xpose.msra.mxu0 %v3928
        %4005 = vmatpush.xpose.msra.mxu0 %v3926
        %4006 = vmatpush.xpose.msra.mxu0 %v3924
        %4007 = vmatpush.xpose.msra.mxu0 %v3922
        %4008 = vmatpush.xpose.msra.mxu0 %v3920
        %4009 = vmatpush.xpose.msra.mxu0 %v3918
        %4010 = vmatpush.xpose.msra.mxu0 %v3916
        %4011 = vmatpush.xpose.msra.mxu0 %v3914
        %4012 = vmatpush.xpose.msra.mxu0 %v3912
        %4013 = vmatpush.xpose.msra.mxu0 %v3910
        %4014 = vmatpush.xpose.msra.mxu0 %v3908
        %4015 = vmatmul.f32.gmra.mxu0 %v3976
        %v4016 = vpop.f32.mrf.mxu0
        %v4017 = vadd.f32 %v3997, %v4016
        %4018 = vdwg.mxu0
        %4019 = vmatpush.xpose.msra.mxu0 %v3969
        %4020 = vmatpush.xpose.msra.mxu0 %v3967
        %4021 = vmatpush.xpose.msra.mxu0 %v3965
        %4022 = vmatpush.xpose.msra.mxu0 %v3963
        %4023 = vmatpush.xpose.msra.mxu0 %v3961
        %4024 = vmatpush.xpose.msra.mxu0 %v3959
        %4025 = vmatpush.xpose.msra.mxu0 %v3957
        %4026 = vmatpush.xpose.msra.mxu0 %v3955
        %4027 = vmatpush.xpose.msra.mxu0 %v3953
        %4028 = vmatpush.xpose.msra.mxu0 %v3951
        %4029 = vmatpush.xpose.msra.mxu0 %v3949
        %4030 = vmatpush.xpose.msra.mxu0 %v3947
        %4031 = vmatpush.xpose.msra.mxu0 %v3945
        %4032 = vmatpush.xpose.msra.mxu0 %v3943
        %4033 = vmatpush.xpose.msra.mxu0 %v3941
        %4034 = vmatpush.xpose.msra.mxu0 %v3939
        %4035 = vmatmul.f32.gmra.mxu0 %v3975
        %v4036 = vpop.f32.mrf.mxu0
        %v4037 = vadd.f32 %v3973, %v4036
        %4038 = vdwg.mxu0
        %4039 = vmatpush.xpose.msra.mxu0 %v3970
        %4040 = vmatpush.xpose.msra.mxu0 %v3968
        %4041 = vmatpush.xpose.msra.mxu0 %v3966
        %4042 = vmatpush.xpose.msra.mxu0 %v3964
        %4043 = vmatpush.xpose.msra.mxu0 %v3962
        %4044 = vmatpush.xpose.msra.mxu0 %v3960
        %4045 = vmatpush.xpose.msra.mxu0 %v3958
        %4046 = vmatpush.xpose.msra.mxu0 %v3956
        %4047 = vmatpush.xpose.msra.mxu0 %v3954
        %4048 = vmatpush.xpose.msra.mxu0 %v3952
        %4049 = vmatpush.xpose.msra.mxu0 %v3950
        %4050 = vmatpush.xpose.msra.mxu0 %v3948
        %4051 = vmatpush.xpose.msra.mxu0 %v3946
        %4052 = vmatpush.xpose.msra.mxu0 %v3944
        %4053 = vmatpush.xpose.msra.mxu0 %v3942
        %4054 = vmatpush.xpose.msra.mxu0 %v3940
        %4055 = vmatmul.f32.gmra.mxu0 %v3976
        %v4056 = vpop.f32.mrf.mxu0
        %v4057 = vadd.f32 %v4037, %v4056
        %4058 = vdwg.mxu0
        %v4061 = vrot.slane %v4057, 7
        %vm4062 = vcmask 1040384
        %v4063 = vsel %vm4062, %v4017, %v4061
        %v4065 = vlaneseq
        %vm4066 = vcmp.ge.s32.totalorder %v4065, 0
        %vm4067 = vcmp.lt.s32.totalorder %v4065, 256
        %vm4068 = vmand %vm4066, %vm4067
        %4069 = vst.msk [vmem:[%s375] sm:$0x3] %vm4068, %v4063
        %s4070 = sand.u32 %s188, 1
        %s4071 = scalar_lea.sflag [#allocation5], %s4070
        %s4072 = sand.u32 %s188, 1
        %s4073 = smul.addr %s4072, 2
        %s4074 = scalar_lea.vmem [#allocation14], %s4073
        // Predicated region
        $region73: #{tpu_custom_call.1} parent=47 // pred_check
          %p4075 = pneg %p198
        $region74: #{tpu_custom_call.1} parent=47 // pred_check_branch
          %4077 = sbr.rel (%p4075) target = $region76
        $region75: #{tpu_custom_call.1} parent=47 // pred_region
          %s4078 = smul.u32 2, %s28
          %4080 = vsyncadd %s4071, 0
          %s4081 = scalar_lea.hbm %s7, %s4078
          %s4083 = sshll.u32 %s4074, 4
          %s4084 = int_to_ptr.vmem [resolvable:$true] %s4083
          %s4085 = sshll.u32 %s4081, 4
          %s4086 = int_to_ptr.hbm [resolvable:$true] %s4085
          %4088 = dma.vmem_to_hbm [thread:$0]  %s4084, 32, %s4086, %s4071
        $region76: #{tpu_custom_call.1} parent=47 // pred_fallthru
          _
      $region48: #{tpu_custom_call.1} parent=5 // pred_fallthru
        _
      %p4089 = scmp.le.s32.totalorder 2, %s23
      // Predicated region
      $region77: #{tpu_custom_call.1} parent=5 // pred_check
        %p4090 = pneg %p4089
      $region78: #{tpu_custom_call.1} parent=5 // pred_check_branch
        %4092 = sbr.rel (%p4090) target = $region80
      $region79: #{tpu_custom_call.1} parent=5 // pred_region
        %s4093 = ssub.s32 %s23, 2
        // Predicated region
        $region81: #{tpu_custom_call.1} parent=79 // pred_check
          %p4094 = pneg %p204
        $region82: #{tpu_custom_call.1} parent=79 // pred_check_branch
          %4096 = sbr.rel (%p4094) target = $region84
        $region83: #{tpu_custom_call.1} parent=79 // pred_region
          %s4097 = sand.u32 %s189, 1
          %s4098 = scalar_lea.sflag [#allocation5], %s4097
          %s4099 = sand.u32 %s189, 1
          %s4100 = smul.addr %s4099, 2
          %s4101 = scalar_lea.vmem [#allocation14], %s4100
          %4103 = dma.done %s4098, 32
        $region84: #{tpu_custom_call.1} parent=79 // pred_fallthru
          _
      $region80: #{tpu_custom_call.1} parent=5 // pred_fallthru
        _
    $region6: #{tpu_custom_call.1} parent=1 // loop_footer
      %s27 = sadd.s32 1, %s23
    $region7: #{tpu_custom_call.1} parent=1 // loop_footer_branch
      %22 = sbr.rel target = $region3
    $region8: #{tpu_custom_call.1} parent=1 // loop_exit
      _
    %4104 = vsyncpa [#allocation4], 1
    %s4105 = scalar_lea.sflag [#allocation4], 1
    %4106 = vsyncpa %s4105, 1
    %4107 = vsyncpa [#allocation7], 1
    %4108 = vsyncpa [#allocation10], 1
    %4109 = vsyncpa [#allocation13], 1
    %4110 = vsyncpa [#allocation5], 1
    %s4111 = scalar_lea.sflag [#allocation5], 1
    %4112 = vsyncpa %s4111, 1

</llo_original>
